<compile_context>
chip_gen: v5e
topology: v5e:2x2
jax: 0.10.0
libtpu: 0.0.40
codegen_flags: <defaults>
</compile_context>

<pallas_src>
import functools

import jax
import jax.numpy as jnp
import numpy as np
from jax.experimental import pallas as pl
from jax.experimental.pallas import tpu as pltpu

_LANE = 128
_SQRT2_INV = 0.7071067811865476
_SQRT_2_OVER_PI = 0.7978845608028654
_GELU_C = 0.044715


def _pad_to_lane(c):
    return ((c + _LANE - 1) // _LANE) * _LANE


# ----------------------------------------------------------------------------
# GELU epilogue: tanh form.  ~8 VPU ops + one EUP tanh per element (vs ~14 VPU
# ops for the erf rational approximation).  Max abs deviation from erf-GELU is
# ~1e-3, validated against the exact-erf reference below.
# ----------------------------------------------------------------------------
def _gelu(x):
    inner = _SQRT_2_OVER_PI * (x * (1.0 + _GELU_C * x * x))
    return 0.5 * x * (1.0 + jnp.tanh(inner))


# ----------------------------------------------------------------------------
# Pallas kernels
# ----------------------------------------------------------------------------
def _conv1x1_gelu_kernel(x_ref, w_ref, b_ref, o_ref):
    # (tm, K) x (K, C) with BN scale already folded into w; only a shift row.
    acc = jnp.dot(x_ref[...], w_ref[...], preferred_element_type=jnp.float32)
    o_ref[...] = _gelu(acc + b_ref[...]).astype(o_ref.dtype)


def _conv3x3_gelu_kernel(img_ref, w_ref, b_ref, o_ref, *, stride, tr, wo, cm):
    # grid = (batch, ho // tr).  The whole phase-grouped padded image for this
    # batch element is resident in VMEM (block index constant along axis 1).
    # img_ref block: (1, Hp//s, s, Wp//s, s*cm)
    j = pl.program_id(1)
    rows = tr * wo
    r0 = j * tr
    acc = jnp.zeros((rows, cm), jnp.float32)
    for ky in range(3):
        gy, py = ky // stride, ky % stride
        for kx in range(3):
            gx, px = kx // stride, kx % stride
            # Ref-slice (offsets folded into the load, no value-level shuffle):
            # tr output rows x wo output cols for this tap, contiguous.
            patch = img_ref[0, pl.ds(r0 + gy, tr), py, pl.ds(gx, wo),
                            pl.ds(px * cm, cm)]
            # TODO(synk): the (tr, wo, cm) -> (tr*wo, cm) collapse is free only
            # when wo % 8 == 0 (true for the shapes exercised here).
            acc = acc + jnp.dot(patch.reshape(rows, cm), w_ref[3 * ky + kx],
                                preferred_element_type=jnp.float32)
    o_ref[0] = _gelu(acc + b_ref[...]).astype(o_ref.dtype)


def _conv1x1_res_gelu_kernel(y_ref, w3_ref, b3_ref, xs_ref, ws_ref, bs_ref,
                             o_ref, *, rows, cin_p):
    # Main 1x1 conv (bn3 scale folded) on the whole (rows, cm) tile.
    main = jnp.dot(y_ref[0], w3_ref[...], preferred_element_type=jnp.float32)
    main = main + b3_ref[...]
    # Shortcut: the BlockSpec already delivered the spatially-strided pixels;
    # ONE flattened matmul (M = rows) instead of per-row small matmuls.
    xs = xs_ref[0, :, 0, :, :].reshape(rows, cin_p)
    short = jnp.dot(xs, ws_ref[...], preferred_element_type=jnp.float32)
    short = short + bs_ref[...]
    # Single dense (rows, co) store.
    o_ref[0] = _gelu(main + short).astype(o_ref.dtype)


# ----------------------------------------------------------------------------
# tiling / compiler-param helpers
# ----------------------------------------------------------------------------
def _pick_tile_m(m, target=1024):
    """Largest multiple-of-8 divisor of m <= target, preferring >=2 tiles so
    both v7x TensorCores get work; falls back to a single full block (full-dim
    blocks are always layout-legal)."""
    cands = [t for t in range(8, min(m, target) + 1, 8) if m % t == 0]
    multi = [t for t in cands if m // t >= 2]
    if multi:
        return max(multi)
    if cands:
        return max(cands)
    return m


def _pick_row_tile(ho, wo, target=512):
    """Row tile TR for the spatial stages: TR divides ho and TR*wo is a
    multiple of 8 (or TR == ho, the full dim, which is always legal)."""
    good = [tr for tr in range(1, ho + 1)
            if ho % tr == 0 and tr * wo <= target
            and ((tr * wo) % 8 == 0 or tr == ho)]
    return max(good) if good else ho


def _vmem_limit_bytes():
    # Generation-aware cap: ~half of physical VMEM (128 MiB on v5e/v6e,
    # 64 MiB/TC on v7x); conservative 32 MiB fallback if the query fails.
    try:
        cap = int(pltpu.get_tpu_info().vmem_capacity_bytes)
        return int(min(max(cap // 2, 16 << 20), 100 << 20))
    except Exception:
        return 32 << 20


def _cparams(sem):
    return pltpu.CompilerParams(dimension_semantics=sem,
                                vmem_limit_bytes=_vmem_limit_bytes())


# ----------------------------------------------------------------------------
# pallas_call wrappers
# ----------------------------------------------------------------------------
def _conv1x1_gelu(x2d, w, b, *, out_dtype):
    m, k = x2d.shape
    nc = w.shape[1]
    tm = _pick_tile_m(m)
    cost = pl.CostEstimate(
        flops=2 * m * k * nc,
        transcendentals=m * nc,
        bytes_accessed=(m * k * x2d.dtype.itemsize + k * nc * w.dtype.itemsize
                        + m * nc * jnp.dtype(out_dtype).itemsize))
    return pl.pallas_call(
        _conv1x1_gelu_kernel,
        out_shape=jax.ShapeDtypeStruct((m, nc), out_dtype),
        grid=(m // tm,),
        in_specs=[pl.BlockSpec((tm, k), lambda i: (i, 0)),
                  pl.BlockSpec((k, nc), lambda i: (0, 0)),
                  pl.BlockSpec((1, nc), lambda i: (0, 0))],
        out_specs=pl.BlockSpec((tm, nc), lambda i: (i, 0)),
        compiler_params=_cparams(("parallel",)),
        cost_estimate=cost,
    )(x2d, w, b)


def _conv3x3_gelu(yg, w2, b2, *, n, ho, wo, stride, cm, out_dtype):
    hg, sg, wg, scm = yg.shape[1:]
    tr = _pick_row_tile(ho, wo)
    rows = tr * wo
    kern = functools.partial(_conv3x3_gelu_kernel, stride=stride, tr=tr,
                             wo=wo, cm=cm)
    cost = pl.CostEstimate(
        flops=2 * n * ho * wo * 9 * cm * cm,
        transcendentals=n * ho * wo * cm,
        bytes_accessed=(n * hg * sg * wg * scm * yg.dtype.itemsize
                        + 9 * cm * cm * w2.dtype.itemsize
                        + n * ho * wo * cm * jnp.dtype(out_dtype).itemsize))
    return pl.pallas_call(
        kern,
        out_shape=jax.ShapeDtypeStruct((n, ho * wo, cm), out_dtype),
        grid=(n, ho // tr),
        in_specs=[pl.BlockSpec((1, hg, sg, wg, scm),
                               lambda i, j: (i, 0, 0, 0, 0)),
                  pl.BlockSpec((9, cm, cm), lambda i, j: (0, 0, 0)),
                  pl.BlockSpec((1, cm), lambda i, j: (0, 0))],
        out_specs=pl.BlockSpec((1, rows, cm), lambda i, j: (i, j, 0)),
        compiler_params=_cparams(("parallel", "parallel")),
        cost_estimate=cost,
    )(yg, w2, b2)


def _conv1x1_res_gelu(y2, w3, b3, xg, ws, bs, *, n, ho, wo, out_dtype):
    cm = y2.shape[-1]
    cin_p = ws.shape[0]
    co_p = w3.shape[1]
    tr = _pick_row_tile(ho, wo)
    rows = tr * wo
    m_total = n * ho * wo
    kern = functools.partial(_conv1x1_res_gelu_kernel, rows=rows, cin_p=cin_p)
    cost = pl.CostEstimate(
        flops=2 * m_total * (cm + cin_p) * co_p,
        transcendentals=m_total * co_p,
        bytes_accessed=(m_total * cm * y2.dtype.itemsize
                        + m_total * cin_p * xg.dtype.itemsize
                        + (cm + cin_p) * co_p * w3.dtype.itemsize
                        + m_total * co_p * jnp.dtype(out_dtype).itemsize))
    return pl.pallas_call(
        kern,
        out_shape=jax.ShapeDtypeStruct((n, ho * wo, co_p), out_dtype),
        grid=(n, ho // tr),
        in_specs=[pl.BlockSpec((1, rows, cm), lambda i, j: (i, j, 0)),
                  pl.BlockSpec((cm, co_p), lambda i, j: (0, 0)),
                  pl.BlockSpec((1, co_p), lambda i, j: (0, 0)),
                  pl.BlockSpec((1, tr, 1, wo, cin_p),
                               lambda i, j: (i, j, 0, 0, 0)),
                  pl.BlockSpec((cin_p, co_p), lambda i, j: (0, 0)),
                  pl.BlockSpec((1, co_p), lambda i, j: (0, 0))],
        out_specs=pl.BlockSpec((1, rows, co_p), lambda i, j: (i, j, 0)),
        compiler_params=_cparams(("parallel", "parallel")),
        cost_estimate=cost,
    )(y2, w3, b3, xg, ws, bs)


# ----------------------------------------------------------------------------
# one-time parameter preparation (BN folding into weights, lane padding)
# ----------------------------------------------------------------------------
def prepare_params(P, compute_dtype=jnp.float32, eps=1e-5):
    """Fold BN (eval-mode running stats) into the conv weights (scale) plus a
    per-channel shift row; transpose & zero-pad everything to lane-dense
    (multiple-of-128) channel dims.  Done once, outside forward."""
    planes, cin = P["w1"].shape[:2]
    cout = P["w3"].shape[0]
    cin_p, cm, co_p = _pad_to_lane(cin), _pad_to_lane(planes), _pad_to_lane(cout)

    def scale_shift(bn):
        gamma, beta, mean, var = bn
        scale = gamma / jnp.sqrt(var + eps)
        return scale, beta - mean * scale

    def pad_shift(shift, c_pad):
        return jnp.zeros((1, c_pad), jnp.float32).at[0, :shift.shape[0]].set(shift)

    def fold_1x1(w, bn, ci_pad, co_pad):
        scale, shift = scale_shift(bn)
        w2d = w[:, :, 0, 0].T * scale[None, :]          # (I, O), scale folded
        wpad = (jnp.zeros((ci_pad, co_pad), jnp.float32)
                .at[:w2d.shape[0], :w2d.shape[1]].set(w2d)
                .astype(compute_dtype))
        return wpad, pad_shift(shift, co_pad)

    w1, b1 = fold_1x1(P["w1"], P["bn1"], cin_p, cm)
    w3, b3 = fold_1x1(P["w3"], P["bn3"], cm, co_p)
    ws, bs = fold_1x1(P["ws"], P["bns"], cin_p, co_p)

    # 3x3 weight: (O, I, ky, kx) -> (ky*3+kx, I, O), fold bn2 scale, zero-pad.
    scale2, shift2 = scale_shift(P["bn2"])
    w2t = jnp.transpose(P["w2"], (2, 3, 1, 0)).reshape(9, planes, planes)
    w2t = w2t * scale2[None, None, :]
    w2 = (jnp.zeros((9, cm, cm), jnp.float32)
          .at[:, :planes, :planes].set(w2t).astype(compute_dtype))

    return {"w1": w1, "b1": b1, "w2": w2, "b2": pad_shift(shift2, cm),
            "w3": w3, "b3": b3, "ws": ws, "bs": bs}


# ----------------------------------------------------------------------------
# forward pass
# ----------------------------------------------------------------------------
@functools.partial(jax.jit, static_argnames=("stride", "cout"))
def bottleneck_forward(x_nchw, prep, *, stride, cout):
    """Pallas implementation of Bottleneck.forward (input/output NCHW)."""
    w1, b1 = prep["w1"], prep["b1"]
    w2, b2 = prep["w2"], prep["b2"]
    w3, b3 = prep["w3"], prep["b3"]
    ws, bs = prep["ws"], prep["bs"]
    cdtype = w1.dtype
    cin_p, cm = w1.shape

    n, cin, h, w = x_nchw.shape
    s = stride
    ho = (h - 1) // s + 1
    wo = (w - 1) // s + 1

    x = jnp.transpose(x_nchw, (0, 2, 3, 1))                      # NCHW -> NHWC
    x = jnp.pad(x, ((0, 0), (0, 0), (0, 0), (0, cin_p - cin)))   # lane-dense C
    x = x.astype(cdtype)

    # --- conv1 (1x1) + bn1 + gelu ---------------------------------------
    y1 = _conv1x1_gelu(x.reshape(n * h * w, cin_p), w1, b1, out_dtype=cdtype)

    # --- conv2 (3x3, stride, pad=1) + bn2 + gelu ------------------------
    # Cheap compute-dtype halo pad, then FREE reshapes group every `s`
    # neighbouring rows/columns by stride phase so each of the 9 taps is a
    # contiguous (TR*Wo, Cm) slice inside the kernel (no im2col in HBM).
    pad_r = 1 + ((-(w + 2)) % s)
    pad_b = 1 + ((-(h + 2)) % s)
    hp, wp = h + 1 + pad_b, w + 1 + pad_r
    yp = jnp.pad(y1.reshape(n, h, w, cm),
                 ((0, 0), (1, pad_b), (1, pad_r), (0, 0)))
    yg = yp.reshape(n, hp // s, s, wp // s, s * cm)
    y2 = _conv3x3_gelu(yg, w2, b2, n=n, ho=ho, wo=wo, stride=s, cm=cm,
                       out_dtype=cdtype)

    # --- conv3 (1x1) + bn3 + shortcut(1x1 conv + bn) + add + gelu -------
    if h % s == 0 and w % s == 0:
        # Free reshape: phase-0 of the (s, s*C) groups is exactly the strided
        # shortcut pixel x[:, ::s, ::s, :]; the BlockSpec index_map picks it,
        # so the DMA does the strided gather (no XLA copy).
        xg = x.reshape(n, ho, s, wo, s * cin_p)
    else:
        # TODO(synk): odd spatial dims with stride>1 fall back to an XLA
        # strided-slice gather.
        xg = x[:, ::s, ::s, :].reshape(n, ho, 1, wo, cin_p)
    out = _conv1x1_res_gelu(y2, w3, b3, xg, ws, bs, n=n, ho=ho, wo=wo,
                            out_dtype=cdtype)

    out = out[..., :cout].reshape(n, ho, wo, cout)
    return jnp.transpose(out, (0, 3, 1, 2))                      # NHWC -> NCHW


# ----------------------------------------------------------------------------
# pure-JAX reference (mirrors the PyTorch module in eval mode, exact erf GELU)
# ----------------------------------------------------------------------------
def ref_forward(x_nchw, P, stride):
    def conv(x, w, s, p):
        return jax.lax.conv_general_dilated(
            x, w, (s, s), [(p, p), (p, p)],
            dimension_numbers=("NCHW", "OIHW", "NCHW"))

    def bn(x, g, b, m, v, eps=1e-5):
        sc = g / jnp.sqrt(v + eps)
        return x * sc[None, :, None, None] + (b - m * sc)[None, :, None, None]

    gelu = lambda z: 0.5 * z * (1.0 + jax.scipy.special.erf(z * _SQRT2_INV))

    out = gelu(bn(conv(x_nchw, P["w1"], 1, 0), *P["bn1"]))
    out = gelu(bn(conv(out, P["w2"], stride, 1), *P["bn2"]))
    out = bn(conv(out, P["w3"], 1, 0), *P["bn3"])
    short = bn(conv(x_nchw, P["ws"], stride, 0), *P["bns"])
    return gelu(out + short)


# ----------------------------------------------------------------------------
if __name__ == "__main__":
    key = jax.random.PRNGKey(0)
    ks = jax.random.split(key, 9)

    in_planes, planes, expansion = 16, 8, 4
    N, H, W = 2, 16, 16

    def bn_params(k, c):
        k1, k2, k3, k4 = jax.random.split(k, 4)
        gamma = 1.0 + 0.1 * jax.random.normal(k1, (c,), jnp.float32)
        beta = 0.1 * jax.random.normal(k2, (c,), jnp.float32)
        mean = 0.1 * jax.random.normal(k3, (c,), jnp.float32)
        var = 1.0 + 0.1 * jax.random.uniform(k4, (c,), jnp.float32)
        return (gamma, beta, mean, var)

    P = {
        "w1": 0.3 * jax.random.normal(ks[0], (planes, in_planes, 1, 1), jnp.float32),
        "bn1": bn_params(ks[1], planes),
        "w2": 0.2 * jax.random.normal(ks[2], (planes, planes, 3, 3), jnp.float32),
        "bn2": bn_params(ks[3], planes),
        "w3": 0.3 * jax.random.normal(ks[4], (expansion * planes, planes, 1, 1), jnp.float32),
        "bn3": bn_params(ks[5], expansion * planes),
        "ws": 0.3 * jax.random.normal(ks[6], (expansion * planes, in_planes, 1, 1), jnp.float32),
        "bns": bn_params(ks[7], expansion * planes),
    }

    x = jax.random.normal(ks[8], (N, in_planes, H, W), jnp.float32)

    for stride in (1, 2):
        ref = jax.block_until_ready(ref_forward(x, P, stride))
        # f32 path: tolerance dominated by the tanh-form GELU approximation.
        # bf16 path: bf16 operands + bf16 output with f32 MXU accumulation.
        for cdtype, tol in ((jnp.float32, 5e-3), (jnp.bfloat16, 4e-2)):
            prep = prepare_params(P, compute_dtype=cdtype)
            out = bottleneck_forward(x, prep, stride=stride,
                                     cout=expansion * planes)
            out = jax.block_until_ready(out)
            assert out.shape == ref.shape, (out.shape, ref.shape)
            np.testing.assert_allclose(np.asarray(out.astype(jnp.float32)),
                                       np.asarray(ref), atol=tol, rtol=tol)

    print("KERNEL_OK")
</pallas_src>

<mosaic_0001>
module attributes {stable_mosaic.version = 11 : i64} {
  func.func @_conv1x1_gelu_kernel(%arg0: i32, %arg1: memref<256x128xf32, #tpu.memory_space<vmem>>, %arg2: memref<128x128xf32, #tpu.memory_space<vmem>>, %arg3: memref<1x128xf32, #tpu.memory_space<vmem>>, %arg4: memref<256x128xf32, #tpu.memory_space<vmem>>) attributes {dimension_semantics = [#tpu.dimension_semantics<parallel>], iteration_bounds = array<i64: 2>, scalar_prefetch = 0 : i64, scratch_operands = 0 : i64, tpu.core_type = #tpu.core_type<tc>, window_params = [{transform_indices = @transform_0, window_bounds = array<i64: 256, 128>}, {pipeline_mode = #tpu.pipeline_mode<synchronous>, transform_indices = @transform_1, window_bounds = array<i64: 128, 128>}, {pipeline_mode = #tpu.pipeline_mode<synchronous>, transform_indices = @transform_2, window_bounds = array<i64: 1, 128>}, {transform_indices = @transform_3, window_bounds = array<i64: 256, 128>}]} {
    %c0 = arith.constant 0 : index
    %c0_0 = arith.constant 0 : index
    %0 = vector.load %arg1[%c0, %c0_0] : memref<256x128xf32, #tpu.memory_space<vmem>>, vector<256x128xf32>
    %c0_1 = arith.constant 0 : index
    %c0_2 = arith.constant 0 : index
    %1 = vector.load %arg2[%c0_1, %c0_2] : memref<128x128xf32, #tpu.memory_space<vmem>>, vector<128x128xf32>
    %cst = arith.constant dense<0.000000e+00> : vector<256x128xf32>
    %2 = tpu.matmul %0, %1, %cst {dimension_numbers = #tpu.dot_dimension_numbers<[1], [0], [0], [1], [0, 0, 1, 1], [], []>} : vector<256x128xf32>, vector<128x128xf32>, vector<256x128xf32> -> vector<256x128xf32>
    %c0_3 = arith.constant 0 : index
    %c0_4 = arith.constant 0 : index
    %3 = vector.load %arg3[%c0_3, %c0_4] : memref<1x128xf32, #tpu.memory_space<vmem>>, vector<1x128xf32>
    %4 = vector.broadcast %3 : vector<1x128xf32> to vector<256x128xf32>
    %5 = arith.addf %2, %4 : vector<256x128xf32>
    %cst_5 = arith.constant 4.471500e-02 : f32
    %6 = vector.broadcast %cst_5 : f32 to vector<256x128xf32>
    %7 = arith.mulf %6, %5 : vector<256x128xf32>
    %8 = arith.mulf %7, %5 : vector<256x128xf32>
    %cst_6 = arith.constant 1.000000e+00 : f32
    %9 = vector.broadcast %cst_6 : f32 to vector<256x128xf32>
    %10 = arith.addf %9, %8 : vector<256x128xf32>
    %11 = arith.mulf %5, %10 : vector<256x128xf32>
    %cst_7 = arith.constant 0.797884583 : f32
    %12 = vector.broadcast %cst_7 : f32 to vector<256x128xf32>
    %13 = arith.mulf %12, %11 : vector<256x128xf32>
    %cst_8 = arith.constant 5.000000e-01 : f32
    %14 = vector.broadcast %cst_8 : f32 to vector<256x128xf32>
    %15 = arith.mulf %14, %5 : vector<256x128xf32>
    %16 = math.tanh %13 : vector<256x128xf32>
    %cst_9 = arith.constant 1.000000e+00 : f32
    %17 = vector.broadcast %cst_9 : f32 to vector<256x128xf32>
    %18 = arith.addf %17, %16 : vector<256x128xf32>
    %19 = arith.mulf %15, %18 : vector<256x128xf32>
    %c0_10 = arith.constant 0 : index
    %c0_11 = arith.constant 0 : index
    %20 = vector.load %arg4[%c0_10, %c0_11] : memref<256x128xf32, #tpu.memory_space<vmem>>, vector<256x128xf32>
    tpu.vector_store %arg4[%c0_10, %c0_11], %19 {strides = array<i32>} : memref<256x128xf32, #tpu.memory_space<vmem>>, vector<256x128xf32>,
    return
  }
  func.func @transform_0(%arg0: i32) -> (i32, i32) {
    %c0_i32 = arith.constant 0 : i32
    %c0_i32_0 = arith.constant 0 : i32
    return %arg0, %c0_i32 : i32, i32
  }
  func.func @transform_1(%arg0: i32) -> (i32, i32) {
    %c0_i32 = arith.constant 0 : i32
    %c0_i32_0 = arith.constant 0 : i32
    %c0_i32_1 = arith.constant 0 : i32
    return %c0_i32, %c0_i32_0 : i32, i32
  }
  func.func @transform_2(%arg0: i32) -> (i32, i32) {
    %c0_i32 = arith.constant 0 : i32
    %c0_i32_0 = arith.constant 0 : i32
    %c0_i32_1 = arith.constant 0 : i32
    return %c0_i32, %c0_i32_0 : i32, i32
  }
  func.func @transform_3(%arg0: i32) -> (i32, i32) {
    %c0_i32 = arith.constant 0 : i32
    %c0_i32_0 = arith.constant 0 : i32
    return %arg0, %c0_i32 : i32, i32
  }
}

module attributes {stable_mosaic.version = 11 : i64} {
  func.func @_conv1x1_res_gelu_kernel(%arg0: i32, %arg1: i32, %arg2: memref<1x256x128xf32, #tpu.memory_space<vmem>>, %arg3: memref<128x128xf32, #tpu.memory_space<vmem>>, %arg4: memref<1x128xf32, #tpu.memory_space<vmem>>, %arg5: memref<1x16x1x16x128xf32, #tpu.memory_space<vmem>>, %arg6: memref<128x128xf32, #tpu.memory_space<vmem>>, %arg7: memref<1x128xf32, #tpu.memory_space<vmem>>, %arg8: memref<1x256x128xf32, #tpu.memory_space<vmem>>) attributes {dimension_semantics = [#tpu.dimension_semantics<parallel>, #tpu.dimension_semantics<parallel>], iteration_bounds = array<i64: 2, 1>, scalar_prefetch = 0 : i64, scratch_operands = 0 : i64, tpu.core_type = #tpu.core_type<tc>, window_params = [{transform_indices = @transform_0, window_bounds = array<i64: 1, 256, 128>}, {pipeline_mode = #tpu.pipeline_mode<synchronous>, transform_indices = @transform_1, window_bounds = array<i64: 128, 128>}, {pipeline_mode = #tpu.pipeline_mode<synchronous>, transform_indices = @transform_2, window_bounds = array<i64: 1, 128>}, {transform_indices = @transform_3, window_bounds = array<i64: 1, 16, 1, 16, 128>}, {pipeline_mode = #tpu.pipeline_mode<synchronous>, transform_indices = @transform_4, window_bounds = array<i64: 128, 128>}, {pipeline_mode = #tpu.pipeline_mode<synchronous>, transform_indices = @transform_5, window_bounds = array<i64: 1, 128>}, {transform_indices = @transform_6, window_bounds = array<i64: 1, 256, 128>}]} {
    %c0 = arith.constant 0 : index
    %c0_0 = arith.constant 0 : index
    %c0_1 = arith.constant 0 : index
    %0 = vector.load %arg2[%c0, %c0_0, %c0_1] : memref<1x256x128xf32, #tpu.memory_space<vmem>>, vector<1x256x128xf32>
    %1 = vector.shape_cast %0 : vector<1x256x128xf32> to vector<256x128xf32>
    %c0_2 = arith.constant 0 : index
    %c0_3 = arith.constant 0 : index
    %2 = vector.load %arg3[%c0_2, %c0_3] : memref<128x128xf32, #tpu.memory_space<vmem>>, vector<128x128xf32>
    %cst = arith.constant dense<0.000000e+00> : vector<256x128xf32>
    %3 = tpu.matmul %1, %2, %cst {dimension_numbers = #tpu.dot_dimension_numbers<[1], [0], [0], [1], [0, 0, 1, 1], [], []>} : vector<256x128xf32>, vector<128x128xf32>, vector<256x128xf32> -> vector<256x128xf32>
    %c0_4 = arith.constant 0 : index
    %c0_5 = arith.constant 0 : index
    %4 = vector.load %arg4[%c0_4, %c0_5] : memref<1x128xf32, #tpu.memory_space<vmem>>, vector<1x128xf32>
    %5 = vector.broadcast %4 : vector<1x128xf32> to vector<256x128xf32>
    %6 = arith.addf %3, %5 : vector<256x128xf32>
    %c0_6 = arith.constant 0 : index
    %c0_7 = arith.constant 0 : index
    %c0_8 = arith.constant 0 : index
    %c0_9 = arith.constant 0 : index
    %c0_10 = arith.constant 0 : index
    %7 = vector.load %arg5[%c0_6, %c0_7, %c0_8, %c0_9, %c0_10] : memref<1x16x1x16x128xf32, #tpu.memory_space<vmem>>, vector<1x16x1x16x128xf32>
    %8 = vector.shape_cast %7 : vector<1x16x1x16x128xf32> to vector<16x16x128xf32>
    %9 = vector.shape_cast %8 : vector<16x16x128xf32> to vector<256x128xf32>
    %c0_11 = arith.constant 0 : index
    %c0_12 = arith.constant 0 : index
    %10 = vector.load %arg6[%c0_11, %c0_12] : memref<128x128xf32, #tpu.memory_space<vmem>>, vector<128x128xf32>
    %cst_13 = arith.constant dense<0.000000e+00> : vector<256x128xf32>
    %11 = tpu.matmul %9, %10, %cst_13 {dimension_numbers = #tpu.dot_dimension_numbers<[1], [0], [0], [1], [0, 0, 1, 1], [], []>} : vector<256x128xf32>, vector<128x128xf32>, vector<256x128xf32> -> vector<256x128xf32>
    %c0_14 = arith.constant 0 : index
    %c0_15 = arith.constant 0 : index
    %12 = vector.load %arg7[%c0_14, %c0_15] : memref<1x128xf32, #tpu.memory_space<vmem>>, vector<1x128xf32>
    %13 = vector.broadcast %12 : vector<1x128xf32> to vector<256x128xf32>
    %14 = arith.addf %11, %13 : vector<256x128xf32>
    %15 = arith.addf %6, %14 : vector<256x128xf32>
    %cst_16 = arith.constant 4.471500e-02 : f32
    %16 = vector.broadcast %cst_16 : f32 to vector<256x128xf32>
    %17 = arith.mulf %16, %15 : vector<256x128xf32>
    %18 = arith.mulf %17, %15 : vector<256x128xf32>
    %cst_17 = arith.constant 1.000000e+00 : f32
    %19 = vector.broadcast %cst_17 : f32 to vector<256x128xf32>
    %20 = arith.addf %19, %18 : vector<256x128xf32>
    %21 = arith.mulf %15, %20 : vector<256x128xf32>
    %cst_18 = arith.constant 0.797884583 : f32
    %22 = vector.broadcast %cst_18 : f32 to vector<256x128xf32>
    %23 = arith.mulf %22, %21 : vector<256x128xf32>
    %cst_19 = arith.constant 5.000000e-01 : f32
    %24 = vector.broadcast %cst_19 : f32 to vector<256x128xf32>
    %25 = arith.mulf %24, %15 : vector<256x128xf32>
    %26 = math.tanh %23 : vector<256x128xf32>
    %cst_20 = arith.constant 1.000000e+00 : f32
    %27 = vector.broadcast %cst_20 : f32 to vector<256x128xf32>
    %28 = arith.addf %27, %26 : vector<256x128xf32>
    %29 = arith.mulf %25, %28 : vector<256x128xf32>
    %c0_21 = arith.constant 0 : index
    %c0_22 = arith.constant 0 : index
    %c0_23 = arith.constant 0 : index
    %30 = vector.load %arg8[%c0_21, %c0_22, %c0_23] : memref<1x256x128xf32, #tpu.memory_space<vmem>>, vector<1x256x128xf32>
    %31 = vector.shape_cast %30 : vector<1x256x128xf32> to vector<256x128xf32>
    %32 = vector.shape_cast %29 : vector<256x128xf32> to vector<1x256x128xf32>
    tpu.vector_store %arg8[%c0_21, %c0_22, %c0_23], %32 {strides = array<i32>} : memref<1x256x128xf32, #tpu.memory_space<vmem>>, vector<1x256x128xf32>,
    return
  }
  func.func @transform_0(%arg0: i32, %arg1: i32) -> (i32, i32, i32) {
    %c0_i32 = arith.constant 0 : i32
    %c0_i32_0 = arith.constant 0 : i32
    return %arg0, %arg1, %c0_i32 : i32, i32, i32
  }
  func.func @transform_1(%arg0: i32, %arg1: i32) -> (i32, i32) {
    %c0_i32 = arith.constant 0 : i32
    %c0_i32_0 = arith.constant 0 : i32
    %c0_i32_1 = arith.constant 0 : i32
    return %c0_i32, %c0_i32_0 : i32, i32
  }
  func.func @transform_2(%arg0: i32, %arg1: i32) -> (i32, i32) {
    %c0_i32 = arith.constant 0 : i32
    %c0_i32_0 = arith.constant 0 : i32
    %c0_i32_1 = arith.constant 0 : i32
    return %c0_i32, %c0_i32_0 : i32, i32
  }
  func.func @transform_3(%arg0: i32, %arg1: i32) -> (i32, i32, i32, i32, i32) {
    %c0_i32 = arith.constant 0 : i32
    %c0_i32_0 = arith.constant 0 : i32
    %c0_i32_1 = arith.constant 0 : i32
    %c0_i32_2 = arith.constant 0 : i32
    return %arg0, %arg1, %c0_i32, %c0_i32_0, %c0_i32_1 : i32, i32, i32, i32, i32
  }
  func.func @transform_4(%arg0: i32, %arg1: i32) -> (i32, i32) {
    %c0_i32 = arith.constant 0 : i32
    %c0_i32_0 = arith.constant 0 : i32
    %c0_i32_1 = arith.constant 0 : i32
    return %c0_i32, %c0_i32_0 : i32, i32
  }
  func.func @transform_5(%arg0: i32, %arg1: i32) -> (i32, i32) {
    %c0_i32 = arith.constant 0 : i32
    %c0_i32_0 = arith.constant 0 : i32
    %c0_i32_1 = arith.constant 0 : i32
    return %c0_i32, %c0_i32_0 : i32, i32
  }
  func.func @transform_6(%arg0: i32, %arg1: i32) -> (i32, i32, i32) {
    %c0_i32 = arith.constant 0 : i32
    %c0_i32_0 = arith.constant 0 : i32
    return %arg0, %arg1, %c0_i32 : i32, i32, i32
  }
}

module attributes {stable_mosaic.version = 11 : i64} {
  func.func @_conv3x3_gelu_kernel(%arg0: i32, %arg1: i32, %arg2: memref<1x18x1x18x128xf32, #tpu.memory_space<vmem>>, %arg3: memref<9x128x128xf32, #tpu.memory_space<vmem>>, %arg4: memref<1x128xf32, #tpu.memory_space<vmem>>, %arg5: memref<1x256x128xf32, #tpu.memory_space<vmem>>) attributes {dimension_semantics = [#tpu.dimension_semantics<parallel>, #tpu.dimension_semantics<parallel>], iteration_bounds = array<i64: 2, 1>, scalar_prefetch = 0 : i64, scratch_operands = 0 : i64, tpu.core_type = #tpu.core_type<tc>, window_params = [{transform_indices = @transform_0, window_bounds = array<i64: 1, 18, 1, 18, 128>}, {pipeline_mode = #tpu.pipeline_mode<synchronous>, transform_indices = @transform_1, window_bounds = array<i64: 9, 128, 128>}, {pipeline_mode = #tpu.pipeline_mode<synchronous>, transform_indices = @transform_2, window_bounds = array<i64: 1, 128>}, {transform_indices = @transform_3, window_bounds = array<i64: 1, 256, 128>}]} {
    %c16_i32 = arith.constant 16 : i32
    %0 = arith.muli %arg1, %c16_i32 : i32
    %cst = arith.constant 0.000000e+00 : f32
    %1 = vector.broadcast %cst : f32 to vector<256x128xf32>
    %c0_i32 = arith.constant 0 : i32
    %2 = arith.addi %0, %c0_i32 : i32
    %c0 = arith.constant 0 : index
    %3 = arith.index_cast %2 : i32 to index
    %c0_0 = arith.constant 0 : index
    %c0_1 = arith.constant 0 : index
    %c0_2 = arith.constant 0 : index
    %4 = vector.load %arg2[%c0, %3, %c0_0, %c0_1, %c0_2] : memref<1x18x1x18x128xf32, #tpu.memory_space<vmem>>, vector<1x16x1x16x128xf32>
    %5 = vector.shape_cast %4 : vector<1x16x1x16x128xf32> to vector<16x16x128xf32>
    %6 = vector.shape_cast %5 : vector<16x16x128xf32> to vector<256x128xf32>
    %c0_3 = arith.constant 0 : index
    %c0_4 = arith.constant 0 : index
    %c0_5 = arith.constant 0 : index
    %7 = vector.load %arg3[%c0_3, %c0_4, %c0_5] : memref<9x128x128xf32, #tpu.memory_space<vmem>>, vector<1x128x128xf32>
    %8 = vector.shape_cast %7 : vector<1x128x128xf32> to vector<128x128xf32>
    %cst_6 = arith.constant dense<0.000000e+00> : vector<256x128xf32>
    %9 = tpu.matmul %6, %8, %cst_6 {dimension_numbers = #tpu.dot_dimension_numbers<[1], [0], [0], [1], [0, 0, 1, 1], [], []>} : vector<256x128xf32>, vector<128x128xf32>, vector<256x128xf32> -> vector<256x128xf32>
    %10 = arith.addf %1, %9 : vector<256x128xf32>
    %c0_i32_7 = arith.constant 0 : i32
    %11 = arith.addi %0, %c0_i32_7 : i32
    %c0_8 = arith.constant 0 : index
    %12 = arith.index_cast %11 : i32 to index
    %c0_9 = arith.constant 0 : index
    %c1 = arith.constant 1 : index
    %c0_10 = arith.constant 0 : index
    %13 = vector.load %arg2[%c0_8, %12, %c0_9, %c1, %c0_10] : memref<1x18x1x18x128xf32, #tpu.memory_space<vmem>>, vector<1x16x1x16x128xf32>
    %14 = vector.shape_cast %13 : vector<1x16x1x16x128xf32> to vector<16x16x128xf32>
    %15 = vector.shape_cast %14 : vector<16x16x128xf32> to vector<256x128xf32>
    %c1_11 = arith.constant 1 : index
    %c0_12 = arith.constant 0 : index
    %c0_13 = arith.constant 0 : index
    %16 = vector.load %arg3[%c1_11, %c0_12, %c0_13] : memref<9x128x128xf32, #tpu.memory_space<vmem>>, vector<1x128x128xf32>
    %17 = vector.shape_cast %16 : vector<1x128x128xf32> to vector<128x128xf32>
    %cst_14 = arith.constant dense<0.000000e+00> : vector<256x128xf32>
    %18 = tpu.matmul %15, %17, %cst_14 {dimension_numbers = #tpu.dot_dimension_numbers<[1], [0], [0], [1], [0, 0, 1, 1], [], []>} : vector<256x128xf32>, vector<128x128xf32>, vector<256x128xf32> -> vector<256x128xf32>
    %19 = arith.addf %10, %18 : vector<256x128xf32>
    %c0_i32_15 = arith.constant 0 : i32
    %20 = arith.addi %0, %c0_i32_15 : i32
    %c0_16 = arith.constant 0 : index
    %21 = arith.index_cast %20 : i32 to index
    %c0_17 = arith.constant 0 : index
    %c2 = arith.constant 2 : index
    %c0_18 = arith.constant 0 : index
    %22 = vector.load %arg2[%c0_16, %21, %c0_17, %c2, %c0_18] : memref<1x18x1x18x128xf32, #tpu.memory_space<vmem>>, vector<1x16x1x16x128xf32>
    %23 = vector.shape_cast %22 : vector<1x16x1x16x128xf32> to vector<16x16x128xf32>
    %24 = vector.shape_cast %23 : vector<16x16x128xf32> to vector<256x128xf32>
    %c2_19 = arith.constant 2 : index
    %c0_20 = arith.constant 0 : index
    %c0_21 = arith.constant 0 : index
    %25 = vector.load %arg3[%c2_19, %c0_20, %c0_21] : memref<9x128x128xf32, #tpu.memory_space<vmem>>, vector<1x128x128xf32>
    %26 = vector.shape_cast %25 : vector<1x128x128xf32> to vector<128x128xf32>
    %cst_22 = arith.constant dense<0.000000e+00> : vector<256x128xf32>
    %27 = tpu.matmul %24, %26, %cst_22 {dimension_numbers = #tpu.dot_dimension_numbers<[1], [0], [0], [1], [0, 0, 1, 1], [], []>} : vector<256x128xf32>, vector<128x128xf32>, vector<256x128xf32> -> vector<256x128xf32>
    %28 = arith.addf %19, %27 : vector<256x128xf32>
    %c1_i32 = arith.constant 1 : i32
    %29 = arith.addi %0, %c1_i32 : i32
    %c0_23 = arith.constant 0 : index
    %30 = arith.index_cast %29 : i32 to index
    %c0_24 = arith.constant 0 : index
    %c0_25 = arith.constant 0 : index
    %c0_26 = arith.constant 0 : index
    %31 = vector.load %arg2[%c0_23, %30, %c0_24, %c0_25, %c0_26] : memref<1x18x1x18x128xf32, #tpu.memory_space<vmem>>, vector<1x16x1x16x128xf32>
    %32 = vector.shape_cast %31 : vector<1x16x1x16x128xf32> to vector<16x16x128xf32>
    %33 = vector.shape_cast %32 : vector<16x16x128xf32> to vector<256x128xf32>
    %c3 = arith.constant 3 : index
    %c0_27 = arith.constant 0 : index
    %c0_28 = arith.constant 0 : index
    %34 = vector.load %arg3[%c3, %c0_27, %c0_28] : memref<9x128x128xf32, #tpu.memory_space<vmem>>, vector<1x128x128xf32>
    %35 = vector.shape_cast %34 : vector<1x128x128xf32> to vector<128x128xf32>
    %cst_29 = arith.constant dense<0.000000e+00> : vector<256x128xf32>
    %36 = tpu.matmul %33, %35, %cst_29 {dimension_numbers = #tpu.dot_dimension_numbers<[1], [0], [0], [1], [0, 0, 1, 1], [], []>} : vector<256x128xf32>, vector<128x128xf32>, vector<256x128xf32> -> vector<256x128xf32>
    %37 = arith.addf %28, %36 : vector<256x128xf32>
    %c1_i32_30 = arith.constant 1 : i32
    %38 = arith.addi %0, %c1_i32_30 : i32
    %c0_31 = arith.constant 0 : index
    %39 = arith.index_cast %38 : i32 to index
    %c0_32 = arith.constant 0 : index
    %c1_33 = arith.constant 1 : index
    %c0_34 = arith.constant 0 : index
    %40 = vector.load %arg2[%c0_31, %39, %c0_32, %c1_33, %c0_34] : memref<1x18x1x18x128xf32, #tpu.memory_space<vmem>>, vector<1x16x1x16x128xf32>
    %41 = vector.shape_cast %40 : vector<1x16x1x16x128xf32> to vector<16x16x128xf32>
    %42 = vector.shape_cast %41 : vector<16x16x128xf32> to vector<256x128xf32>
    %c4 = arith.constant 4 : index
    %c0_35 = arith.constant 0 : index
    %c0_36 = arith.constant 0 : index
    %43 = vector.load %arg3[%c4, %c0_35, %c0_36] : memref<9x128x128xf32, #tpu.memory_space<vmem>>, vector<1x128x128xf32>
    %44 = vector.shape_cast %43 : vector<1x128x128xf32> to vector<128x128xf32>
    %cst_37 = arith.constant dense<0.000000e+00> : vector<256x128xf32>
    %45 = tpu.matmul %42, %44, %cst_37 {dimension_numbers = #tpu.dot_dimension_numbers<[1], [0], [0], [1], [0, 0, 1, 1], [], []>} : vector<256x128xf32>, vector<128x128xf32>, vector<256x128xf32> -> vector<256x128xf32>
    %46 = arith.addf %37, %45 : vector<256x128xf32>
    %c1_i32_38 = arith.constant 1 : i32
    %47 = arith.addi %0, %c1_i32_38 : i32
    %c0_39 = arith.constant 0 : index
    %48 = arith.index_cast %47 : i32 to index
    %c0_40 = arith.constant 0 : index
    %c2_41 = arith.constant 2 : index
    %c0_42 = arith.constant 0 : index
    %49 = vector.load %arg2[%c0_39, %48, %c0_40, %c2_41, %c0_42] : memref<1x18x1x18x128xf32, #tpu.memory_space<vmem>>, vector<1x16x1x16x128xf32>
    %50 = vector.shape_cast %49 : vector<1x16x1x16x128xf32> to vector<16x16x128xf32>
    %51 = vector.shape_cast %50 : vector<16x16x128xf32> to vector<256x128xf32>
    %c5 = arith.constant 5 : index
    %c0_43 = arith.constant 0 : index
    %c0_44 = arith.constant 0 : index
    %52 = vector.load %arg3[%c5, %c0_43, %c0_44] : memref<9x128x128xf32, #tpu.memory_space<vmem>>, vector<1x128x128xf32>
    %53 = vector.shape_cast %52 : vector<1x128x128xf32> to vector<128x128xf32>
    %cst_45 = arith.constant dense<0.000000e+00> : vector<256x128xf32>
    %54 = tpu.matmul %51, %53, %cst_45 {dimension_numbers = #tpu.dot_dimension_numbers<[1], [0], [0], [1], [0, 0, 1, 1], [], []>} : vector<256x128xf32>, vector<128x128xf32>, vector<256x128xf32> -> vector<256x128xf32>
    %55 = arith.addf %46, %54 : vector<256x128xf32>
    %c2_i32 = arith.constant 2 : i32
    %56 = arith.addi %0, %c2_i32 : i32
    %c0_46 = arith.constant 0 : index
    %57 = arith.index_cast %56 : i32 to index
    %c0_47 = arith.constant 0 : index
    %c0_48 = arith.constant 0 : index
    %c0_49 = arith.constant 0 : index
    %58 = vector.load %arg2[%c0_46, %57, %c0_47, %c0_48, %c0_49] : memref<1x18x1x18x128xf32, #tpu.memory_space<vmem>>, vector<1x16x1x16x128xf32>
    %59 = vector.shape_cast %58 : vector<1x16x1x16x128xf32> to vector<16x16x128xf32>
    %60 = vector.shape_cast %59 : vector<16x16x128xf32> to vector<256x128xf32>
    %c6 = arith.constant 6 : index
    %c0_50 = arith.constant 0 : index
    %c0_51 = arith.constant 0 : index
    %61 = vector.load %arg3[%c6, %c0_50, %c0_51] : memref<9x128x128xf32, #tpu.memory_space<vmem>>, vector<1x128x128xf32>
    %62 = vector.shape_cast %61 : vector<1x128x128xf32> to vector<128x128xf32>
    %cst_52 = arith.constant dense<0.000000e+00> : vector<256x128xf32>
    %63 = tpu.matmul %60, %62, %cst_52 {dimension_numbers = #tpu.dot_dimension_numbers<[1], [0], [0], [1], [0, 0, 1, 1], [], []>} : vector<256x128xf32>, vector<128x128xf32>, vector<256x128xf32> -> vector<256x128xf32>
    %64 = arith.addf %55, %63 : vector<256x128xf32>
    %c2_i32_53 = arith.constant 2 : i32
    %65 = arith.addi %0, %c2_i32_53 : i32
    %c0_54 = arith.constant 0 : index
    %66 = arith.index_cast %65 : i32 to index
    %c0_55 = arith.constant 0 : index
    %c1_56 = arith.constant 1 : index
    %c0_57 = arith.constant 0 : index
    %67 = vector.load %arg2[%c0_54, %66, %c0_55, %c1_56, %c0_57] : memref<1x18x1x18x128xf32, #tpu.memory_space<vmem>>, vector<1x16x1x16x128xf32>
    %68 = vector.shape_cast %67 : vector<1x16x1x16x128xf32> to vector<16x16x128xf32>
    %69 = vector.shape_cast %68 : vector<16x16x128xf32> to vector<256x128xf32>
    %c7 = arith.constant 7 : index
    %c0_58 = arith.constant 0 : index
    %c0_59 = arith.constant 0 : index
    %70 = vector.load %arg3[%c7, %c0_58, %c0_59] : memref<9x128x128xf32, #tpu.memory_space<vmem>>, vector<1x128x128xf32>
    %71 = vector.shape_cast %70 : vector<1x128x128xf32> to vector<128x128xf32>
    %cst_60 = arith.constant dense<0.000000e+00> : vector<256x128xf32>
    %72 = tpu.matmul %69, %71, %cst_60 {dimension_numbers = #tpu.dot_dimension_numbers<[1], [0], [0], [1], [0, 0, 1, 1], [], []>} : vector<256x128xf32>, vector<128x128xf32>, vector<256x128xf32> -> vector<256x128xf32>
    %73 = arith.addf %64, %72 : vector<256x128xf32>
    %c2_i32_61 = arith.constant 2 : i32
    %74 = arith.addi %0, %c2_i32_61 : i32
    %c0_62 = arith.constant 0 : index
    %75 = arith.index_cast %74 : i32 to index
    %c0_63 = arith.constant 0 : index
    %c2_64 = arith.constant 2 : index
    %c0_65 = arith.constant 0 : index
    %76 = vector.load %arg2[%c0_62, %75, %c0_63, %c2_64, %c0_65] : memref<1x18x1x18x128xf32, #tpu.memory_space<vmem>>, vector<1x16x1x16x128xf32>
    %77 = vector.shape_cast %76 : vector<1x16x1x16x128xf32> to vector<16x16x128xf32>
    %78 = vector.shape_cast %77 : vector<16x16x128xf32> to vector<256x128xf32>
    %c8 = arith.constant 8 : index
    %c0_66 = arith.constant 0 : index
    %c0_67 = arith.constant 0 : index
    %79 = vector.load %arg3[%c8, %c0_66, %c0_67] : memref<9x128x128xf32, #tpu.memory_space<vmem>>, vector<1x128x128xf32>
    %80 = vector.shape_cast %79 : vector<1x128x128xf32> to vector<128x128xf32>
    %cst_68 = arith.constant dense<0.000000e+00> : vector<256x128xf32>
    %81 = tpu.matmul %78, %80, %cst_68 {dimension_numbers = #tpu.dot_dimension_numbers<[1], [0], [0], [1], [0, 0, 1, 1], [], []>} : vector<256x128xf32>, vector<128x128xf32>, vector<256x128xf32> -> vector<256x128xf32>
    %82 = arith.addf %73, %81 : vector<256x128xf32>
    %c0_69 = arith.constant 0 : index
    %c0_70 = arith.constant 0 : index
    %83 = vector.load %arg4[%c0_69, %c0_70] : memref<1x128xf32, #tpu.memory_space<vmem>>, vector<1x128xf32>
    %84 = vector.broadcast %83 : vector<1x128xf32> to vector<256x128xf32>
    %85 = arith.addf %82, %84 : vector<256x128xf32>
    %cst_71 = arith.constant 4.471500e-02 : f32
    %86 = vector.broadcast %cst_71 : f32 to vector<256x128xf32>
    %87 = arith.mulf %86, %85 : vector<256x128xf32>
    %88 = arith.mulf %87, %85 : vector<256x128xf32>
    %cst_72 = arith.constant 1.000000e+00 : f32
    %89 = vector.broadcast %cst_72 : f32 to vector<256x128xf32>
    %90 = arith.addf %89, %88 : vector<256x128xf32>
    %91 = arith.mulf %85, %90 : vector<256x128xf32>
    %cst_73 = arith.constant 0.797884583 : f32
    %92 = vector.broadcast %cst_73 : f32 to vector<256x128xf32>
    %93 = arith.mulf %92, %91 : vector<256x128xf32>
    %cst_74 = arith.constant 5.000000e-01 : f32
    %94 = vector.broadcast %cst_74 : f32 to vector<256x128xf32>
    %95 = arith.mulf %94, %85 : vector<256x128xf32>
    %96 = math.tanh %93 : vector<256x128xf32>
    %cst_75 = arith.constant 1.000000e+00 : f32
    %97 = vector.broadcast %cst_75 : f32 to vector<256x128xf32>
    %98 = arith.addf %97, %96 : vector<256x128xf32>
    %99 = arith.mulf %95, %98 : vector<256x128xf32>
    %c0_76 = arith.constant 0 : index
    %c0_77 = arith.constant 0 : index
    %c0_78 = arith.constant 0 : index
    %100 = vector.load %arg5[%c0_76, %c0_77, %c0_78] : memref<1x256x128xf32, #tpu.memory_space<vmem>>, vector<1x256x128xf32>
    %101 = vector.shape_cast %100 : vector<1x256x128xf32> to vector<256x128xf32>
    %102 = vector.shape_cast %99 : vector<256x128xf32> to vector<1x256x128xf32>
    tpu.vector_store %arg5[%c0_76, %c0_77, %c0_78], %102 {strides = array<i32>} : memref<1x256x128xf32, #tpu.memory_space<vmem>>, vector<1x256x128xf32>,
    return
  }
  func.func @transform_0(%arg0: i32, %arg1: i32) -> (i32, i32, i32, i32, i32) {
    %c0_i32 = arith.constant 0 : i32
    %c0_i32_0 = arith.constant 0 : i32
    %c0_i32_1 = arith.constant 0 : i32
    %c0_i32_2 = arith.constant 0 : i32
    %c0_i32_3 = arith.constant 0 : i32
    return %arg0, %c0_i32, %c0_i32_0, %c0_i32_1, %c0_i32_2 : i32, i32, i32, i32, i32
  }
  func.func @transform_1(%arg0: i32, %arg1: i32) -> (i32, i32, i32) {
    %c0_i32 = arith.constant 0 : i32
    %c0_i32_0 = arith.constant 0 : i32
    %c0_i32_1 = arith.constant 0 : i32
    %c0_i32_2 = arith.constant 0 : i32
    return %c0_i32, %c0_i32_0, %c0_i32_1 : i32, i32, i32
  }
  func.func @transform_2(%arg0: i32, %arg1: i32) -> (i32, i32) {
    %c0_i32 = arith.constant 0 : i32
    %c0_i32_0 = arith.constant 0 : i32
    %c0_i32_1 = arith.constant 0 : i32
    return %c0_i32, %c0_i32_0 : i32, i32
  }
  func.func @transform_3(%arg0: i32, %arg1: i32) -> (i32, i32, i32) {
    %c0_i32 = arith.constant 0 : i32
    %c0_i32_0 = arith.constant 0 : i32
    return %arg0, %arg1, %c0_i32 : i32, i32, i32
  }
}

</mosaic_0001>

<llo_original>
// kernel: bottleneck_forward.3
$region0: #{bottleneck_forward.3}
  #allocation0 [shape = 'u32[]', space=smem, size = 0x4, offset = 0x4, fixed_abs, tag = 'smem constant byte address 0x4 - core index']
  #allocation1 [shape = 'u32[72,128]{1,0:T(1,128)}', space=vmem, size = 0x9000, scoped, tag = 'internal scratch']
  %s0 = inlined_call_operand.vmem [shape: f32[512,128], index: 0, kind: input, shape index: {}]
  %s1 = inlined_call_operand.vmem [shape: f32[128,128], index: 1, kind: input, shape index: {}]
  %s2 = inlined_call_operand.vmem [shape: f32[1,128], index: 2, kind: input, shape index: {}]
  %s3 = inlined_call_operand.vmem [shape: f32[512,128], index: 3, kind: output, shape index: {}]
  %s4 = sld [smem:[#allocation0]]
  $region45: #{bottleneck_forward.3} parent=0
    _
  %s6 = ssub.s32 1, %s4
  %s7 = scalar_select 0, %s6, %s4
  loop: start=0, step=1, limit=4
  $region2: #{bottleneck_forward.3} parent=0 // loop_pre_header
    _
  $region3: #{bottleneck_forward.3} parent=0 // loop_header
    %s9 = sphi 0, %s13
    %p10 = scmp.ge.s32.totalorder %s9, 4
    %s19 = sphi 0, %s21
    %s22 = sphi 0, %s19
    %s23 = sphi 0, %s22
    %s39 = sphi 0, %s23
    %s43 = sphi 0, %s43
    %s45 = sphi 0, %s43
    %s46 = sphi 0, %s45
    %s60 = sphi 0, %s46
    %s64 = sphi 0, %s64
    %s66 = sphi 0, %s64
    %s67 = sphi 0, %s66
    %s81 = sphi 0, %s67
    %s87 = sphi 0, %s89
    %s90 = sphi 0, %s87
    %s91 = sphi 0, %s90
    %s107 = sphi 0, %s91
  $region4: #{bottleneck_forward.3} parent=0 // loop_header_branch
    %12 = sbr.rel (%p10) target = $region8
  $region5: #{bottleneck_forward.3} parent=0 // loop_body
    %s14 = ssub.s32 %s9, 1
    %s15 = ssub.s32 %s9, 2
    %s16 = sadd.s32 %s9, 1
    %s17 = ssub.s32 %s9, %s16
    %p18 = scmp.eq.s32.totalorder %s17, 0
    %s20 = sadd.s32 %s19, 1
    %s21 = scalar_select %p18, %s19, %s20
    %p24 = pneg %p18
    %p25 = scmp.eq.s32.totalorder %s9, 1
    %p26 = por %p24, %p25
    %p27 = scmp.ne.s32.totalorder %s19, %s22
    %p28 = scmp.eq.s32.totalorder %s9, 0
    %p29 = por %p27, %p28
    %p30 = scmp.ne.s32.totalorder %s19, %s22
    %p31 = scmp.eq.s32.totalorder %s14, 1
    %p32 = por %p30, %p31
    %p33 = scmp.ne.s32.totalorder %s22, %s23
    %p34 = scmp.eq.s32.totalorder %s14, 0
    %p35 = por %p33, %p34
    %p36 = scmp.ne.s32.totalorder %s22, %s23
    %p37 = scmp.eq.s32.totalorder %s15, 1
    %p38 = por %p36, %p37
    %p40 = scmp.ne.s32.totalorder %s23, %s39
    %p41 = scmp.eq.s32.totalorder %s15, 0
    %p42 = por %p40, %p41
    %s44 = sadd.s32 %s43, 1
    %p47 = scmp.eq.s32.totalorder %s9, 1
    %p48 = scmp.ne.s32.totalorder %s43, %s45
    %p49 = scmp.eq.s32.totalorder %s9, 0
    %p50 = por %p48, %p49
    %p51 = scmp.ne.s32.totalorder %s43, %s45
    %p52 = scmp.eq.s32.totalorder %s14, 1
    %p53 = por %p51, %p52
    %p54 = scmp.ne.s32.totalorder %s45, %s46
    %p55 = scmp.eq.s32.totalorder %s14, 0
    %p56 = por %p54, %p55
    %p57 = scmp.ne.s32.totalorder %s45, %s46
    %p58 = scmp.eq.s32.totalorder %s15, 1
    %p59 = por %p57, %p58
    %p61 = scmp.ne.s32.totalorder %s46, %s60
    %p62 = scmp.eq.s32.totalorder %s15, 0
    %p63 = por %p61, %p62
    %s65 = sadd.s32 %s64, 1
    %p68 = scmp.eq.s32.totalorder %s9, 1
    %p69 = scmp.ne.s32.totalorder %s64, %s66
    %p70 = scmp.eq.s32.totalorder %s9, 0
    %p71 = por %p69, %p70
    %p72 = scmp.ne.s32.totalorder %s64, %s66
    %p73 = scmp.eq.s32.totalorder %s14, 1
    %p74 = por %p72, %p73
    %p75 = scmp.ne.s32.totalorder %s66, %s67
    %p76 = scmp.eq.s32.totalorder %s14, 0
    %p77 = por %p75, %p76
    %p78 = scmp.ne.s32.totalorder %s66, %s67
    %p79 = scmp.eq.s32.totalorder %s15, 1
    %p80 = por %p78, %p79
    %p82 = scmp.ne.s32.totalorder %s67, %s81
    %p83 = scmp.eq.s32.totalorder %s15, 0
    %p84 = por %p82, %p83
    %s85 = ssub.s32 %s9, %s16
    %p86 = scmp.eq.s32.totalorder %s85, 0
    %s88 = sadd.s32 %s87, 1
    %s89 = scalar_select %p86, %s87, %s88
    %p92 = pneg %p86
    %p93 = scmp.eq.s32.totalorder %s9, 1
    %p94 = por %p92, %p93
    %p95 = scmp.ne.s32.totalorder %s87, %s90
    %p96 = scmp.eq.s32.totalorder %s9, 0
    %p97 = por %p95, %p96
    %p98 = scmp.ne.s32.totalorder %s87, %s90
    %p99 = scmp.eq.s32.totalorder %s14, 1
    %p100 = por %p98, %p99
    %p101 = scmp.ne.s32.totalorder %s90, %s91
    %p102 = scmp.eq.s32.totalorder %s14, 0
    %p103 = por %p101, %p102
    %p104 = scmp.ne.s32.totalorder %s90, %s91
    %p105 = scmp.eq.s32.totalorder %s15, 1
    %p106 = por %p104, %p105
    %p108 = scmp.ne.s32.totalorder %s91, %s107
    %p109 = scmp.eq.s32.totalorder %s15, 0
    %p110 = por %p108, %p109
    %p111 = scmp.le.s32.totalorder 1, %s9
    %p112 = scmp.lt.s32.totalorder %s9, 3
    %p113 = pnand %p111, %p112
    %p114 = pneg %p113
    // Predicated region
    $region9: #{bottleneck_forward.3} parent=5 // pred_check
      _
    $region10: #{bottleneck_forward.3} parent=5 // pred_check_branch
      %116 = sbr.rel (%p113) target = $region12
    $region11: #{bottleneck_forward.3} parent=5 // pred_region
      %s117 = ssub.s32 %s9, 1
      // Predicated region
      $region13: #{bottleneck_forward.3} parent=11 // pred_check
        %p118 = pneg %p56
      $region14: #{bottleneck_forward.3} parent=11 // pred_check_branch
        %120 = sbr.rel (%p118) target = $region16
      $region15: #{bottleneck_forward.3} parent=11 // pred_region
        _
      $region16: #{bottleneck_forward.3} parent=11 // pred_fallthru
        _
      // Predicated region
      $region17: #{bottleneck_forward.3} parent=11 // pred_check
        %p121 = pneg %p77
      $region18: #{bottleneck_forward.3} parent=11 // pred_check_branch
        %123 = sbr.rel (%p121) target = $region20
      $region19: #{bottleneck_forward.3} parent=11 // pred_region
        _
      $region20: #{bottleneck_forward.3} parent=11 // pred_fallthru
        _
    $region12: #{bottleneck_forward.3} parent=5 // pred_fallthru
      _
    %p124 = scmp.lt.s32.totalorder %s9, 2
    // Predicated region
    $region21: #{bottleneck_forward.3} parent=5 // pred_check
      %p125 = pneg %p124
    $region22: #{bottleneck_forward.3} parent=5 // pred_check_branch
      %127 = sbr.rel (%p125) target = $region24
    $region23: #{bottleneck_forward.3} parent=5 // pred_region
      // Predicated region
      $region25: #{bottleneck_forward.3} parent=23 // pred_check
        %p128 = pneg %p29
      $region26: #{bottleneck_forward.3} parent=23 // pred_check_branch
        %130 = sbr.rel (%p128) target = $region28
      $region27: #{bottleneck_forward.3} parent=23 // pred_region
        %s131 = smul.u32 32, %s9
        %p132 = scmp.lt.s32.totalorder %s131, 63
        %s133 = scalar_select %p132, %s131, 63
        %s134 = smul.addr %s133, 8
        %s135 = scalar_lea.vmem %s0, %s134
        %s136 = smul.u32 32, %s9
      $region28: #{bottleneck_forward.3} parent=23 // pred_fallthru
        _
    $region24: #{bottleneck_forward.3} parent=5 // pred_fallthru
      _
    %p137 = scmp.le.s32.totalorder 1, %s9
    %p138 = scmp.lt.s32.totalorder %s9, 3
    %p139 = pnand %p137, %p138
    %p140 = pneg %p139
    // Predicated region
    $region29: #{bottleneck_forward.3} parent=5 // pred_check
      _
    $region30: #{bottleneck_forward.3} parent=5 // pred_check_branch
      %142 = sbr.rel (%p139) target = $region32
    $region31: #{bottleneck_forward.3} parent=5 // pred_region
      %s143 = ssub.s32 %s9, 1
      %s144 = smul.u32 32, %s14
      %p145 = scmp.lt.s32.totalorder %s144, 63
      %s146 = scalar_select %p145, %s144, 63
      %s147 = smul.addr %s146, 8
      %s148 = scalar_lea.vmem %s0, %s147
      %p149 = pneg %p35
      %p150 = pneg %p32
      %p151 = pneg %p56
      %p152 = pneg %p53
      %p153 = pneg %p77
      %p154 = pneg %p74
      %p155 = pneg %p103
      %p156 = pneg %p100
      %s157 = smul.u32 32, %s14
      %p158 = scmp.lt.s32.totalorder %s157, 63
      %s159 = scalar_select %p158, %s157, 63
      %s160 = smul.addr %s159, 8
      %s161 = scalar_lea.vmem %s3, %s160
      %s162 = smul.u32 32, %s14
      %p163 = scmp.lt.s32.totalorder %s162, 63
      %s164 = scalar_select %p163, %s162, 63
      %s165 = smul.addr %s164, 8
      %s166 = scalar_lea.vmem %s0, %s165
      %s167 = smul.u32 32, %s14
      %s168 = smul.u32 32, %s14
      %p169 = scmp.lt.s32.totalorder %s168, 63
      %s170 = scalar_select %p169, %s168, 63
      %s171 = smul.addr %s170, 8
      %s172 = scalar_lea.vmem %s3, %s171
      %s173 = smul.u32 32, %s14
      %v174 = vld [vmem:[%s166] sm:$0xff]
      %v175 = vld [vmem:[%s166 + $0x8] sm:$0xff]
      %v176 = vld [vmem:[%s166 + $0x10] sm:$0xff]
      %v177 = vld [vmem:[%s166 + $0x18] sm:$0xff]
      %v178 = vld [vmem:[%s166 + $0x20] sm:$0xff]
      %v179 = vld [vmem:[%s166 + $0x28] sm:$0xff]
      %v180 = vld [vmem:[%s166 + $0x30] sm:$0xff]
      %v181 = vld [vmem:[%s166 + $0x38] sm:$0xff]
      %v182 = vld [vmem:[%s166 + $0x40] sm:$0xff]
      %v183 = vld [vmem:[%s166 + $0x48] sm:$0xff]
      %v184 = vld [vmem:[%s166 + $0x50] sm:$0xff]
      %v185 = vld [vmem:[%s166 + $0x58] sm:$0xff]
      %v186 = vld [vmem:[%s166 + $0x60] sm:$0xff]
      %v187 = vld [vmem:[%s166 + $0x68] sm:$0xff]
      %v188 = vld [vmem:[%s166 + $0x70] sm:$0xff]
      %v189 = vld [vmem:[%s166 + $0x78] sm:$0xff]
      %v190 = vld [vmem:[%s166 + $0x80] sm:$0xff]
      %v191 = vld [vmem:[%s166 + $0x88] sm:$0xff]
      %v192 = vld [vmem:[%s166 + $0x90] sm:$0xff]
      %v193 = vld [vmem:[%s166 + $0x98] sm:$0xff]
      %v194 = vld [vmem:[%s166 + $0xa0] sm:$0xff]
      %v195 = vld [vmem:[%s166 + $0xa8] sm:$0xff]
      %v196 = vld [vmem:[%s166 + $0xb0] sm:$0xff]
      %v197 = vld [vmem:[%s166 + $0xb8] sm:$0xff]
      %v198 = vld [vmem:[%s166 + $0xc0] sm:$0xff]
      %v199 = vld [vmem:[%s166 + $0xc8] sm:$0xff]
      %v200 = vld [vmem:[%s166 + $0xd0] sm:$0xff]
      %v201 = vld [vmem:[%s166 + $0xd8] sm:$0xff]
      %v202 = vld [vmem:[%s166 + $0xe0] sm:$0xff]
      %v203 = vld [vmem:[%s166 + $0xe8] sm:$0xff]
      %v204 = vld [vmem:[%s166 + $0xf0] sm:$0xff]
      %v205 = vld [vmem:[%s166 + $0xf8] sm:$0xff]
      %v206 = vld [vmem:[%s1] sm:$0xff]
      %v207 = vld [vmem:[%s1 + $0x8] sm:$0xff]
      %v208 = vld [vmem:[%s1 + $0x10] sm:$0xff]
      %v209 = vld [vmem:[%s1 + $0x18] sm:$0xff]
      %v210 = vld [vmem:[%s1 + $0x20] sm:$0xff]
      %v211 = vld [vmem:[%s1 + $0x28] sm:$0xff]
      %v212 = vld [vmem:[%s1 + $0x30] sm:$0xff]
      %v213 = vld [vmem:[%s1 + $0x38] sm:$0xff]
      %v214 = vld [vmem:[%s1 + $0x40] sm:$0xff]
      %v215 = vld [vmem:[%s1 + $0x48] sm:$0xff]
      %v216 = vld [vmem:[%s1 + $0x50] sm:$0xff]
      %v217 = vld [vmem:[%s1 + $0x58] sm:$0xff]
      %v218 = vld [vmem:[%s1 + $0x60] sm:$0xff]
      %v219 = vld [vmem:[%s1 + $0x68] sm:$0xff]
      %v220 = vld [vmem:[%s1 + $0x70] sm:$0xff]
      %v221 = vld [vmem:[%s1 + $0x78] sm:$0xff]
      %v222 = vld [vmem:[%s2] sm:$0x1]
      %v224 = vperm.slane %v222, 0
      %226 = vmatpush.msra.mxu0 %v221
      %227 = vmatpush.msra.mxu0 %v220
      %228 = vmatpush.msra.mxu0 %v219
      %229 = vmatpush.msra.mxu0 %v218
      %230 = vmatpush.msra.mxu0 %v217
      %231 = vmatpush.msra.mxu0 %v216
      %232 = vmatpush.msra.mxu0 %v215
      %233 = vmatpush.msra.mxu0 %v214
      %234 = vmatpush.msra.mxu0 %v213
      %235 = vmatpush.msra.mxu0 %v212
      %236 = vmatpush.msra.mxu0 %v211
      %237 = vmatpush.msra.mxu0 %v210
      %238 = vmatpush.msra.mxu0 %v209
      %239 = vmatpush.msra.mxu0 %v208
      %240 = vmatpush.msra.mxu0 %v207
      %241 = vmatpush.msra.mxu0 %v206
      %242 = vmatmul.f32.gmra.mxu0 %v174
      %v243 = vpop.f32.mrf.mxu0
      %v244 = vadd.f32 %v224, %v243
      %245 = vmatmul.f32.gmra.mxu0 %v175
      %v246 = vpop.f32.mrf.mxu0
      %v247 = vadd.f32 %v224, %v246
      %248 = vmatmul.f32.gmra.mxu0 %v176
      %v249 = vpop.f32.mrf.mxu0
      %v250 = vadd.f32 %v224, %v249
      %251 = vmatmul.f32.gmra.mxu0 %v177
      %v252 = vpop.f32.mrf.mxu0
      %v253 = vadd.f32 %v224, %v252
      %254 = vmatmul.f32.gmra.mxu0 %v178
      %v255 = vpop.f32.mrf.mxu0
      %v256 = vadd.f32 %v224, %v255
      %257 = vmatmul.f32.gmra.mxu0 %v179
      %v258 = vpop.f32.mrf.mxu0
      %v259 = vadd.f32 %v224, %v258
      %260 = vmatmul.f32.gmra.mxu0 %v180
      %v261 = vpop.f32.mrf.mxu0
      %v262 = vadd.f32 %v224, %v261
      %263 = vmatmul.f32.gmra.mxu0 %v181
      %v264 = vpop.f32.mrf.mxu0
      %v265 = vadd.f32 %v224, %v264
      %266 = vmatmul.f32.gmra.mxu0 %v182
      %v267 = vpop.f32.mrf.mxu0
      %v268 = vadd.f32 %v224, %v267
      %269 = vmatmul.f32.gmra.mxu0 %v183
      %v270 = vpop.f32.mrf.mxu0
      %v271 = vadd.f32 %v224, %v270
      %272 = vmatmul.f32.gmra.mxu0 %v184
      %v273 = vpop.f32.mrf.mxu0
      %v274 = vadd.f32 %v224, %v273
      %275 = vmatmul.f32.gmra.mxu0 %v185
      %v276 = vpop.f32.mrf.mxu0
      %v277 = vadd.f32 %v224, %v276
      %278 = vmatmul.f32.gmra.mxu0 %v186
      %v279 = vpop.f32.mrf.mxu0
      %v280 = vadd.f32 %v224, %v279
      %281 = vmatmul.f32.gmra.mxu0 %v187
      %v282 = vpop.f32.mrf.mxu0
      %v283 = vadd.f32 %v224, %v282
      %284 = vmatmul.f32.gmra.mxu0 %v188
      %v285 = vpop.f32.mrf.mxu0
      %v286 = vadd.f32 %v224, %v285
      %287 = vmatmul.f32.gmra.mxu0 %v189
      %v288 = vpop.f32.mrf.mxu0
      %v289 = vadd.f32 %v224, %v288
      %290 = vmatmul.f32.gmra.mxu0 %v190
      %v291 = vpop.f32.mrf.mxu0
      %v292 = vadd.f32 %v224, %v291
      %293 = vmatmul.f32.gmra.mxu0 %v191
      %v294 = vpop.f32.mrf.mxu0
      %v295 = vadd.f32 %v224, %v294
      %296 = vmatmul.f32.gmra.mxu0 %v192
      %v297 = vpop.f32.mrf.mxu0
      %v298 = vadd.f32 %v224, %v297
      %299 = vmatmul.f32.gmra.mxu0 %v193
      %v300 = vpop.f32.mrf.mxu0
      %v301 = vadd.f32 %v224, %v300
      %302 = vmatmul.f32.gmra.mxu0 %v194
      %v303 = vpop.f32.mrf.mxu0
      %v304 = vadd.f32 %v224, %v303
      %305 = vmatmul.f32.gmra.mxu0 %v195
      %v306 = vpop.f32.mrf.mxu0
      %v307 = vadd.f32 %v224, %v306
      %308 = vmatmul.f32.gmra.mxu0 %v196
      %v309 = vpop.f32.mrf.mxu0
      %v310 = vadd.f32 %v224, %v309
      %311 = vmatmul.f32.gmra.mxu0 %v197
      %v312 = vpop.f32.mrf.mxu0
      %v313 = vadd.f32 %v224, %v312
      %314 = vmatmul.f32.gmra.mxu0 %v198
      %v315 = vpop.f32.mrf.mxu0
      %v316 = vadd.f32 %v224, %v315
      %317 = vmatmul.f32.gmra.mxu0 %v199
      %v318 = vpop.f32.mrf.mxu0
      %v319 = vadd.f32 %v224, %v318
      %320 = vmatmul.f32.gmra.mxu0 %v200
      %v321 = vpop.f32.mrf.mxu0
      %v322 = vadd.f32 %v224, %v321
      %323 = vmatmul.f32.gmra.mxu0 %v201
      %v324 = vpop.f32.mrf.mxu0
      %v325 = vadd.f32 %v224, %v324
      %326 = vmatmul.f32.gmra.mxu0 %v202
      %v327 = vpop.f32.mrf.mxu0
      %v328 = vadd.f32 %v224, %v327
      %329 = vmatmul.f32.gmra.mxu0 %v203
      %v330 = vpop.f32.mrf.mxu0
      %v331 = vadd.f32 %v224, %v330
      %332 = vmatmul.f32.gmra.mxu0 %v204
      %v333 = vpop.f32.mrf.mxu0
      %v334 = vadd.f32 %v224, %v333
      %335 = vmatmul.f32.gmra.mxu0 %v205
      %v336 = vpop.f32.mrf.mxu0
      %v337 = vadd.f32 %v224, %v336
      %338 = vdwg.mxu0
      %v339 = vmul.f32 %v244, 0.044715
      %v340 = vmul.f32 %v247, 0.044715
      %v341 = vmul.f32 %v250, 0.044715
      %v342 = vmul.f32 %v253, 0.044715
      %v343 = vmul.f32 %v256, 0.044715
      %v344 = vmul.f32 %v259, 0.044715
      %v345 = vmul.f32 %v262, 0.044715
      %v346 = vmul.f32 %v265, 0.044715
      %v347 = vmul.f32 %v268, 0.044715
      %v348 = vmul.f32 %v271, 0.044715
      %v349 = vmul.f32 %v274, 0.044715
      %v350 = vmul.f32 %v277, 0.044715
      %v351 = vmul.f32 %v280, 0.044715
      %v352 = vmul.f32 %v283, 0.044715
      %v353 = vmul.f32 %v286, 0.044715
      %v354 = vmul.f32 %v289, 0.044715
      %v355 = vmul.f32 %v292, 0.044715
      %v356 = vmul.f32 %v295, 0.044715
      %v357 = vmul.f32 %v298, 0.044715
      %v358 = vmul.f32 %v301, 0.044715
      %v359 = vmul.f32 %v304, 0.044715
      %v360 = vmul.f32 %v307, 0.044715
      %v361 = vmul.f32 %v310, 0.044715
      %v362 = vmul.f32 %v313, 0.044715
      %v363 = vmul.f32 %v316, 0.044715
      %v364 = vmul.f32 %v319, 0.044715
      %v365 = vmul.f32 %v322, 0.044715
      %v366 = vmul.f32 %v325, 0.044715
      %v367 = vmul.f32 %v328, 0.044715
      %v368 = vmul.f32 %v331, 0.044715
      %v369 = vmul.f32 %v334, 0.044715
      %v370 = vmul.f32 %v337, 0.044715
      %v371 = vmul.f32 %v339, %v244
      %v372 = vmul.f32 %v340, %v247
      %v373 = vmul.f32 %v341, %v250
      %v374 = vmul.f32 %v342, %v253
      %v375 = vmul.f32 %v343, %v256
      %v376 = vmul.f32 %v344, %v259
      %v377 = vmul.f32 %v345, %v262
      %v378 = vmul.f32 %v346, %v265
      %v379 = vmul.f32 %v347, %v268
      %v380 = vmul.f32 %v348, %v271
      %v381 = vmul.f32 %v349, %v274
      %v382 = vmul.f32 %v350, %v277
      %v383 = vmul.f32 %v351, %v280
      %v384 = vmul.f32 %v352, %v283
      %v385 = vmul.f32 %v353, %v286
      %v386 = vmul.f32 %v354, %v289
      %v387 = vmul.f32 %v355, %v292
      %v388 = vmul.f32 %v356, %v295
      %v389 = vmul.f32 %v357, %v298
      %v390 = vmul.f32 %v358, %v301
      %v391 = vmul.f32 %v359, %v304
      %v392 = vmul.f32 %v360, %v307
      %v393 = vmul.f32 %v361, %v310
      %v394 = vmul.f32 %v362, %v313
      %v395 = vmul.f32 %v363, %v316
      %v396 = vmul.f32 %v364, %v319
      %v397 = vmul.f32 %v365, %v322
      %v398 = vmul.f32 %v366, %v325
      %v399 = vmul.f32 %v367, %v328
      %v400 = vmul.f32 %v368, %v331
      %v401 = vmul.f32 %v369, %v334
      %v402 = vmul.f32 %v370, %v337
      %v403 = vadd.f32 %v371, 1.0
      %v404 = vadd.f32 %v372, 1.0
      %v405 = vadd.f32 %v373, 1.0
      %v406 = vadd.f32 %v374, 1.0
      %v407 = vadd.f32 %v375, 1.0
      %v408 = vadd.f32 %v376, 1.0
      %v409 = vadd.f32 %v377, 1.0
      %v410 = vadd.f32 %v378, 1.0
      %v411 = vadd.f32 %v379, 1.0
      %v412 = vadd.f32 %v380, 1.0
      %v413 = vadd.f32 %v381, 1.0
      %v414 = vadd.f32 %v382, 1.0
      %v415 = vadd.f32 %v383, 1.0
      %v416 = vadd.f32 %v384, 1.0
      %v417 = vadd.f32 %v385, 1.0
      %v418 = vadd.f32 %v386, 1.0
      %v419 = vadd.f32 %v387, 1.0
      %v420 = vadd.f32 %v388, 1.0
      %v421 = vadd.f32 %v389, 1.0
      %v422 = vadd.f32 %v390, 1.0
      %v423 = vadd.f32 %v391, 1.0
      %v424 = vadd.f32 %v392, 1.0
      %v425 = vadd.f32 %v393, 1.0
      %v426 = vadd.f32 %v394, 1.0
      %v427 = vadd.f32 %v395, 1.0
      %v428 = vadd.f32 %v396, 1.0
      %v429 = vadd.f32 %v397, 1.0
      %v430 = vadd.f32 %v398, 1.0
      %v431 = vadd.f32 %v399, 1.0
      %v432 = vadd.f32 %v400, 1.0
      %v433 = vadd.f32 %v401, 1.0
      %v434 = vadd.f32 %v402, 1.0
      %v435 = vmul.f32 %v244, %v403
      %v436 = vmul.f32 %v247, %v404
      %v437 = vmul.f32 %v250, %v405
      %v438 = vmul.f32 %v253, %v406
      %v439 = vmul.f32 %v256, %v407
      %v440 = vmul.f32 %v259, %v408
      %v441 = vmul.f32 %v262, %v409
      %v442 = vmul.f32 %v265, %v410
      %v443 = vmul.f32 %v268, %v411
      %v444 = vmul.f32 %v271, %v412
      %v445 = vmul.f32 %v274, %v413
      %v446 = vmul.f32 %v277, %v414
      %v447 = vmul.f32 %v280, %v415
      %v448 = vmul.f32 %v283, %v416
      %v449 = vmul.f32 %v286, %v417
      %v450 = vmul.f32 %v289, %v418
      %v451 = vmul.f32 %v292, %v419
      %v452 = vmul.f32 %v295, %v420
      %v453 = vmul.f32 %v298, %v421
      %v454 = vmul.f32 %v301, %v422
      %v455 = vmul.f32 %v304, %v423
      %v456 = vmul.f32 %v307, %v424
      %v457 = vmul.f32 %v310, %v425
      %v458 = vmul.f32 %v313, %v426
      %v459 = vmul.f32 %v316, %v427
      %v460 = vmul.f32 %v319, %v428
      %v461 = vmul.f32 %v322, %v429
      %v462 = vmul.f32 %v325, %v430
      %v463 = vmul.f32 %v328, %v431
      %v464 = vmul.f32 %v331, %v432
      %v465 = vmul.f32 %v334, %v433
      %v466 = vmul.f32 %v337, %v434
      %v467 = vmul.f32 %v435, 0.7978846
      %v468 = vmul.f32 %v436, 0.7978846
      %v469 = vmul.f32 %v437, 0.7978846
      %v470 = vmul.f32 %v438, 0.7978846
      %v471 = vmul.f32 %v439, 0.7978846
      %v472 = vmul.f32 %v440, 0.7978846
      %v473 = vmul.f32 %v441, 0.7978846
      %v474 = vmul.f32 %v442, 0.7978846
      %v475 = vmul.f32 %v443, 0.7978846
      %v476 = vmul.f32 %v444, 0.7978846
      %v477 = vmul.f32 %v445, 0.7978846
      %v478 = vmul.f32 %v446, 0.7978846
      %v479 = vmul.f32 %v447, 0.7978846
      %v480 = vmul.f32 %v448, 0.7978846
      %v481 = vmul.f32 %v449, 0.7978846
      %v482 = vmul.f32 %v450, 0.7978846
      %v483 = vmul.f32 %v451, 0.7978846
      %v484 = vmul.f32 %v452, 0.7978846
      %v485 = vmul.f32 %v453, 0.7978846
      %v486 = vmul.f32 %v454, 0.7978846
      %v487 = vmul.f32 %v455, 0.7978846
      %v488 = vmul.f32 %v456, 0.7978846
      %v489 = vmul.f32 %v457, 0.7978846
      %v490 = vmul.f32 %v458, 0.7978846
      %v491 = vmul.f32 %v459, 0.7978846
      %v492 = vmul.f32 %v460, 0.7978846
      %v493 = vmul.f32 %v461, 0.7978846
      %v494 = vmul.f32 %v462, 0.7978846
      %v495 = vmul.f32 %v463, 0.7978846
      %v496 = vmul.f32 %v464, 0.7978846
      %v497 = vmul.f32 %v465, 0.7978846
      %v498 = vmul.f32 %v466, 0.7978846
      %v499 = vmul.f32 %v244, 0.5
      %v500 = vmul.f32 %v247, 0.5
      %v501 = vmul.f32 %v250, 0.5
      %v502 = vmul.f32 %v253, 0.5
      %v503 = vmul.f32 %v256, 0.5
      %v504 = vmul.f32 %v259, 0.5
      %v505 = vmul.f32 %v262, 0.5
      %v506 = vmul.f32 %v265, 0.5
      %v507 = vmul.f32 %v268, 0.5
      %v508 = vmul.f32 %v271, 0.5
      %v509 = vmul.f32 %v274, 0.5
      %v510 = vmul.f32 %v277, 0.5
      %v511 = vmul.f32 %v280, 0.5
      %v512 = vmul.f32 %v283, 0.5
      %v513 = vmul.f32 %v286, 0.5
      %v514 = vmul.f32 %v289, 0.5
      %v515 = vmul.f32 %v292, 0.5
      %v516 = vmul.f32 %v295, 0.5
      %v517 = vmul.f32 %v298, 0.5
      %v518 = vmul.f32 %v301, 0.5
      %v519 = vmul.f32 %v304, 0.5
      %v520 = vmul.f32 %v307, 0.5
      %v521 = vmul.f32 %v310, 0.5
      %v522 = vmul.f32 %v313, 0.5
      %v523 = vmul.f32 %v316, 0.5
      %v524 = vmul.f32 %v319, 0.5
      %v525 = vmul.f32 %v322, 0.5
      %v526 = vmul.f32 %v325, 0.5
      %v527 = vmul.f32 %v328, 0.5
      %v528 = vmul.f32 %v331, 0.5
      %v529 = vmul.f32 %v334, 0.5
      %v530 = vmul.f32 %v337, 0.5
      %v531 = vtanh.pop %v467
      %v532 = vtanh.pop %v468
      %v533 = vtanh.pop %v469
      %v534 = vtanh.pop %v470
      %v535 = vtanh.pop %v471
      %v536 = vtanh.pop %v472
      %v537 = vtanh.pop %v473
      %v538 = vtanh.pop %v474
      %v539 = vtanh.pop %v475
      %v540 = vtanh.pop %v476
      %v541 = vtanh.pop %v477
      %v542 = vtanh.pop %v478
      %v543 = vtanh.pop %v479
      %v544 = vtanh.pop %v480
      %v545 = vtanh.pop %v481
      %v546 = vtanh.pop %v482
      %v547 = vtanh.pop %v483
      %v548 = vtanh.pop %v484
      %v549 = vtanh.pop %v485
      %v550 = vtanh.pop %v486
      %v551 = vtanh.pop %v487
      %v552 = vtanh.pop %v488
      %v553 = vtanh.pop %v489
      %v554 = vtanh.pop %v490
      %v555 = vtanh.pop %v491
      %v556 = vtanh.pop %v492
      %v557 = vtanh.pop %v493
      %v558 = vtanh.pop %v494
      %v559 = vtanh.pop %v495
      %v560 = vtanh.pop %v496
      %v561 = vtanh.pop %v497
      %v562 = vtanh.pop %v498
      %v563 = vadd.f32 %v531, 1.0
      %v564 = vadd.f32 %v532, 1.0
      %v565 = vadd.f32 %v533, 1.0
      %v566 = vadd.f32 %v534, 1.0
      %v567 = vadd.f32 %v535, 1.0
      %v568 = vadd.f32 %v536, 1.0
      %v569 = vadd.f32 %v537, 1.0
      %v570 = vadd.f32 %v538, 1.0
      %v571 = vadd.f32 %v539, 1.0
      %v572 = vadd.f32 %v540, 1.0
      %v573 = vadd.f32 %v541, 1.0
      %v574 = vadd.f32 %v542, 1.0
      %v575 = vadd.f32 %v543, 1.0
      %v576 = vadd.f32 %v544, 1.0
      %v577 = vadd.f32 %v545, 1.0
      %v578 = vadd.f32 %v546, 1.0
      %v579 = vadd.f32 %v547, 1.0
      %v580 = vadd.f32 %v548, 1.0
      %v581 = vadd.f32 %v549, 1.0
      %v582 = vadd.f32 %v550, 1.0
      %v583 = vadd.f32 %v551, 1.0
      %v584 = vadd.f32 %v552, 1.0
      %v585 = vadd.f32 %v553, 1.0
      %v586 = vadd.f32 %v554, 1.0
      %v587 = vadd.f32 %v555, 1.0
      %v588 = vadd.f32 %v556, 1.0
      %v589 = vadd.f32 %v557, 1.0
      %v590 = vadd.f32 %v558, 1.0
      %v591 = vadd.f32 %v559, 1.0
      %v592 = vadd.f32 %v560, 1.0
      %v593 = vadd.f32 %v561, 1.0
      %v594 = vadd.f32 %v562, 1.0
      %v595 = vmul.f32 %v499, %v563
      %v596 = vmul.f32 %v500, %v564
      %v597 = vmul.f32 %v501, %v565
      %v598 = vmul.f32 %v502, %v566
      %v599 = vmul.f32 %v503, %v567
      %v600 = vmul.f32 %v504, %v568
      %v601 = vmul.f32 %v505, %v569
      %v602 = vmul.f32 %v506, %v570
      %v603 = vmul.f32 %v507, %v571
      %v604 = vmul.f32 %v508, %v572
      %v605 = vmul.f32 %v509, %v573
      %v606 = vmul.f32 %v510, %v574
      %v607 = vmul.f32 %v511, %v575
      %v608 = vmul.f32 %v512, %v576
      %v609 = vmul.f32 %v513, %v577
      %v610 = vmul.f32 %v514, %v578
      %v611 = vmul.f32 %v515, %v579
      %v612 = vmul.f32 %v516, %v580
      %v613 = vmul.f32 %v517, %v581
      %v614 = vmul.f32 %v518, %v582
      %v615 = vmul.f32 %v519, %v583
      %v616 = vmul.f32 %v520, %v584
      %v617 = vmul.f32 %v521, %v585
      %v618 = vmul.f32 %v522, %v586
      %v619 = vmul.f32 %v523, %v587
      %v620 = vmul.f32 %v524, %v588
      %v621 = vmul.f32 %v525, %v589
      %v622 = vmul.f32 %v526, %v590
      %v623 = vmul.f32 %v527, %v591
      %v624 = vmul.f32 %v528, %v592
      %v625 = vmul.f32 %v529, %v593
      %v626 = vmul.f32 %v530, %v594
      %627 = vst [vmem:[%s172] sm:$0xff] %v595
      %628 = vst [vmem:[%s172 + $0x8] sm:$0xff] %v596
      %629 = vst [vmem:[%s172 + $0x10] sm:$0xff] %v597
      %630 = vst [vmem:[%s172 + $0x18] sm:$0xff] %v598
      %631 = vst [vmem:[%s172 + $0x20] sm:$0xff] %v599
      %632 = vst [vmem:[%s172 + $0x28] sm:$0xff] %v600
      %633 = vst [vmem:[%s172 + $0x30] sm:$0xff] %v601
      %634 = vst [vmem:[%s172 + $0x38] sm:$0xff] %v602
      %635 = vst [vmem:[%s172 + $0x40] sm:$0xff] %v603
      %636 = vst [vmem:[%s172 + $0x48] sm:$0xff] %v604
      %637 = vst [vmem:[%s172 + $0x50] sm:$0xff] %v605
      %638 = vst [vmem:[%s172 + $0x58] sm:$0xff] %v606
      %639 = vst [vmem:[%s172 + $0x60] sm:$0xff] %v607
      %640 = vst [vmem:[%s172 + $0x68] sm:$0xff] %v608
      %641 = vst [vmem:[%s172 + $0x70] sm:$0xff] %v609
      %642 = vst [vmem:[%s172 + $0x78] sm:$0xff] %v610
      %643 = vst [vmem:[%s172 + $0x80] sm:$0xff] %v611
      %644 = vst [vmem:[%s172 + $0x88] sm:$0xff] %v612
      %645 = vst [vmem:[%s172 + $0x90] sm:$0xff] %v613
      %646 = vst [vmem:[%s172 + $0x98] sm:$0xff] %v614
      %647 = vst [vmem:[%s172 + $0xa0] sm:$0xff] %v615
      %648 = vst [vmem:[%s172 + $0xa8] sm:$0xff] %v616
      %649 = vst [vmem:[%s172 + $0xb0] sm:$0xff] %v617
      %650 = vst [vmem:[%s172 + $0xb8] sm:$0xff] %v618
      %651 = vst [vmem:[%s172 + $0xc0] sm:$0xff] %v619
      %652 = vst [vmem:[%s172 + $0xc8] sm:$0xff] %v620
      %653 = vst [vmem:[%s172 + $0xd0] sm:$0xff] %v621
      %654 = vst [vmem:[%s172 + $0xd8] sm:$0xff] %v622
      %655 = vst [vmem:[%s172 + $0xe0] sm:$0xff] %v623
      %656 = vst [vmem:[%s172 + $0xe8] sm:$0xff] %v624
      %657 = vst [vmem:[%s172 + $0xf0] sm:$0xff] %v625
      %658 = vst [vmem:[%s172 + $0xf8] sm:$0xff] %v626
      %s659 = smul.u32 32, %s14
      %p660 = scmp.lt.s32.totalorder %s659, 63
      %s661 = scalar_select %p660, %s659, 63
      %s662 = smul.addr %s661, 8
      %s663 = scalar_lea.vmem %s3, %s662
      // Predicated region
      $region33: #{bottleneck_forward.3} parent=31 // pred_check
        %p664 = pneg %p100
      $region34: #{bottleneck_forward.3} parent=31 // pred_check_branch
        %666 = sbr.rel (%p664) target = $region36
      $region35: #{bottleneck_forward.3} parent=31 // pred_region
        %s667 = smul.u32 32, %s14
      $region36: #{bottleneck_forward.3} parent=31 // pred_fallthru
        _
    $region32: #{bottleneck_forward.3} parent=5 // pred_fallthru
      _
    %p668 = scmp.le.s32.totalorder 2, %s9
    // Predicated region
    $region37: #{bottleneck_forward.3} parent=5 // pred_check
      %p669 = pneg %p668
    $region38: #{bottleneck_forward.3} parent=5 // pred_check_branch
      %671 = sbr.rel (%p669) target = $region40
    $region39: #{bottleneck_forward.3} parent=5 // pred_region
      %s672 = ssub.s32 %s9, 2
      // Predicated region
      $region41: #{bottleneck_forward.3} parent=39 // pred_check
        %p673 = pneg %p106
      $region42: #{bottleneck_forward.3} parent=39 // pred_check_branch
        %675 = sbr.rel (%p673) target = $region44
      $region43: #{bottleneck_forward.3} parent=39 // pred_region
        %s676 = smul.u32 32, %s15
        %p677 = scmp.lt.s32.totalorder %s676, 63
        %s678 = scalar_select %p677, %s676, 63
        %s679 = smul.addr %s678, 8
        %s680 = scalar_lea.vmem %s3, %s679
      $region44: #{bottleneck_forward.3} parent=39 // pred_fallthru
        _
    $region40: #{bottleneck_forward.3} parent=5 // pred_fallthru
      _
  $region6: #{bottleneck_forward.3} parent=0 // loop_footer
    %s13 = sadd.s32 1, %s9
  $region7: #{bottleneck_forward.3} parent=0 // loop_footer_branch
    %8 = sbr.rel target = $region3
  $region8: #{bottleneck_forward.3} parent=0 // loop_exit
    _

// kernel: bottleneck_forward.5
$region0: #{bottleneck_forward.5}
  #allocation0 [shape = 'u32[]', space=smem, size = 0x4, offset = 0x4, fixed_abs, tag = 'smem constant byte address 0x4 - core index']
  #allocation1 [shape = 'u32[72,128]{1,0:T(1,128)}', space=vmem, size = 0x9000, scoped, tag = 'internal scratch']
  %s0 = inlined_call_operand.vmem [shape: f32[2,256,128], index: 0, kind: input, shape index: {}]
  %s1 = inlined_call_operand.vmem [shape: f32[128,128], index: 1, kind: input, shape index: {}]
  %s2 = inlined_call_operand.vmem [shape: f32[1,128], index: 2, kind: input, shape index: {}]
  %s3 = inlined_call_operand.vmem [shape: f32[2,16,1,16,128], index: 3, kind: input, shape index: {}]
  %s4 = inlined_call_operand.vmem [shape: f32[128,128], index: 4, kind: input, shape index: {}]
  %s5 = inlined_call_operand.vmem [shape: f32[1,128], index: 5, kind: input, shape index: {}]
  %s6 = inlined_call_operand.hbm [shape: f32[2,256,128], index: 6, kind: output, shape index: {}]
  %s7 = sld [smem:[#allocation0]]
  $region57: #{bottleneck_forward.5} parent=0
    _
  %s9 = ssub.s32 1, %s7
  %s10 = scalar_select 0, %s9, %s7
  $region1: #{bottleneck_forward.5} parent=0
    #allocation2 [shape = 'u8[262144]{0}', space=vmem, size = 0x40000, scoped, tag = 'output window, operand 0']
    #allocation3 [shape = 's32[2]{0}', space=sflag, size = 0x8, scoped, tag = 'scoped memory for bottleneck_forward.5']
    %11 = vsyncpa [#allocation3], 0
    %s12 = scalar_lea.sflag [#allocation3], 1
    %13 = vsyncpa %s12, 0
    loop: start=0, step=1, limit=4
    $region2: #{bottleneck_forward.5} parent=1 // loop_pre_header
      _
    $region3: #{bottleneck_forward.5} parent=1 // loop_header
      %s15 = sphi 0, %s19
      %p16 = scmp.ge.s32.totalorder %s15, 4
      %s22 = sphi 0, %s34
      %s23 = sphi 0, %s30
      %s24 = sphi 0, %s22
      %s25 = sphi 0, %s23
      %s26 = sphi 0, %s24
      %s27 = sphi 0, %s25
      %s39 = sphi 0, %s41
      %s42 = sphi 0, %s39
      %s43 = sphi 0, %s42
      %s59 = sphi 0, %s43
      %s63 = sphi 0, %s63
      %s65 = sphi 0, %s63
      %s66 = sphi 0, %s65
      %s80 = sphi 0, %s66
      %s84 = sphi 0, %s84
      %s86 = sphi 0, %s84
      %s87 = sphi 0, %s86
      %s101 = sphi 0, %s87
      %s109 = sphi 0, %s111
      %s112 = sphi 0, %s109
      %s113 = sphi 0, %s112
      %s129 = sphi 0, %s113
      %s133 = sphi 0, %s133
      %s135 = sphi 0, %s133
      %s136 = sphi 0, %s135
      %s150 = sphi 0, %s136
      %s154 = sphi 0, %s154
      %s156 = sphi 0, %s154
      %s157 = sphi 0, %s156
      %s171 = sphi 0, %s157
      %s179 = sphi 0, %s181
      %s182 = sphi 0, %s179
      %s183 = sphi 0, %s182
      %s199 = sphi 0, %s183
    $region4: #{bottleneck_forward.5} parent=1 // loop_header_branch
      %18 = sbr.rel (%p16) target = $region8
    $region5: #{bottleneck_forward.5} parent=1 // loop_body
      %s20 = ssub.s32 %s15, 1
      %s21 = ssub.s32 %s15, 2
      %s28 = sadd.s32 1, %s23
      %p29 = scmp.ge.s32.totalorder %s28, 1
      %s30 = scalar_select %p29, 0, %s28
      %s31 = sadd.s32 1, %s22
      %s32 = scalar_select %p29, %s31, %s22
      %p33 = scmp.ge.s32.totalorder %s32, 2
      %s34 = scalar_select %p33, 0, %s32
      %s35 = ssub.s32 %s22, %s34
      %s36 = ssub.s32 %s23, %s30
      %s37 = sor.u32 %s35, %s36
      %p38 = scmp.eq.s32.totalorder %s37, 0
      %s40 = sadd.s32 %s39, 1
      %s41 = scalar_select %p38, %s39, %s40
      %p44 = pneg %p38
      %p45 = scmp.eq.s32.totalorder %s15, 1
      %p46 = por %p44, %p45
      %p47 = scmp.ne.s32.totalorder %s39, %s42
      %p48 = scmp.eq.s32.totalorder %s15, 0
      %p49 = por %p47, %p48
      %p50 = scmp.ne.s32.totalorder %s39, %s42
      %p51 = scmp.eq.s32.totalorder %s20, 1
      %p52 = por %p50, %p51
      %p53 = scmp.ne.s32.totalorder %s42, %s43
      %p54 = scmp.eq.s32.totalorder %s20, 0
      %p55 = por %p53, %p54
      %p56 = scmp.ne.s32.totalorder %s42, %s43
      %p57 = scmp.eq.s32.totalorder %s21, 1
      %p58 = por %p56, %p57
      %p60 = scmp.ne.s32.totalorder %s43, %s59
      %p61 = scmp.eq.s32.totalorder %s21, 0
      %p62 = por %p60, %p61
      %s64 = sadd.s32 %s63, 1
      %p67 = scmp.eq.s32.totalorder %s15, 1
      %p68 = scmp.ne.s32.totalorder %s63, %s65
      %p69 = scmp.eq.s32.totalorder %s15, 0
      %p70 = por %p68, %p69
      %p71 = scmp.ne.s32.totalorder %s63, %s65
      %p72 = scmp.eq.s32.totalorder %s20, 1
      %p73 = por %p71, %p72
      %p74 = scmp.ne.s32.totalorder %s65, %s66
      %p75 = scmp.eq.s32.totalorder %s20, 0
      %p76 = por %p74, %p75
      %p77 = scmp.ne.s32.totalorder %s65, %s66
      %p78 = scmp.eq.s32.totalorder %s21, 1
      %p79 = por %p77, %p78
      %p81 = scmp.ne.s32.totalorder %s66, %s80
      %p82 = scmp.eq.s32.totalorder %s21, 0
      %p83 = por %p81, %p82
      %s85 = sadd.s32 %s84, 1
      %p88 = scmp.eq.s32.totalorder %s15, 1
      %p89 = scmp.ne.s32.totalorder %s84, %s86
      %p90 = scmp.eq.s32.totalorder %s15, 0
      %p91 = por %p89, %p90
      %p92 = scmp.ne.s32.totalorder %s84, %s86
      %p93 = scmp.eq.s32.totalorder %s20, 1
      %p94 = por %p92, %p93
      %p95 = scmp.ne.s32.totalorder %s86, %s87
      %p96 = scmp.eq.s32.totalorder %s20, 0
      %p97 = por %p95, %p96
      %p98 = scmp.ne.s32.totalorder %s86, %s87
      %p99 = scmp.eq.s32.totalorder %s21, 1
      %p100 = por %p98, %p99
      %p102 = scmp.ne.s32.totalorder %s87, %s101
      %p103 = scmp.eq.s32.totalorder %s21, 0
      %p104 = por %p102, %p103
      %s105 = ssub.s32 %s22, %s34
      %s106 = ssub.s32 %s23, %s30
      %s107 = sor.u32 %s105, %s106
      %p108 = scmp.eq.s32.totalorder %s107, 0
      %s110 = sadd.s32 %s109, 1
      %s111 = scalar_select %p108, %s109, %s110
      %p114 = pneg %p108
      %p115 = scmp.eq.s32.totalorder %s15, 1
      %p116 = por %p114, %p115
      %p117 = scmp.ne.s32.totalorder %s109, %s112
      %p118 = scmp.eq.s32.totalorder %s15, 0
      %p119 = por %p117, %p118
      %p120 = scmp.ne.s32.totalorder %s109, %s112
      %p121 = scmp.eq.s32.totalorder %s20, 1
      %p122 = por %p120, %p121
      %p123 = scmp.ne.s32.totalorder %s112, %s113
      %p124 = scmp.eq.s32.totalorder %s20, 0
      %p125 = por %p123, %p124
      %p126 = scmp.ne.s32.totalorder %s112, %s113
      %p127 = scmp.eq.s32.totalorder %s21, 1
      %p128 = por %p126, %p127
      %p130 = scmp.ne.s32.totalorder %s113, %s129
      %p131 = scmp.eq.s32.totalorder %s21, 0
      %p132 = por %p130, %p131
      %s134 = sadd.s32 %s133, 1
      %p137 = scmp.eq.s32.totalorder %s15, 1
      %p138 = scmp.ne.s32.totalorder %s133, %s135
      %p139 = scmp.eq.s32.totalorder %s15, 0
      %p140 = por %p138, %p139
      %p141 = scmp.ne.s32.totalorder %s133, %s135
      %p142 = scmp.eq.s32.totalorder %s20, 1
      %p143 = por %p141, %p142
      %p144 = scmp.ne.s32.totalorder %s135, %s136
      %p145 = scmp.eq.s32.totalorder %s20, 0
      %p146 = por %p144, %p145
      %p147 = scmp.ne.s32.totalorder %s135, %s136
      %p148 = scmp.eq.s32.totalorder %s21, 1
      %p149 = por %p147, %p148
      %p151 = scmp.ne.s32.totalorder %s136, %s150
      %p152 = scmp.eq.s32.totalorder %s21, 0
      %p153 = por %p151, %p152
      %s155 = sadd.s32 %s154, 1
      %p158 = scmp.eq.s32.totalorder %s15, 1
      %p159 = scmp.ne.s32.totalorder %s154, %s156
      %p160 = scmp.eq.s32.totalorder %s15, 0
      %p161 = por %p159, %p160
      %p162 = scmp.ne.s32.totalorder %s154, %s156
      %p163 = scmp.eq.s32.totalorder %s20, 1
      %p164 = por %p162, %p163
      %p165 = scmp.ne.s32.totalorder %s156, %s157
      %p166 = scmp.eq.s32.totalorder %s20, 0
      %p167 = por %p165, %p166
      %p168 = scmp.ne.s32.totalorder %s156, %s157
      %p169 = scmp.eq.s32.totalorder %s21, 1
      %p170 = por %p168, %p169
      %p172 = scmp.ne.s32.totalorder %s157, %s171
      %p173 = scmp.eq.s32.totalorder %s21, 0
      %p174 = por %p172, %p173
      %s175 = ssub.s32 %s22, %s34
      %s176 = ssub.s32 %s23, %s30
      %s177 = sor.u32 %s175, %s176
      %p178 = scmp.eq.s32.totalorder %s177, 0
      %s180 = sadd.s32 %s179, 1
      %s181 = scalar_select %p178, %s179, %s180
      %p184 = pneg %p178
      %p185 = scmp.eq.s32.totalorder %s15, 1
      %p186 = por %p184, %p185
      %p187 = scmp.ne.s32.totalorder %s179, %s182
      %p188 = scmp.eq.s32.totalorder %s15, 0
      %p189 = por %p187, %p188
      %p190 = scmp.ne.s32.totalorder %s179, %s182
      %p191 = scmp.eq.s32.totalorder %s20, 1
      %p192 = por %p190, %p191
      %p193 = scmp.ne.s32.totalorder %s182, %s183
      %p194 = scmp.eq.s32.totalorder %s20, 0
      %p195 = por %p193, %p194
      %p196 = scmp.ne.s32.totalorder %s182, %s183
      %p197 = scmp.eq.s32.totalorder %s21, 1
      %p198 = por %p196, %p197
      %p200 = scmp.ne.s32.totalorder %s183, %s199
      %p201 = scmp.eq.s32.totalorder %s21, 0
      %p202 = por %p200, %p201
      %p203 = scmp.le.s32.totalorder 1, %s15
      %p204 = scmp.lt.s32.totalorder %s15, 3
      %p205 = pnand %p203, %p204
      %p206 = pneg %p205
      // Predicated region
      $region9: #{bottleneck_forward.5} parent=5 // pred_check
        _
      $region10: #{bottleneck_forward.5} parent=5 // pred_check_branch
        %208 = sbr.rel (%p205) target = $region12
      $region11: #{bottleneck_forward.5} parent=5 // pred_region
        %s209 = ssub.s32 %s15, 1
        // Predicated region
        $region13: #{bottleneck_forward.5} parent=11 // pred_check
          %p210 = pneg %p76
        $region14: #{bottleneck_forward.5} parent=11 // pred_check_branch
          %212 = sbr.rel (%p210) target = $region16
        $region15: #{bottleneck_forward.5} parent=11 // pred_region
          _
        $region16: #{bottleneck_forward.5} parent=11 // pred_fallthru
          _
        // Predicated region
        $region17: #{bottleneck_forward.5} parent=11 // pred_check
          %p213 = pneg %p97
        $region18: #{bottleneck_forward.5} parent=11 // pred_check_branch
          %215 = sbr.rel (%p213) target = $region20
        $region19: #{bottleneck_forward.5} parent=11 // pred_region
          _
        $region20: #{bottleneck_forward.5} parent=11 // pred_fallthru
          _
        // Predicated region
        $region21: #{bottleneck_forward.5} parent=11 // pred_check
          %p216 = pneg %p146
        $region22: #{bottleneck_forward.5} parent=11 // pred_check_branch
          %218 = sbr.rel (%p216) target = $region24
        $region23: #{bottleneck_forward.5} parent=11 // pred_region
          _
        $region24: #{bottleneck_forward.5} parent=11 // pred_fallthru
          _
        // Predicated region
        $region25: #{bottleneck_forward.5} parent=11 // pred_check
          %p219 = pneg %p167
        $region26: #{bottleneck_forward.5} parent=11 // pred_check_branch
          %221 = sbr.rel (%p219) target = $region28
        $region27: #{bottleneck_forward.5} parent=11 // pred_region
          _
        $region28: #{bottleneck_forward.5} parent=11 // pred_fallthru
          _
      $region12: #{bottleneck_forward.5} parent=5 // pred_fallthru
        _
      %p222 = scmp.lt.s32.totalorder %s15, 2
      // Predicated region
      $region29: #{bottleneck_forward.5} parent=5 // pred_check
        %p223 = pneg %p222
      $region30: #{bottleneck_forward.5} parent=5 // pred_check_branch
        %225 = sbr.rel (%p223) target = $region32
      $region31: #{bottleneck_forward.5} parent=5 // pred_region
        // Predicated region
        $region33: #{bottleneck_forward.5} parent=31 // pred_check
          %p226 = pneg %p49
        $region34: #{bottleneck_forward.5} parent=31 // pred_check_branch
          %228 = sbr.rel (%p226) target = $region36
        $region35: #{bottleneck_forward.5} parent=31 // pred_region
          %s229 = smul.u32 32, %s23
          %p230 = scmp.lt.s32.totalorder %s22, 1
          %s231 = scalar_select %p230, %s22, 1
          %p232 = scmp.lt.s32.totalorder %s229, 31
          %s233 = scalar_select %p232, %s229, 31
          %s234 = smul.addr %s231, 32
          %s235 = sadd.s32 %s233, %s234
          %s236 = smul.addr %s235, 8
          %s237 = scalar_lea.vmem %s0, %s236
          %s238 = smul.u32 32, %s23
        $region36: #{bottleneck_forward.5} parent=31 // pred_fallthru
          _
        // Predicated region
        $region37: #{bottleneck_forward.5} parent=31 // pred_check
          %p239 = pneg %p119
        $region38: #{bottleneck_forward.5} parent=31 // pred_check_branch
          %241 = sbr.rel (%p239) target = $region40
        $region39: #{bottleneck_forward.5} parent=31 // pred_region
          %s242 = smul.u32 16, %s23
          %p243 = scmp.lt.s32.totalorder %s22, 1
          %s244 = scalar_select %p243, %s22, 1
          %p245 = scmp.lt.s32.totalorder %s242, 15
          %s246 = scalar_select %p245, %s242, 15
          %s247 = smul.addr %s246, 2
          %s248 = smul.addr %s244, 32
          %s249 = sadd.s32 %s247, %s248
          %s250 = smul.addr %s249, 8
          %s251 = scalar_lea.vmem %s3, %s250
          %s252 = smul.u32 16, %s23
        $region40: #{bottleneck_forward.5} parent=31 // pred_fallthru
          _
      $region32: #{bottleneck_forward.5} parent=5 // pred_fallthru
        _
      %p253 = scmp.le.s32.totalorder 1, %s15
      %p254 = scmp.lt.s32.totalorder %s15, 3
      %p255 = pnand %p253, %p254
      %p256 = pneg %p255
      // Predicated region
      $region41: #{bottleneck_forward.5} parent=5 // pred_check
        _
      $region42: #{bottleneck_forward.5} parent=5 // pred_check_branch
        %258 = sbr.rel (%p255) target = $region44
      $region43: #{bottleneck_forward.5} parent=5 // pred_region
        %s259 = ssub.s32 %s15, 1
        %s260 = smul.u32 32, %s25
        %p261 = scmp.lt.s32.totalorder %s24, 1
        %s262 = scalar_select %p261, %s24, 1
        %p263 = scmp.lt.s32.totalorder %s260, 31
        %s264 = scalar_select %p263, %s260, 31
        %s265 = smul.addr %s262, 32
        %s266 = sadd.s32 %s264, %s265
        %s267 = smul.addr %s266, 8
        %s268 = scalar_lea.vmem %s0, %s267
        %p269 = pneg %p55
        %p270 = pneg %p52
        %p271 = pneg %p76
        %p272 = pneg %p73
        %p273 = pneg %p97
        %p274 = pneg %p94
        %s275 = smul.u32 16, %s25
        %p276 = scmp.lt.s32.totalorder %s24, 1
        %s277 = scalar_select %p276, %s24, 1
        %p278 = scmp.lt.s32.totalorder %s275, 15
        %s279 = scalar_select %p278, %s275, 15
        %s280 = smul.addr %s279, 2
        %s281 = smul.addr %s277, 32
        %s282 = sadd.s32 %s280, %s281
        %s283 = smul.addr %s282, 8
        %s284 = scalar_lea.vmem %s3, %s283
        %p285 = pneg %p125
        %p286 = pneg %p122
        %p287 = pneg %p146
        %p288 = pneg %p143
        %p289 = pneg %p167
        %p290 = pneg %p164
        %p291 = pneg %p195
        %p292 = pneg %p192
        %s293 = sand.u32 %s182, 1
        %s294 = scalar_lea.sflag [#allocation3], %s293
        %s295 = sand.u32 %s182, 1
        %s296 = smul.addr %s295, 256
        %s297 = scalar_lea.vmem [#allocation2], %s296
        %s298 = smul.u32 32, %s25
        %p299 = scmp.lt.s32.totalorder %s24, 1
        %s300 = scalar_select %p299, %s24, 1
        %p301 = scmp.lt.s32.totalorder %s298, 31
        %s302 = scalar_select %p301, %s298, 31
        %s303 = smul.addr %s300, 32
        %s304 = sadd.s32 %s302, %s303
        %s305 = smul.addr %s304, 8
        %s306 = scalar_lea.vmem %s0, %s305
        %s307 = smul.u32 32, %s25
        %s308 = smul.u32 16, %s25
        %p309 = scmp.lt.s32.totalorder %s24, 1
        %s310 = scalar_select %p309, %s24, 1
        %p311 = scmp.lt.s32.totalorder %s308, 15
        %s312 = scalar_select %p311, %s308, 15
        %s313 = smul.addr %s312, 2
        %s314 = smul.addr %s310, 32
        %s315 = sadd.s32 %s313, %s314
        %s316 = smul.addr %s315, 8
        %s317 = scalar_lea.vmem %s3, %s316
        %s318 = smul.u32 16, %s25
        %s319 = smul.u32 32, %s25
        %v320 = vld [vmem:[%s306] sm:$0xff]
        %v321 = vld [vmem:[%s306 + $0x8] sm:$0xff]
        %v322 = vld [vmem:[%s306 + $0x10] sm:$0xff]
        %v323 = vld [vmem:[%s306 + $0x18] sm:$0xff]
        %v324 = vld [vmem:[%s306 + $0x20] sm:$0xff]
        %v325 = vld [vmem:[%s306 + $0x28] sm:$0xff]
        %v326 = vld [vmem:[%s306 + $0x30] sm:$0xff]
        %v327 = vld [vmem:[%s306 + $0x38] sm:$0xff]
        %v328 = vld [vmem:[%s306 + $0x40] sm:$0xff]
        %v329 = vld [vmem:[%s306 + $0x48] sm:$0xff]
        %v330 = vld [vmem:[%s306 + $0x50] sm:$0xff]
        %v331 = vld [vmem:[%s306 + $0x58] sm:$0xff]
        %v332 = vld [vmem:[%s306 + $0x60] sm:$0xff]
        %v333 = vld [vmem:[%s306 + $0x68] sm:$0xff]
        %v334 = vld [vmem:[%s306 + $0x70] sm:$0xff]
        %v335 = vld [vmem:[%s306 + $0x78] sm:$0xff]
        %v336 = vld [vmem:[%s306 + $0x80] sm:$0xff]
        %v337 = vld [vmem:[%s306 + $0x88] sm:$0xff]
        %v338 = vld [vmem:[%s306 + $0x90] sm:$0xff]
        %v339 = vld [vmem:[%s306 + $0x98] sm:$0xff]
        %v340 = vld [vmem:[%s306 + $0xa0] sm:$0xff]
        %v341 = vld [vmem:[%s306 + $0xa8] sm:$0xff]
        %v342 = vld [vmem:[%s306 + $0xb0] sm:$0xff]
        %v343 = vld [vmem:[%s306 + $0xb8] sm:$0xff]
        %v344 = vld [vmem:[%s306 + $0xc0] sm:$0xff]
        %v345 = vld [vmem:[%s306 + $0xc8] sm:$0xff]
        %v346 = vld [vmem:[%s306 + $0xd0] sm:$0xff]
        %v347 = vld [vmem:[%s306 + $0xd8] sm:$0xff]
        %v348 = vld [vmem:[%s306 + $0xe0] sm:$0xff]
        %v349 = vld [vmem:[%s306 + $0xe8] sm:$0xff]
        %v350 = vld [vmem:[%s306 + $0xf0] sm:$0xff]
        %v351 = vld [vmem:[%s306 + $0xf8] sm:$0xff]
        %v352 = vld [vmem:[%s1] sm:$0xff]
        %v353 = vld [vmem:[%s1 + $0x8] sm:$0xff]
        %v354 = vld [vmem:[%s1 + $0x10] sm:$0xff]
        %v355 = vld [vmem:[%s1 + $0x18] sm:$0xff]
        %v356 = vld [vmem:[%s1 + $0x20] sm:$0xff]
        %v357 = vld [vmem:[%s1 + $0x28] sm:$0xff]
        %v358 = vld [vmem:[%s1 + $0x30] sm:$0xff]
        %v359 = vld [vmem:[%s1 + $0x38] sm:$0xff]
        %v360 = vld [vmem:[%s1 + $0x40] sm:$0xff]
        %v361 = vld [vmem:[%s1 + $0x48] sm:$0xff]
        %v362 = vld [vmem:[%s1 + $0x50] sm:$0xff]
        %v363 = vld [vmem:[%s1 + $0x58] sm:$0xff]
        %v364 = vld [vmem:[%s1 + $0x60] sm:$0xff]
        %v365 = vld [vmem:[%s1 + $0x68] sm:$0xff]
        %v366 = vld [vmem:[%s1 + $0x70] sm:$0xff]
        %v367 = vld [vmem:[%s1 + $0x78] sm:$0xff]
        %v368 = vld [vmem:[%s2] sm:$0x1]
        %v370 = vperm.slane %v368, 0
        %372 = vmatpush.msra.mxu0 %v367
        %373 = vmatpush.msra.mxu0 %v366
        %374 = vmatpush.msra.mxu0 %v365
        %375 = vmatpush.msra.mxu0 %v364
        %376 = vmatpush.msra.mxu0 %v363
        %377 = vmatpush.msra.mxu0 %v362
        %378 = vmatpush.msra.mxu0 %v361
        %379 = vmatpush.msra.mxu0 %v360
        %380 = vmatpush.msra.mxu0 %v359
        %381 = vmatpush.msra.mxu0 %v358
        %382 = vmatpush.msra.mxu0 %v357
        %383 = vmatpush.msra.mxu0 %v356
        %384 = vmatpush.msra.mxu0 %v355
        %385 = vmatpush.msra.mxu0 %v354
        %386 = vmatpush.msra.mxu0 %v353
        %387 = vmatpush.msra.mxu0 %v352
        %388 = vmatmul.f32.gmra.mxu0 %v320
        %v389 = vpop.f32.mrf.mxu0
        %v390 = vadd.f32 %v370, %v389
        %391 = vmatmul.f32.gmra.mxu0 %v321
        %v392 = vpop.f32.mrf.mxu0
        %v393 = vadd.f32 %v370, %v392
        %394 = vmatmul.f32.gmra.mxu0 %v322
        %v395 = vpop.f32.mrf.mxu0
        %v396 = vadd.f32 %v370, %v395
        %397 = vmatmul.f32.gmra.mxu0 %v323
        %v398 = vpop.f32.mrf.mxu0
        %v399 = vadd.f32 %v370, %v398
        %400 = vmatmul.f32.gmra.mxu0 %v324
        %v401 = vpop.f32.mrf.mxu0
        %v402 = vadd.f32 %v370, %v401
        %403 = vmatmul.f32.gmra.mxu0 %v325
        %v404 = vpop.f32.mrf.mxu0
        %v405 = vadd.f32 %v370, %v404
        %406 = vmatmul.f32.gmra.mxu0 %v326
        %v407 = vpop.f32.mrf.mxu0
        %v408 = vadd.f32 %v370, %v407
        %409 = vmatmul.f32.gmra.mxu0 %v327
        %v410 = vpop.f32.mrf.mxu0
        %v411 = vadd.f32 %v370, %v410
        %412 = vmatmul.f32.gmra.mxu0 %v328
        %v413 = vpop.f32.mrf.mxu0
        %v414 = vadd.f32 %v370, %v413
        %415 = vmatmul.f32.gmra.mxu0 %v329
        %v416 = vpop.f32.mrf.mxu0
        %v417 = vadd.f32 %v370, %v416
        %418 = vmatmul.f32.gmra.mxu0 %v330
        %v419 = vpop.f32.mrf.mxu0
        %v420 = vadd.f32 %v370, %v419
        %421 = vmatmul.f32.gmra.mxu0 %v331
        %v422 = vpop.f32.mrf.mxu0
        %v423 = vadd.f32 %v370, %v422
        %424 = vmatmul.f32.gmra.mxu0 %v332
        %v425 = vpop.f32.mrf.mxu0
        %v426 = vadd.f32 %v370, %v425
        %427 = vmatmul.f32.gmra.mxu0 %v333
        %v428 = vpop.f32.mrf.mxu0
        %v429 = vadd.f32 %v370, %v428
        %430 = vmatmul.f32.gmra.mxu0 %v334
        %v431 = vpop.f32.mrf.mxu0
        %v432 = vadd.f32 %v370, %v431
        %433 = vmatmul.f32.gmra.mxu0 %v335
        %v434 = vpop.f32.mrf.mxu0
        %v435 = vadd.f32 %v370, %v434
        %436 = vmatmul.f32.gmra.mxu0 %v336
        %v437 = vpop.f32.mrf.mxu0
        %v438 = vadd.f32 %v370, %v437
        %439 = vmatmul.f32.gmra.mxu0 %v337
        %v440 = vpop.f32.mrf.mxu0
        %v441 = vadd.f32 %v370, %v440
        %442 = vmatmul.f32.gmra.mxu0 %v338
        %v443 = vpop.f32.mrf.mxu0
        %v444 = vadd.f32 %v370, %v443
        %445 = vmatmul.f32.gmra.mxu0 %v339
        %v446 = vpop.f32.mrf.mxu0
        %v447 = vadd.f32 %v370, %v446
        %448 = vmatmul.f32.gmra.mxu0 %v340
        %v449 = vpop.f32.mrf.mxu0
        %v450 = vadd.f32 %v370, %v449
        %451 = vmatmul.f32.gmra.mxu0 %v341
        %v452 = vpop.f32.mrf.mxu0
        %v453 = vadd.f32 %v370, %v452
        %454 = vmatmul.f32.gmra.mxu0 %v342
        %v455 = vpop.f32.mrf.mxu0
        %v456 = vadd.f32 %v370, %v455
        %457 = vmatmul.f32.gmra.mxu0 %v343
        %v458 = vpop.f32.mrf.mxu0
        %v459 = vadd.f32 %v370, %v458
        %460 = vmatmul.f32.gmra.mxu0 %v344
        %v461 = vpop.f32.mrf.mxu0
        %v462 = vadd.f32 %v370, %v461
        %463 = vmatmul.f32.gmra.mxu0 %v345
        %v464 = vpop.f32.mrf.mxu0
        %v465 = vadd.f32 %v370, %v464
        %466 = vmatmul.f32.gmra.mxu0 %v346
        %v467 = vpop.f32.mrf.mxu0
        %v468 = vadd.f32 %v370, %v467
        %469 = vmatmul.f32.gmra.mxu0 %v347
        %v470 = vpop.f32.mrf.mxu0
        %v471 = vadd.f32 %v370, %v470
        %472 = vmatmul.f32.gmra.mxu0 %v348
        %v473 = vpop.f32.mrf.mxu0
        %v474 = vadd.f32 %v370, %v473
        %475 = vmatmul.f32.gmra.mxu0 %v349
        %v476 = vpop.f32.mrf.mxu0
        %v477 = vadd.f32 %v370, %v476
        %478 = vmatmul.f32.gmra.mxu0 %v350
        %v479 = vpop.f32.mrf.mxu0
        %v480 = vadd.f32 %v370, %v479
        %481 = vmatmul.f32.gmra.mxu0 %v351
        %v482 = vpop.f32.mrf.mxu0
        %v483 = vadd.f32 %v370, %v482
        %484 = vdwg.mxu0
        %v485 = vld [vmem:[%s317] sm:$0xff]
        %v486 = vld [vmem:[%s317 + $0x8] sm:$0xff]
        %v487 = vld [vmem:[%s317 + $0x10] sm:$0xff]
        %v488 = vld [vmem:[%s317 + $0x18] sm:$0xff]
        %v489 = vld [vmem:[%s317 + $0x20] sm:$0xff]
        %v490 = vld [vmem:[%s317 + $0x28] sm:$0xff]
        %v491 = vld [vmem:[%s317 + $0x30] sm:$0xff]
        %v492 = vld [vmem:[%s317 + $0x38] sm:$0xff]
        %v493 = vld [vmem:[%s317 + $0x40] sm:$0xff]
        %v494 = vld [vmem:[%s317 + $0x48] sm:$0xff]
        %v495 = vld [vmem:[%s317 + $0x50] sm:$0xff]
        %v496 = vld [vmem:[%s317 + $0x58] sm:$0xff]
        %v497 = vld [vmem:[%s317 + $0x60] sm:$0xff]
        %v498 = vld [vmem:[%s317 + $0x68] sm:$0xff]
        %v499 = vld [vmem:[%s317 + $0x70] sm:$0xff]
        %v500 = vld [vmem:[%s317 + $0x78] sm:$0xff]
        %v501 = vld [vmem:[%s317 + $0x80] sm:$0xff]
        %v502 = vld [vmem:[%s317 + $0x88] sm:$0xff]
        %v503 = vld [vmem:[%s317 + $0x90] sm:$0xff]
        %v504 = vld [vmem:[%s317 + $0x98] sm:$0xff]
        %v505 = vld [vmem:[%s317 + $0xa0] sm:$0xff]
        %v506 = vld [vmem:[%s317 + $0xa8] sm:$0xff]
        %v507 = vld [vmem:[%s317 + $0xb0] sm:$0xff]
        %v508 = vld [vmem:[%s317 + $0xb8] sm:$0xff]
        %v509 = vld [vmem:[%s317 + $0xc0] sm:$0xff]
        %v510 = vld [vmem:[%s317 + $0xc8] sm:$0xff]
        %v511 = vld [vmem:[%s317 + $0xd0] sm:$0xff]
        %v512 = vld [vmem:[%s317 + $0xd8] sm:$0xff]
        %v513 = vld [vmem:[%s317 + $0xe0] sm:$0xff]
        %v514 = vld [vmem:[%s317 + $0xe8] sm:$0xff]
        %v515 = vld [vmem:[%s317 + $0xf0] sm:$0xff]
        %v516 = vld [vmem:[%s317 + $0xf8] sm:$0xff]
        %v517 = vld [vmem:[%s4] sm:$0xff]
        %v518 = vld [vmem:[%s4 + $0x8] sm:$0xff]
        %v519 = vld [vmem:[%s4 + $0x10] sm:$0xff]
        %v520 = vld [vmem:[%s4 + $0x18] sm:$0xff]
        %v521 = vld [vmem:[%s4 + $0x20] sm:$0xff]
        %v522 = vld [vmem:[%s4 + $0x28] sm:$0xff]
        %v523 = vld [vmem:[%s4 + $0x30] sm:$0xff]
        %v524 = vld [vmem:[%s4 + $0x38] sm:$0xff]
        %v525 = vld [vmem:[%s4 + $0x40] sm:$0xff]
        %v526 = vld [vmem:[%s4 + $0x48] sm:$0xff]
        %v527 = vld [vmem:[%s4 + $0x50] sm:$0xff]
        %v528 = vld [vmem:[%s4 + $0x58] sm:$0xff]
        %v529 = vld [vmem:[%s4 + $0x60] sm:$0xff]
        %v530 = vld [vmem:[%s4 + $0x68] sm:$0xff]
        %v531 = vld [vmem:[%s4 + $0x70] sm:$0xff]
        %v532 = vld [vmem:[%s4 + $0x78] sm:$0xff]
        %v533 = vld [vmem:[%s5] sm:$0x1]
        %v535 = vperm.slane %v533, 0
        %537 = vmatpush.msra.mxu0 %v532
        %538 = vmatpush.msra.mxu0 %v531
        %539 = vmatpush.msra.mxu0 %v530
        %540 = vmatpush.msra.mxu0 %v529
        %541 = vmatpush.msra.mxu0 %v528
        %542 = vmatpush.msra.mxu0 %v527
        %543 = vmatpush.msra.mxu0 %v526
        %544 = vmatpush.msra.mxu0 %v525
        %545 = vmatpush.msra.mxu0 %v524
        %546 = vmatpush.msra.mxu0 %v523
        %547 = vmatpush.msra.mxu0 %v522
        %548 = vmatpush.msra.mxu0 %v521
        %549 = vmatpush.msra.mxu0 %v520
        %550 = vmatpush.msra.mxu0 %v519
        %551 = vmatpush.msra.mxu0 %v518
        %552 = vmatpush.msra.mxu0 %v517
        %553 = vmatmul.f32.gmra.mxu0 %v485
        %v554 = vpop.f32.mrf.mxu0
        %v555 = vadd.f32 %v535, %v554
        %556 = vmatmul.f32.gmra.mxu0 %v486
        %v557 = vpop.f32.mrf.mxu0
        %v558 = vadd.f32 %v535, %v557
        %559 = vmatmul.f32.gmra.mxu0 %v487
        %v560 = vpop.f32.mrf.mxu0
        %v561 = vadd.f32 %v535, %v560
        %562 = vmatmul.f32.gmra.mxu0 %v488
        %v563 = vpop.f32.mrf.mxu0
        %v564 = vadd.f32 %v535, %v563
        %565 = vmatmul.f32.gmra.mxu0 %v489
        %v566 = vpop.f32.mrf.mxu0
        %v567 = vadd.f32 %v535, %v566
        %568 = vmatmul.f32.gmra.mxu0 %v490
        %v569 = vpop.f32.mrf.mxu0
        %v570 = vadd.f32 %v535, %v569
        %571 = vmatmul.f32.gmra.mxu0 %v491
        %v572 = vpop.f32.mrf.mxu0
        %v573 = vadd.f32 %v535, %v572
        %574 = vmatmul.f32.gmra.mxu0 %v492
        %v575 = vpop.f32.mrf.mxu0
        %v576 = vadd.f32 %v535, %v575
        %577 = vmatmul.f32.gmra.mxu0 %v493
        %v578 = vpop.f32.mrf.mxu0
        %v579 = vadd.f32 %v535, %v578
        %580 = vmatmul.f32.gmra.mxu0 %v494
        %v581 = vpop.f32.mrf.mxu0
        %v582 = vadd.f32 %v535, %v581
        %583 = vmatmul.f32.gmra.mxu0 %v495
        %v584 = vpop.f32.mrf.mxu0
        %v585 = vadd.f32 %v535, %v584
        %586 = vmatmul.f32.gmra.mxu0 %v496
        %v587 = vpop.f32.mrf.mxu0
        %v588 = vadd.f32 %v535, %v587
        %589 = vmatmul.f32.gmra.mxu0 %v497
        %v590 = vpop.f32.mrf.mxu0
        %v591 = vadd.f32 %v535, %v590
        %592 = vmatmul.f32.gmra.mxu0 %v498
        %v593 = vpop.f32.mrf.mxu0
        %v594 = vadd.f32 %v535, %v593
        %595 = vmatmul.f32.gmra.mxu0 %v499
        %v596 = vpop.f32.mrf.mxu0
        %v597 = vadd.f32 %v535, %v596
        %598 = vmatmul.f32.gmra.mxu0 %v500
        %v599 = vpop.f32.mrf.mxu0
        %v600 = vadd.f32 %v535, %v599
        %601 = vmatmul.f32.gmra.mxu0 %v501
        %v602 = vpop.f32.mrf.mxu0
        %v603 = vadd.f32 %v535, %v602
        %604 = vmatmul.f32.gmra.mxu0 %v502
        %v605 = vpop.f32.mrf.mxu0
        %v606 = vadd.f32 %v535, %v605
        %607 = vmatmul.f32.gmra.mxu0 %v503
        %v608 = vpop.f32.mrf.mxu0
        %v609 = vadd.f32 %v535, %v608
        %610 = vmatmul.f32.gmra.mxu0 %v504
        %v611 = vpop.f32.mrf.mxu0
        %v612 = vadd.f32 %v535, %v611
        %613 = vmatmul.f32.gmra.mxu0 %v505
        %v614 = vpop.f32.mrf.mxu0
        %v615 = vadd.f32 %v535, %v614
        %616 = vmatmul.f32.gmra.mxu0 %v506
        %v617 = vpop.f32.mrf.mxu0
        %v618 = vadd.f32 %v535, %v617
        %619 = vmatmul.f32.gmra.mxu0 %v507
        %v620 = vpop.f32.mrf.mxu0
        %v621 = vadd.f32 %v535, %v620
        %622 = vmatmul.f32.gmra.mxu0 %v508
        %v623 = vpop.f32.mrf.mxu0
        %v624 = vadd.f32 %v535, %v623
        %625 = vmatmul.f32.gmra.mxu0 %v509
        %v626 = vpop.f32.mrf.mxu0
        %v627 = vadd.f32 %v535, %v626
        %628 = vmatmul.f32.gmra.mxu0 %v510
        %v629 = vpop.f32.mrf.mxu0
        %v630 = vadd.f32 %v535, %v629
        %631 = vmatmul.f32.gmra.mxu0 %v511
        %v632 = vpop.f32.mrf.mxu0
        %v633 = vadd.f32 %v535, %v632
        %634 = vmatmul.f32.gmra.mxu0 %v512
        %v635 = vpop.f32.mrf.mxu0
        %v636 = vadd.f32 %v535, %v635
        %637 = vmatmul.f32.gmra.mxu0 %v513
        %v638 = vpop.f32.mrf.mxu0
        %v639 = vadd.f32 %v535, %v638
        %640 = vmatmul.f32.gmra.mxu0 %v514
        %v641 = vpop.f32.mrf.mxu0
        %v642 = vadd.f32 %v535, %v641
        %643 = vmatmul.f32.gmra.mxu0 %v515
        %v644 = vpop.f32.mrf.mxu0
        %v645 = vadd.f32 %v535, %v644
        %646 = vmatmul.f32.gmra.mxu0 %v516
        %v647 = vpop.f32.mrf.mxu0
        %v648 = vadd.f32 %v535, %v647
        %649 = vdwg.mxu0
        %v650 = vadd.f32 %v390, %v555
        %v651 = vadd.f32 %v393, %v558
        %v652 = vadd.f32 %v396, %v561
        %v653 = vadd.f32 %v399, %v564
        %v654 = vadd.f32 %v402, %v567
        %v655 = vadd.f32 %v405, %v570
        %v656 = vadd.f32 %v408, %v573
        %v657 = vadd.f32 %v411, %v576
        %v658 = vadd.f32 %v414, %v579
        %v659 = vadd.f32 %v417, %v582
        %v660 = vadd.f32 %v420, %v585
        %v661 = vadd.f32 %v423, %v588
        %v662 = vadd.f32 %v426, %v591
        %v663 = vadd.f32 %v429, %v594
        %v664 = vadd.f32 %v432, %v597
        %v665 = vadd.f32 %v435, %v600
        %v666 = vadd.f32 %v438, %v603
        %v667 = vadd.f32 %v441, %v606
        %v668 = vadd.f32 %v444, %v609
        %v669 = vadd.f32 %v447, %v612
        %v670 = vadd.f32 %v450, %v615
        %v671 = vadd.f32 %v453, %v618
        %v672 = vadd.f32 %v456, %v621
        %v673 = vadd.f32 %v459, %v624
        %v674 = vadd.f32 %v462, %v627
        %v675 = vadd.f32 %v465, %v630
        %v676 = vadd.f32 %v468, %v633
        %v677 = vadd.f32 %v471, %v636
        %v678 = vadd.f32 %v474, %v639
        %v679 = vadd.f32 %v477, %v642
        %v680 = vadd.f32 %v480, %v645
        %v681 = vadd.f32 %v483, %v648
        %v682 = vmul.f32 %v650, 0.044715
        %v683 = vmul.f32 %v651, 0.044715
        %v684 = vmul.f32 %v652, 0.044715
        %v685 = vmul.f32 %v653, 0.044715
        %v686 = vmul.f32 %v654, 0.044715
        %v687 = vmul.f32 %v655, 0.044715
        %v688 = vmul.f32 %v656, 0.044715
        %v689 = vmul.f32 %v657, 0.044715
        %v690 = vmul.f32 %v658, 0.044715
        %v691 = vmul.f32 %v659, 0.044715
        %v692 = vmul.f32 %v660, 0.044715
        %v693 = vmul.f32 %v661, 0.044715
        %v694 = vmul.f32 %v662, 0.044715
        %v695 = vmul.f32 %v663, 0.044715
        %v696 = vmul.f32 %v664, 0.044715
        %v697 = vmul.f32 %v665, 0.044715
        %v698 = vmul.f32 %v666, 0.044715
        %v699 = vmul.f32 %v667, 0.044715
        %v700 = vmul.f32 %v668, 0.044715
        %v701 = vmul.f32 %v669, 0.044715
        %v702 = vmul.f32 %v670, 0.044715
        %v703 = vmul.f32 %v671, 0.044715
        %v704 = vmul.f32 %v672, 0.044715
        %v705 = vmul.f32 %v673, 0.044715
        %v706 = vmul.f32 %v674, 0.044715
        %v707 = vmul.f32 %v675, 0.044715
        %v708 = vmul.f32 %v676, 0.044715
        %v709 = vmul.f32 %v677, 0.044715
        %v710 = vmul.f32 %v678, 0.044715
        %v711 = vmul.f32 %v679, 0.044715
        %v712 = vmul.f32 %v680, 0.044715
        %v713 = vmul.f32 %v681, 0.044715
        %v714 = vmul.f32 %v682, %v650
        %v715 = vmul.f32 %v683, %v651
        %v716 = vmul.f32 %v684, %v652
        %v717 = vmul.f32 %v685, %v653
        %v718 = vmul.f32 %v686, %v654
        %v719 = vmul.f32 %v687, %v655
        %v720 = vmul.f32 %v688, %v656
        %v721 = vmul.f32 %v689, %v657
        %v722 = vmul.f32 %v690, %v658
        %v723 = vmul.f32 %v691, %v659
        %v724 = vmul.f32 %v692, %v660
        %v725 = vmul.f32 %v693, %v661
        %v726 = vmul.f32 %v694, %v662
        %v727 = vmul.f32 %v695, %v663
        %v728 = vmul.f32 %v696, %v664
        %v729 = vmul.f32 %v697, %v665
        %v730 = vmul.f32 %v698, %v666
        %v731 = vmul.f32 %v699, %v667
        %v732 = vmul.f32 %v700, %v668
        %v733 = vmul.f32 %v701, %v669
        %v734 = vmul.f32 %v702, %v670
        %v735 = vmul.f32 %v703, %v671
        %v736 = vmul.f32 %v704, %v672
        %v737 = vmul.f32 %v705, %v673
        %v738 = vmul.f32 %v706, %v674
        %v739 = vmul.f32 %v707, %v675
        %v740 = vmul.f32 %v708, %v676
        %v741 = vmul.f32 %v709, %v677
        %v742 = vmul.f32 %v710, %v678
        %v743 = vmul.f32 %v711, %v679
        %v744 = vmul.f32 %v712, %v680
        %v745 = vmul.f32 %v713, %v681
        %v746 = vadd.f32 %v714, 1.0
        %v747 = vadd.f32 %v715, 1.0
        %v748 = vadd.f32 %v716, 1.0
        %v749 = vadd.f32 %v717, 1.0
        %v750 = vadd.f32 %v718, 1.0
        %v751 = vadd.f32 %v719, 1.0
        %v752 = vadd.f32 %v720, 1.0
        %v753 = vadd.f32 %v721, 1.0
        %v754 = vadd.f32 %v722, 1.0
        %v755 = vadd.f32 %v723, 1.0
        %v756 = vadd.f32 %v724, 1.0
        %v757 = vadd.f32 %v725, 1.0
        %v758 = vadd.f32 %v726, 1.0
        %v759 = vadd.f32 %v727, 1.0
        %v760 = vadd.f32 %v728, 1.0
        %v761 = vadd.f32 %v729, 1.0
        %v762 = vadd.f32 %v730, 1.0
        %v763 = vadd.f32 %v731, 1.0
        %v764 = vadd.f32 %v732, 1.0
        %v765 = vadd.f32 %v733, 1.0
        %v766 = vadd.f32 %v734, 1.0
        %v767 = vadd.f32 %v735, 1.0
        %v768 = vadd.f32 %v736, 1.0
        %v769 = vadd.f32 %v737, 1.0
        %v770 = vadd.f32 %v738, 1.0
        %v771 = vadd.f32 %v739, 1.0
        %v772 = vadd.f32 %v740, 1.0
        %v773 = vadd.f32 %v741, 1.0
        %v774 = vadd.f32 %v742, 1.0
        %v775 = vadd.f32 %v743, 1.0
        %v776 = vadd.f32 %v744, 1.0
        %v777 = vadd.f32 %v745, 1.0
        %v778 = vmul.f32 %v650, %v746
        %v779 = vmul.f32 %v651, %v747
        %v780 = vmul.f32 %v652, %v748
        %v781 = vmul.f32 %v653, %v749
        %v782 = vmul.f32 %v654, %v750
        %v783 = vmul.f32 %v655, %v751
        %v784 = vmul.f32 %v656, %v752
        %v785 = vmul.f32 %v657, %v753
        %v786 = vmul.f32 %v658, %v754
        %v787 = vmul.f32 %v659, %v755
        %v788 = vmul.f32 %v660, %v756
        %v789 = vmul.f32 %v661, %v757
        %v790 = vmul.f32 %v662, %v758
        %v791 = vmul.f32 %v663, %v759
        %v792 = vmul.f32 %v664, %v760
        %v793 = vmul.f32 %v665, %v761
        %v794 = vmul.f32 %v666, %v762
        %v795 = vmul.f32 %v667, %v763
        %v796 = vmul.f32 %v668, %v764
        %v797 = vmul.f32 %v669, %v765
        %v798 = vmul.f32 %v670, %v766
        %v799 = vmul.f32 %v671, %v767
        %v800 = vmul.f32 %v672, %v768
        %v801 = vmul.f32 %v673, %v769
        %v802 = vmul.f32 %v674, %v770
        %v803 = vmul.f32 %v675, %v771
        %v804 = vmul.f32 %v676, %v772
        %v805 = vmul.f32 %v677, %v773
        %v806 = vmul.f32 %v678, %v774
        %v807 = vmul.f32 %v679, %v775
        %v808 = vmul.f32 %v680, %v776
        %v809 = vmul.f32 %v681, %v777
        %v810 = vmul.f32 %v778, 0.7978846
        %v811 = vmul.f32 %v779, 0.7978846
        %v812 = vmul.f32 %v780, 0.7978846
        %v813 = vmul.f32 %v781, 0.7978846
        %v814 = vmul.f32 %v782, 0.7978846
        %v815 = vmul.f32 %v783, 0.7978846
        %v816 = vmul.f32 %v784, 0.7978846
        %v817 = vmul.f32 %v785, 0.7978846
        %v818 = vmul.f32 %v786, 0.7978846
        %v819 = vmul.f32 %v787, 0.7978846
        %v820 = vmul.f32 %v788, 0.7978846
        %v821 = vmul.f32 %v789, 0.7978846
        %v822 = vmul.f32 %v790, 0.7978846
        %v823 = vmul.f32 %v791, 0.7978846
        %v824 = vmul.f32 %v792, 0.7978846
        %v825 = vmul.f32 %v793, 0.7978846
        %v826 = vmul.f32 %v794, 0.7978846
        %v827 = vmul.f32 %v795, 0.7978846
        %v828 = vmul.f32 %v796, 0.7978846
        %v829 = vmul.f32 %v797, 0.7978846
        %v830 = vmul.f32 %v798, 0.7978846
        %v831 = vmul.f32 %v799, 0.7978846
        %v832 = vmul.f32 %v800, 0.7978846
        %v833 = vmul.f32 %v801, 0.7978846
        %v834 = vmul.f32 %v802, 0.7978846
        %v835 = vmul.f32 %v803, 0.7978846
        %v836 = vmul.f32 %v804, 0.7978846
        %v837 = vmul.f32 %v805, 0.7978846
        %v838 = vmul.f32 %v806, 0.7978846
        %v839 = vmul.f32 %v807, 0.7978846
        %v840 = vmul.f32 %v808, 0.7978846
        %v841 = vmul.f32 %v809, 0.7978846
        %v842 = vmul.f32 %v650, 0.5
        %v843 = vmul.f32 %v651, 0.5
        %v844 = vmul.f32 %v652, 0.5
        %v845 = vmul.f32 %v653, 0.5
        %v846 = vmul.f32 %v654, 0.5
        %v847 = vmul.f32 %v655, 0.5
        %v848 = vmul.f32 %v656, 0.5
        %v849 = vmul.f32 %v657, 0.5
        %v850 = vmul.f32 %v658, 0.5
        %v851 = vmul.f32 %v659, 0.5
        %v852 = vmul.f32 %v660, 0.5
        %v853 = vmul.f32 %v661, 0.5
        %v854 = vmul.f32 %v662, 0.5
        %v855 = vmul.f32 %v663, 0.5
        %v856 = vmul.f32 %v664, 0.5
        %v857 = vmul.f32 %v665, 0.5
        %v858 = vmul.f32 %v666, 0.5
        %v859 = vmul.f32 %v667, 0.5
        %v860 = vmul.f32 %v668, 0.5
        %v861 = vmul.f32 %v669, 0.5
        %v862 = vmul.f32 %v670, 0.5
        %v863 = vmul.f32 %v671, 0.5
        %v864 = vmul.f32 %v672, 0.5
        %v865 = vmul.f32 %v673, 0.5
        %v866 = vmul.f32 %v674, 0.5
        %v867 = vmul.f32 %v675, 0.5
        %v868 = vmul.f32 %v676, 0.5
        %v869 = vmul.f32 %v677, 0.5
        %v870 = vmul.f32 %v678, 0.5
        %v871 = vmul.f32 %v679, 0.5
        %v872 = vmul.f32 %v680, 0.5
        %v873 = vmul.f32 %v681, 0.5
        %v874 = vtanh.pop %v810
        %v875 = vtanh.pop %v811
        %v876 = vtanh.pop %v812
        %v877 = vtanh.pop %v813
        %v878 = vtanh.pop %v814
        %v879 = vtanh.pop %v815
        %v880 = vtanh.pop %v816
        %v881 = vtanh.pop %v817
        %v882 = vtanh.pop %v818
        %v883 = vtanh.pop %v819
        %v884 = vtanh.pop %v820
        %v885 = vtanh.pop %v821
        %v886 = vtanh.pop %v822
        %v887 = vtanh.pop %v823
        %v888 = vtanh.pop %v824
        %v889 = vtanh.pop %v825
        %v890 = vtanh.pop %v826
        %v891 = vtanh.pop %v827
        %v892 = vtanh.pop %v828
        %v893 = vtanh.pop %v829
        %v894 = vtanh.pop %v830
        %v895 = vtanh.pop %v831
        %v896 = vtanh.pop %v832
        %v897 = vtanh.pop %v833
        %v898 = vtanh.pop %v834
        %v899 = vtanh.pop %v835
        %v900 = vtanh.pop %v836
        %v901 = vtanh.pop %v837
        %v902 = vtanh.pop %v838
        %v903 = vtanh.pop %v839
        %v904 = vtanh.pop %v840
        %v905 = vtanh.pop %v841
        %v906 = vadd.f32 %v874, 1.0
        %v907 = vadd.f32 %v875, 1.0
        %v908 = vadd.f32 %v876, 1.0
        %v909 = vadd.f32 %v877, 1.0
        %v910 = vadd.f32 %v878, 1.0
        %v911 = vadd.f32 %v879, 1.0
        %v912 = vadd.f32 %v880, 1.0
        %v913 = vadd.f32 %v881, 1.0
        %v914 = vadd.f32 %v882, 1.0
        %v915 = vadd.f32 %v883, 1.0
        %v916 = vadd.f32 %v884, 1.0
        %v917 = vadd.f32 %v885, 1.0
        %v918 = vadd.f32 %v886, 1.0
        %v919 = vadd.f32 %v887, 1.0
        %v920 = vadd.f32 %v888, 1.0
        %v921 = vadd.f32 %v889, 1.0
        %v922 = vadd.f32 %v890, 1.0
        %v923 = vadd.f32 %v891, 1.0
        %v924 = vadd.f32 %v892, 1.0
        %v925 = vadd.f32 %v893, 1.0
        %v926 = vadd.f32 %v894, 1.0
        %v927 = vadd.f32 %v895, 1.0
        %v928 = vadd.f32 %v896, 1.0
        %v929 = vadd.f32 %v897, 1.0
        %v930 = vadd.f32 %v898, 1.0
        %v931 = vadd.f32 %v899, 1.0
        %v932 = vadd.f32 %v900, 1.0
        %v933 = vadd.f32 %v901, 1.0
        %v934 = vadd.f32 %v902, 1.0
        %v935 = vadd.f32 %v903, 1.0
        %v936 = vadd.f32 %v904, 1.0
        %v937 = vadd.f32 %v905, 1.0
        %v938 = vmul.f32 %v842, %v906
        %v939 = vmul.f32 %v843, %v907
        %v940 = vmul.f32 %v844, %v908
        %v941 = vmul.f32 %v845, %v909
        %v942 = vmul.f32 %v846, %v910
        %v943 = vmul.f32 %v847, %v911
        %v944 = vmul.f32 %v848, %v912
        %v945 = vmul.f32 %v849, %v913
        %v946 = vmul.f32 %v850, %v914
        %v947 = vmul.f32 %v851, %v915
        %v948 = vmul.f32 %v852, %v916
        %v949 = vmul.f32 %v853, %v917
        %v950 = vmul.f32 %v854, %v918
        %v951 = vmul.f32 %v855, %v919
        %v952 = vmul.f32 %v856, %v920
        %v953 = vmul.f32 %v857, %v921
        %v954 = vmul.f32 %v858, %v922
        %v955 = vmul.f32 %v859, %v923
        %v956 = vmul.f32 %v860, %v924
        %v957 = vmul.f32 %v861, %v925
        %v958 = vmul.f32 %v862, %v926
        %v959 = vmul.f32 %v863, %v927
        %v960 = vmul.f32 %v864, %v928
        %v961 = vmul.f32 %v865, %v929
        %v962 = vmul.f32 %v866, %v930
        %v963 = vmul.f32 %v867, %v931
        %v964 = vmul.f32 %v868, %v932
        %v965 = vmul.f32 %v869, %v933
        %v966 = vmul.f32 %v870, %v934
        %v967 = vmul.f32 %v871, %v935
        %v968 = vmul.f32 %v872, %v936
        %v969 = vmul.f32 %v873, %v937
        %970 = vst [vmem:[%s297] sm:$0xff] %v938
        %971 = vst [vmem:[%s297 + $0x8] sm:$0xff] %v939
        %972 = vst [vmem:[%s297 + $0x10] sm:$0xff] %v940
        %973 = vst [vmem:[%s297 + $0x18] sm:$0xff] %v941
        %974 = vst [vmem:[%s297 + $0x20] sm:$0xff] %v942
        %975 = vst [vmem:[%s297 + $0x28] sm:$0xff] %v943
        %976 = vst [vmem:[%s297 + $0x30] sm:$0xff] %v944
        %977 = vst [vmem:[%s297 + $0x38] sm:$0xff] %v945
        %978 = vst [vmem:[%s297 + $0x40] sm:$0xff] %v946
        %979 = vst [vmem:[%s297 + $0x48] sm:$0xff] %v947
        %980 = vst [vmem:[%s297 + $0x50] sm:$0xff] %v948
        %981 = vst [vmem:[%s297 + $0x58] sm:$0xff] %v949
        %982 = vst [vmem:[%s297 + $0x60] sm:$0xff] %v950
        %983 = vst [vmem:[%s297 + $0x68] sm:$0xff] %v951
        %984 = vst [vmem:[%s297 + $0x70] sm:$0xff] %v952
        %985 = vst [vmem:[%s297 + $0x78] sm:$0xff] %v953
        %986 = vst [vmem:[%s297 + $0x80] sm:$0xff] %v954
        %987 = vst [vmem:[%s297 + $0x88] sm:$0xff] %v955
        %988 = vst [vmem:[%s297 + $0x90] sm:$0xff] %v956
        %989 = vst [vmem:[%s297 + $0x98] sm:$0xff] %v957
        %990 = vst [vmem:[%s297 + $0xa0] sm:$0xff] %v958
        %991 = vst [vmem:[%s297 + $0xa8] sm:$0xff] %v959
        %992 = vst [vmem:[%s297 + $0xb0] sm:$0xff] %v960
        %993 = vst [vmem:[%s297 + $0xb8] sm:$0xff] %v961
        %994 = vst [vmem:[%s297 + $0xc0] sm:$0xff] %v962
        %995 = vst [vmem:[%s297 + $0xc8] sm:$0xff] %v963
        %996 = vst [vmem:[%s297 + $0xd0] sm:$0xff] %v964
        %997 = vst [vmem:[%s297 + $0xd8] sm:$0xff] %v965
        %998 = vst [vmem:[%s297 + $0xe0] sm:$0xff] %v966
        %999 = vst [vmem:[%s297 + $0xe8] sm:$0xff] %v967
        %1000 = vst [vmem:[%s297 + $0xf0] sm:$0xff] %v968
        %1001 = vst [vmem:[%s297 + $0xf8] sm:$0xff] %v969
        %s1002 = sand.u32 %s182, 1
        %s1003 = scalar_lea.sflag [#allocation3], %s1002
        %s1004 = sand.u32 %s182, 1
        %s1005 = smul.addr %s1004, 256
        %s1006 = scalar_lea.vmem [#allocation2], %s1005
        // Predicated region
        $region45: #{bottleneck_forward.5} parent=43 // pred_check
          %p1007 = pneg %p192
        $region46: #{bottleneck_forward.5} parent=43 // pred_check_branch
          %1009 = sbr.rel (%p1007) target = $region48
        $region47: #{bottleneck_forward.5} parent=43 // pred_region
          %s1010 = smul.u32 32, %s25
          %1012 = vsyncadd %s1003, 0
          %s1013 = smul.addr %s24, 32
          %s1014 = sadd.s32 %s1010, %s1013
          %s1015 = smul.addr %s1014, 8
          %s1016 = scalar_lea.hbm %s6, %s1015
          %s1017 = sshll.u32 %s1006, 4
          %s1018 = int_to_ptr.vmem [resolvable:$true] %s1017
          %s1019 = sshll.u32 %s1016, 4
          %s1020 = int_to_ptr.hbm [resolvable:$true] %s1019
          %1025 = dma.vmem_to_hbm [thread:$0]  %s1018, 4096, %s1020, %s1003, 128, 128, 8
        $region48: #{bottleneck_forward.5} parent=43 // pred_fallthru
          _
      $region44: #{bottleneck_forward.5} parent=5 // pred_fallthru
        _
      %p1026 = scmp.le.s32.totalorder 2, %s15
      // Predicated region
      $region49: #{bottleneck_forward.5} parent=5 // pred_check
        %p1027 = pneg %p1026
      $region50: #{bottleneck_forward.5} parent=5 // pred_check_branch
        %1029 = sbr.rel (%p1027) target = $region52
      $region51: #{bottleneck_forward.5} parent=5 // pred_region
        %s1030 = ssub.s32 %s15, 2
        // Predicated region
        $region53: #{bottleneck_forward.5} parent=51 // pred_check
          %p1031 = pneg %p198
        $region54: #{bottleneck_forward.5} parent=51 // pred_check_branch
          %1033 = sbr.rel (%p1031) target = $region56
        $region55: #{bottleneck_forward.5} parent=51 // pred_region
          %s1034 = sand.u32 %s183, 1
          %s1035 = scalar_lea.sflag [#allocation3], %s1034
          %s1036 = sand.u32 %s183, 1
          %s1037 = smul.addr %s1036, 256
          %s1038 = scalar_lea.vmem [#allocation2], %s1037
          %1040 = dma.done %s1035, 4096
        $region56: #{bottleneck_forward.5} parent=51 // pred_fallthru
          _
      $region52: #{bottleneck_forward.5} parent=5 // pred_fallthru
        _
    $region6: #{bottleneck_forward.5} parent=1 // loop_footer
      %s19 = sadd.s32 1, %s15
    $region7: #{bottleneck_forward.5} parent=1 // loop_footer_branch
      %14 = sbr.rel target = $region3
    $region8: #{bottleneck_forward.5} parent=1 // loop_exit
      _
    %1041 = vsyncpa [#allocation3], 1
    %s1042 = scalar_lea.sflag [#allocation3], 1
    %1043 = vsyncpa %s1042, 1

// kernel: bottleneck_forward.4
$region0: #{bottleneck_forward.4}
  #allocation0 [shape = 'u32[]', space=smem, size = 0x4, offset = 0x4, fixed_abs, tag = 'smem constant byte address 0x4 - core index']
  #allocation1 [shape = 'u32[72,128]{1,0:T(1,128)}', space=vmem, size = 0x9000, scoped, tag = 'internal scratch']
  %s0 = inlined_call_operand.vmem [shape: f32[2,18,1,18,128], index: 0, kind: input, shape index: {}]
  %s1 = inlined_call_operand.vmem [shape: f32[9,128,128], index: 1, kind: input, shape index: {}]
  %s2 = inlined_call_operand.vmem [shape: f32[1,128], index: 2, kind: input, shape index: {}]
  %s3 = inlined_call_operand.vmem [shape: f32[2,256,128], index: 3, kind: output, shape index: {}]
  %s4 = sld [smem:[#allocation0]]
  $region45: #{bottleneck_forward.4} parent=0
    _
  %s6 = ssub.s32 1, %s4
  %s7 = scalar_select 0, %s6, %s4
  loop: start=0, step=1, limit=4
  $region2: #{bottleneck_forward.4} parent=0 // loop_pre_header
    _
  $region3: #{bottleneck_forward.4} parent=0 // loop_header
    %s9 = sphi 0, %s13
    %p10 = scmp.ge.s32.totalorder %s9, 4
    %s16 = sphi 0, %s28
    %s17 = sphi 0, %s24
    %s18 = sphi 0, %s16
    %s19 = sphi 0, %s17
    %s20 = sphi 0, %s18
    %s21 = sphi 0, %s19
    %s31 = sphi 0, %s33
    %s34 = sphi 0, %s31
    %s35 = sphi 0, %s34
    %s51 = sphi 0, %s35
    %s55 = sphi 0, %s55
    %s57 = sphi 0, %s55
    %s58 = sphi 0, %s57
    %s72 = sphi 0, %s58
    %s76 = sphi 0, %s76
    %s78 = sphi 0, %s76
    %s79 = sphi 0, %s78
    %s93 = sphi 0, %s79
    %s101 = sphi 0, %s103
    %s104 = sphi 0, %s101
    %s105 = sphi 0, %s104
    %s121 = sphi 0, %s105
  $region4: #{bottleneck_forward.4} parent=0 // loop_header_branch
    %12 = sbr.rel (%p10) target = $region8
  $region5: #{bottleneck_forward.4} parent=0 // loop_body
    %s14 = ssub.s32 %s9, 1
    %s15 = ssub.s32 %s9, 2
    %s22 = sadd.s32 1, %s17
    %p23 = scmp.ge.s32.totalorder %s22, 1
    %s24 = scalar_select %p23, 0, %s22
    %s25 = sadd.s32 1, %s16
    %s26 = scalar_select %p23, %s25, %s16
    %p27 = scmp.ge.s32.totalorder %s26, 2
    %s28 = scalar_select %p27, 0, %s26
    %s29 = ssub.s32 %s16, %s28
    %p30 = scmp.eq.s32.totalorder %s29, 0
    %s32 = sadd.s32 %s31, 1
    %s33 = scalar_select %p30, %s31, %s32
    %p36 = pneg %p30
    %p37 = scmp.eq.s32.totalorder %s9, 1
    %p38 = por %p36, %p37
    %p39 = scmp.ne.s32.totalorder %s31, %s34
    %p40 = scmp.eq.s32.totalorder %s9, 0
    %p41 = por %p39, %p40
    %p42 = scmp.ne.s32.totalorder %s31, %s34
    %p43 = scmp.eq.s32.totalorder %s14, 1
    %p44 = por %p42, %p43
    %p45 = scmp.ne.s32.totalorder %s34, %s35
    %p46 = scmp.eq.s32.totalorder %s14, 0
    %p47 = por %p45, %p46
    %p48 = scmp.ne.s32.totalorder %s34, %s35
    %p49 = scmp.eq.s32.totalorder %s15, 1
    %p50 = por %p48, %p49
    %p52 = scmp.ne.s32.totalorder %s35, %s51
    %p53 = scmp.eq.s32.totalorder %s15, 0
    %p54 = por %p52, %p53
    %s56 = sadd.s32 %s55, 1
    %p59 = scmp.eq.s32.totalorder %s9, 1
    %p60 = scmp.ne.s32.totalorder %s55, %s57
    %p61 = scmp.eq.s32.totalorder %s9, 0
    %p62 = por %p60, %p61
    %p63 = scmp.ne.s32.totalorder %s55, %s57
    %p64 = scmp.eq.s32.totalorder %s14, 1
    %p65 = por %p63, %p64
    %p66 = scmp.ne.s32.totalorder %s57, %s58
    %p67 = scmp.eq.s32.totalorder %s14, 0
    %p68 = por %p66, %p67
    %p69 = scmp.ne.s32.totalorder %s57, %s58
    %p70 = scmp.eq.s32.totalorder %s15, 1
    %p71 = por %p69, %p70
    %p73 = scmp.ne.s32.totalorder %s58, %s72
    %p74 = scmp.eq.s32.totalorder %s15, 0
    %p75 = por %p73, %p74
    %s77 = sadd.s32 %s76, 1
    %p80 = scmp.eq.s32.totalorder %s9, 1
    %p81 = scmp.ne.s32.totalorder %s76, %s78
    %p82 = scmp.eq.s32.totalorder %s9, 0
    %p83 = por %p81, %p82
    %p84 = scmp.ne.s32.totalorder %s76, %s78
    %p85 = scmp.eq.s32.totalorder %s14, 1
    %p86 = por %p84, %p85
    %p87 = scmp.ne.s32.totalorder %s78, %s79
    %p88 = scmp.eq.s32.totalorder %s14, 0
    %p89 = por %p87, %p88
    %p90 = scmp.ne.s32.totalorder %s78, %s79
    %p91 = scmp.eq.s32.totalorder %s15, 1
    %p92 = por %p90, %p91
    %p94 = scmp.ne.s32.totalorder %s79, %s93
    %p95 = scmp.eq.s32.totalorder %s15, 0
    %p96 = por %p94, %p95
    %s97 = ssub.s32 %s16, %s28
    %s98 = ssub.s32 %s17, %s24
    %s99 = sor.u32 %s97, %s98
    %p100 = scmp.eq.s32.totalorder %s99, 0
    %s102 = sadd.s32 %s101, 1
    %s103 = scalar_select %p100, %s101, %s102
    %p106 = pneg %p100
    %p107 = scmp.eq.s32.totalorder %s9, 1
    %p108 = por %p106, %p107
    %p109 = scmp.ne.s32.totalorder %s101, %s104
    %p110 = scmp.eq.s32.totalorder %s9, 0
    %p111 = por %p109, %p110
    %p112 = scmp.ne.s32.totalorder %s101, %s104
    %p113 = scmp.eq.s32.totalorder %s14, 1
    %p114 = por %p112, %p113
    %p115 = scmp.ne.s32.totalorder %s104, %s105
    %p116 = scmp.eq.s32.totalorder %s14, 0
    %p117 = por %p115, %p116
    %p118 = scmp.ne.s32.totalorder %s104, %s105
    %p119 = scmp.eq.s32.totalorder %s15, 1
    %p120 = por %p118, %p119
    %p122 = scmp.ne.s32.totalorder %s105, %s121
    %p123 = scmp.eq.s32.totalorder %s15, 0
    %p124 = por %p122, %p123
    %p125 = scmp.le.s32.totalorder 1, %s9
    %p126 = scmp.lt.s32.totalorder %s9, 3
    %p127 = pnand %p125, %p126
    %p128 = pneg %p127
    // Predicated region
    $region9: #{bottleneck_forward.4} parent=5 // pred_check
      _
    $region10: #{bottleneck_forward.4} parent=5 // pred_check_branch
      %130 = sbr.rel (%p127) target = $region12
    $region11: #{bottleneck_forward.4} parent=5 // pred_region
      %s131 = ssub.s32 %s9, 1
      // Predicated region
      $region13: #{bottleneck_forward.4} parent=11 // pred_check
        %p132 = pneg %p68
      $region14: #{bottleneck_forward.4} parent=11 // pred_check_branch
        %134 = sbr.rel (%p132) target = $region16
      $region15: #{bottleneck_forward.4} parent=11 // pred_region
        _
      $region16: #{bottleneck_forward.4} parent=11 // pred_fallthru
        _
      // Predicated region
      $region17: #{bottleneck_forward.4} parent=11 // pred_check
        %p135 = pneg %p89
      $region18: #{bottleneck_forward.4} parent=11 // pred_check_branch
        %137 = sbr.rel (%p135) target = $region20
      $region19: #{bottleneck_forward.4} parent=11 // pred_region
        _
      $region20: #{bottleneck_forward.4} parent=11 // pred_fallthru
        _
    $region12: #{bottleneck_forward.4} parent=5 // pred_fallthru
      _
    %p138 = scmp.lt.s32.totalorder %s9, 2
    // Predicated region
    $region21: #{bottleneck_forward.4} parent=5 // pred_check
      %p139 = pneg %p138
    $region22: #{bottleneck_forward.4} parent=5 // pred_check_branch
      %141 = sbr.rel (%p139) target = $region24
    $region23: #{bottleneck_forward.4} parent=5 // pred_region
      // Predicated region
      $region25: #{bottleneck_forward.4} parent=23 // pred_check
        %p142 = pneg %p41
      $region26: #{bottleneck_forward.4} parent=23 // pred_check_branch
        %144 = sbr.rel (%p142) target = $region28
      $region27: #{bottleneck_forward.4} parent=23 // pred_region
        %p145 = scmp.lt.s32.totalorder %s16, 1
        %s146 = scalar_select %p145, %s16, 1
        %s147 = smul.addr %s146, 54
        %s148 = smul.addr %s147, 8
        %s149 = scalar_lea.vmem %s0, %s148
      $region28: #{bottleneck_forward.4} parent=23 // pred_fallthru
        _
    $region24: #{bottleneck_forward.4} parent=5 // pred_fallthru
      _
    %p150 = scmp.le.s32.totalorder 1, %s9
    %p151 = scmp.lt.s32.totalorder %s9, 3
    %p152 = pnand %p150, %p151
    %p153 = pneg %p152
    // Predicated region
    $region29: #{bottleneck_forward.4} parent=5 // pred_check
      _
    $region30: #{bottleneck_forward.4} parent=5 // pred_check_branch
      %155 = sbr.rel (%p152) target = $region32
    $region31: #{bottleneck_forward.4} parent=5 // pred_region
      %s156 = ssub.s32 %s9, 1
      %p157 = scmp.lt.s32.totalorder %s18, 1
      %s158 = scalar_select %p157, %s18, 1
      %s159 = smul.addr %s158, 54
      %s160 = smul.addr %s159, 8
      %s161 = scalar_lea.vmem %s0, %s160
      %p162 = pneg %p47
      %p163 = pneg %p44
      %p164 = pneg %p68
      %p165 = pneg %p65
      %p166 = pneg %p89
      %p167 = pneg %p86
      %p168 = pneg %p117
      %p169 = pneg %p114
      %s170 = smul.u32 32, %s19
      %p171 = scmp.lt.s32.totalorder %s18, 1
      %s172 = scalar_select %p171, %s18, 1
      %p173 = scmp.lt.s32.totalorder %s170, 31
      %s174 = scalar_select %p173, %s170, 31
      %s175 = smul.addr %s172, 32
      %s176 = sadd.s32 %s174, %s175
      %s177 = smul.addr %s176, 8
      %s178 = scalar_lea.vmem %s3, %s177
      %p179 = scmp.lt.s32.totalorder %s18, 1
      %s180 = scalar_select %p179, %s18, 1
      %s181 = smul.addr %s180, 54
      %s182 = smul.addr %s181, 8
      %s183 = scalar_lea.vmem %s0, %s182
      %s184 = smul.u32 32, %s19
      %p185 = scmp.lt.s32.totalorder %s18, 1
      %s186 = scalar_select %p185, %s18, 1
      %p187 = scmp.lt.s32.totalorder %s184, 31
      %s188 = scalar_select %p187, %s184, 31
      %s189 = smul.addr %s186, 32
      %s190 = sadd.s32 %s188, %s189
      %s191 = smul.addr %s190, 8
      %s192 = scalar_lea.vmem %s3, %s191
      %s193 = smul.u32 32, %s19
      %s194 = smul.u32 %s19, 16
      %s195 = smul.u32 %s194, 24
      %s196 = scalar_lea.vmem %s183, %s195
      %v197 = vld [vmem:[%s196] sm:$0xff]
      %v198 = vld [vmem:[%s196 + $0x8] sm:$0xff]
      %v199 = vld [vmem:[%s196 + $0x18] sm:$0xff]
      %v200 = vld [vmem:[%s196 + $0x20] sm:$0xff]
      %v201 = vld [vmem:[%s196 + $0x30] sm:$0xff]
      %v202 = vld [vmem:[%s196 + $0x38] sm:$0xff]
      %v203 = vld [vmem:[%s196 + $0x48] sm:$0xff]
      %v204 = vld [vmem:[%s196 + $0x50] sm:$0xff]
      %v205 = vld [vmem:[%s196 + $0x60] sm:$0xff]
      %v206 = vld [vmem:[%s196 + $0x68] sm:$0xff]
      %v207 = vld [vmem:[%s196 + $0x78] sm:$0xff]
      %v208 = vld [vmem:[%s196 + $0x80] sm:$0xff]
      %v209 = vld [vmem:[%s196 + $0x90] sm:$0xff]
      %v210 = vld [vmem:[%s196 + $0x98] sm:$0xff]
      %v211 = vld [vmem:[%s196 + $0xa8] sm:$0xff]
      %v212 = vld [vmem:[%s196 + $0xb0] sm:$0xff]
      %v213 = vld [vmem:[%s196 + $0xc0] sm:$0xff]
      %v214 = vld [vmem:[%s196 + $0xc8] sm:$0xff]
      %v215 = vld [vmem:[%s196 + $0xd8] sm:$0xff]
      %v216 = vld [vmem:[%s196 + $0xe0] sm:$0xff]
      %v217 = vld [vmem:[%s196 + $0xf0] sm:$0xff]
      %v218 = vld [vmem:[%s196 + $0xf8] sm:$0xff]
      %v219 = vld [vmem:[%s196 + $0x108] sm:$0xff]
      %v220 = vld [vmem:[%s196 + $0x110] sm:$0xff]
      %v221 = vld [vmem:[%s196 + $0x120] sm:$0xff]
      %v222 = vld [vmem:[%s196 + $0x128] sm:$0xff]
      %v223 = vld [vmem:[%s196 + $0x138] sm:$0xff]
      %v224 = vld [vmem:[%s196 + $0x140] sm:$0xff]
      %v225 = vld [vmem:[%s196 + $0x150] sm:$0xff]
      %v226 = vld [vmem:[%s196 + $0x158] sm:$0xff]
      %v227 = vld [vmem:[%s196 + $0x168] sm:$0xff]
      %v228 = vld [vmem:[%s196 + $0x170] sm:$0xff]
      %v229 = vld [vmem:[%s1] sm:$0xff]
      %v230 = vld [vmem:[%s1 + $0x8] sm:$0xff]
      %v231 = vld [vmem:[%s1 + $0x10] sm:$0xff]
      %v232 = vld [vmem:[%s1 + $0x18] sm:$0xff]
      %v233 = vld [vmem:[%s1 + $0x20] sm:$0xff]
      %v234 = vld [vmem:[%s1 + $0x28] sm:$0xff]
      %v235 = vld [vmem:[%s1 + $0x30] sm:$0xff]
      %v236 = vld [vmem:[%s1 + $0x38] sm:$0xff]
      %v237 = vld [vmem:[%s1 + $0x40] sm:$0xff]
      %v238 = vld [vmem:[%s1 + $0x48] sm:$0xff]
      %v239 = vld [vmem:[%s1 + $0x50] sm:$0xff]
      %v240 = vld [vmem:[%s1 + $0x58] sm:$0xff]
      %v241 = vld [vmem:[%s1 + $0x60] sm:$0xff]
      %v242 = vld [vmem:[%s1 + $0x68] sm:$0xff]
      %v243 = vld [vmem:[%s1 + $0x70] sm:$0xff]
      %v244 = vld [vmem:[%s1 + $0x78] sm:$0xff]
      %v245 = vld [vmem:[%s196 + $0x1] sm:$0xff]
      %v246 = vld [vmem:[%s196 + $0x9] sm:$0xff]
      %v247 = vld [vmem:[%s196 + $0x19] sm:$0xff]
      %v248 = vld [vmem:[%s196 + $0x21] sm:$0xff]
      %v249 = vld [vmem:[%s196 + $0x31] sm:$0xff]
      %v250 = vld [vmem:[%s196 + $0x39] sm:$0xff]
      %v251 = vld [vmem:[%s196 + $0x49] sm:$0xff]
      %v252 = vld [vmem:[%s196 + $0x51] sm:$0xff]
      %v253 = vld [vmem:[%s196 + $0x61] sm:$0xff]
      %v254 = vld [vmem:[%s196 + $0x69] sm:$0xff]
      %v255 = vld [vmem:[%s196 + $0x79] sm:$0xff]
      %v256 = vld [vmem:[%s196 + $0x81] sm:$0xff]
      %v257 = vld [vmem:[%s196 + $0x91] sm:$0xff]
      %v258 = vld [vmem:[%s196 + $0x99] sm:$0xff]
      %v259 = vld [vmem:[%s196 + $0xa9] sm:$0xff]
      %v260 = vld [vmem:[%s196 + $0xb1] sm:$0xff]
      %v261 = vld [vmem:[%s196 + $0xc1] sm:$0xff]
      %v262 = vld [vmem:[%s196 + $0xc9] sm:$0xff]
      %v263 = vld [vmem:[%s196 + $0xd9] sm:$0xff]
      %v264 = vld [vmem:[%s196 + $0xe1] sm:$0xff]
      %v265 = vld [vmem:[%s196 + $0xf1] sm:$0xff]
      %v266 = vld [vmem:[%s196 + $0xf9] sm:$0xff]
      %v267 = vld [vmem:[%s196 + $0x109] sm:$0xff]
      %v268 = vld [vmem:[%s196 + $0x111] sm:$0xff]
      %v269 = vld [vmem:[%s196 + $0x121] sm:$0xff]
      %v270 = vld [vmem:[%s196 + $0x129] sm:$0xff]
      %v271 = vld [vmem:[%s196 + $0x139] sm:$0xff]
      %v272 = vld [vmem:[%s196 + $0x141] sm:$0xff]
      %v273 = vld [vmem:[%s196 + $0x151] sm:$0xff]
      %v274 = vld [vmem:[%s196 + $0x159] sm:$0xff]
      %v275 = vld [vmem:[%s196 + $0x169] sm:$0xff]
      %v276 = vld [vmem:[%s196 + $0x171] sm:$0xff]
      %s277 = scalar_lea.vmem %s1, 128
      %v278 = vld [vmem:[%s277] sm:$0xff]
      %v279 = vld [vmem:[%s277 + $0x8] sm:$0xff]
      %v280 = vld [vmem:[%s277 + $0x10] sm:$0xff]
      %v281 = vld [vmem:[%s277 + $0x18] sm:$0xff]
      %v282 = vld [vmem:[%s277 + $0x20] sm:$0xff]
      %v283 = vld [vmem:[%s277 + $0x28] sm:$0xff]
      %v284 = vld [vmem:[%s277 + $0x30] sm:$0xff]
      %v285 = vld [vmem:[%s277 + $0x38] sm:$0xff]
      %v286 = vld [vmem:[%s277 + $0x40] sm:$0xff]
      %v287 = vld [vmem:[%s277 + $0x48] sm:$0xff]
      %v288 = vld [vmem:[%s277 + $0x50] sm:$0xff]
      %v289 = vld [vmem:[%s277 + $0x58] sm:$0xff]
      %v290 = vld [vmem:[%s277 + $0x60] sm:$0xff]
      %v291 = vld [vmem:[%s277 + $0x68] sm:$0xff]
      %v292 = vld [vmem:[%s277 + $0x70] sm:$0xff]
      %v293 = vld [vmem:[%s277 + $0x78] sm:$0xff]
      %294 = vmatpush.msra.mxu0 %v293
      %295 = vmatpush.msra.mxu0 %v292
      %296 = vmatpush.msra.mxu0 %v291
      %297 = vmatpush.msra.mxu0 %v290
      %298 = vmatpush.msra.mxu0 %v289
      %299 = vmatpush.msra.mxu0 %v288
      %300 = vmatpush.msra.mxu0 %v287
      %301 = vmatpush.msra.mxu0 %v286
      %302 = vmatpush.msra.mxu0 %v285
      %303 = vmatpush.msra.mxu0 %v284
      %304 = vmatpush.msra.mxu0 %v283
      %305 = vmatpush.msra.mxu0 %v282
      %306 = vmatpush.msra.mxu0 %v281
      %307 = vmatpush.msra.mxu0 %v280
      %308 = vmatpush.msra.mxu0 %v279
      %309 = vmatpush.msra.mxu0 %v278
      %310 = vmatmul.f32.gmra.mxu0 %v245
      %v311 = vpop.f32.mrf.mxu0
      %v312 = vadd.f32 0.0, %v311
      %313 = vmatmul.f32.gmra.mxu0 %v246
      %v314 = vpop.f32.mrf.mxu0
      %v315 = vadd.f32 0.0, %v314
      %316 = vmatmul.f32.gmra.mxu0 %v247
      %v317 = vpop.f32.mrf.mxu0
      %v318 = vadd.f32 0.0, %v317
      %319 = vmatmul.f32.gmra.mxu0 %v248
      %v320 = vpop.f32.mrf.mxu0
      %v321 = vadd.f32 0.0, %v320
      %322 = vmatmul.f32.gmra.mxu0 %v249
      %v323 = vpop.f32.mrf.mxu0
      %v324 = vadd.f32 0.0, %v323
      %325 = vmatmul.f32.gmra.mxu0 %v250
      %v326 = vpop.f32.mrf.mxu0
      %v327 = vadd.f32 0.0, %v326
      %328 = vmatmul.f32.gmra.mxu0 %v251
      %v329 = vpop.f32.mrf.mxu0
      %v330 = vadd.f32 0.0, %v329
      %331 = vmatmul.f32.gmra.mxu0 %v252
      %v332 = vpop.f32.mrf.mxu0
      %v333 = vadd.f32 0.0, %v332
      %334 = vmatmul.f32.gmra.mxu0 %v253
      %v335 = vpop.f32.mrf.mxu0
      %v336 = vadd.f32 0.0, %v335
      %337 = vmatmul.f32.gmra.mxu0 %v254
      %v338 = vpop.f32.mrf.mxu0
      %v339 = vadd.f32 0.0, %v338
      %340 = vmatmul.f32.gmra.mxu0 %v255
      %v341 = vpop.f32.mrf.mxu0
      %v342 = vadd.f32 0.0, %v341
      %343 = vmatmul.f32.gmra.mxu0 %v256
      %v344 = vpop.f32.mrf.mxu0
      %v345 = vadd.f32 0.0, %v344
      %346 = vmatmul.f32.gmra.mxu0 %v257
      %v347 = vpop.f32.mrf.mxu0
      %v348 = vadd.f32 0.0, %v347
      %349 = vmatmul.f32.gmra.mxu0 %v258
      %v350 = vpop.f32.mrf.mxu0
      %v351 = vadd.f32 0.0, %v350
      %352 = vmatmul.f32.gmra.mxu0 %v259
      %v353 = vpop.f32.mrf.mxu0
      %v354 = vadd.f32 0.0, %v353
      %355 = vmatmul.f32.gmra.mxu0 %v260
      %v356 = vpop.f32.mrf.mxu0
      %v357 = vadd.f32 0.0, %v356
      %358 = vmatmul.f32.gmra.mxu0 %v261
      %v359 = vpop.f32.mrf.mxu0
      %v360 = vadd.f32 0.0, %v359
      %361 = vmatmul.f32.gmra.mxu0 %v262
      %v362 = vpop.f32.mrf.mxu0
      %v363 = vadd.f32 0.0, %v362
      %364 = vmatmul.f32.gmra.mxu0 %v263
      %v365 = vpop.f32.mrf.mxu0
      %v366 = vadd.f32 0.0, %v365
      %367 = vmatmul.f32.gmra.mxu0 %v264
      %v368 = vpop.f32.mrf.mxu0
      %v369 = vadd.f32 0.0, %v368
      %370 = vmatmul.f32.gmra.mxu0 %v265
      %v371 = vpop.f32.mrf.mxu0
      %v372 = vadd.f32 0.0, %v371
      %373 = vmatmul.f32.gmra.mxu0 %v266
      %v374 = vpop.f32.mrf.mxu0
      %v375 = vadd.f32 0.0, %v374
      %376 = vmatmul.f32.gmra.mxu0 %v267
      %v377 = vpop.f32.mrf.mxu0
      %v378 = vadd.f32 0.0, %v377
      %379 = vmatmul.f32.gmra.mxu0 %v268
      %v380 = vpop.f32.mrf.mxu0
      %v381 = vadd.f32 0.0, %v380
      %382 = vmatmul.f32.gmra.mxu0 %v269
      %v383 = vpop.f32.mrf.mxu0
      %v384 = vadd.f32 0.0, %v383
      %385 = vmatmul.f32.gmra.mxu0 %v270
      %v386 = vpop.f32.mrf.mxu0
      %v387 = vadd.f32 0.0, %v386
      %388 = vmatmul.f32.gmra.mxu0 %v271
      %v389 = vpop.f32.mrf.mxu0
      %v390 = vadd.f32 0.0, %v389
      %391 = vmatmul.f32.gmra.mxu0 %v272
      %v392 = vpop.f32.mrf.mxu0
      %v393 = vadd.f32 0.0, %v392
      %394 = vmatmul.f32.gmra.mxu0 %v273
      %v395 = vpop.f32.mrf.mxu0
      %v396 = vadd.f32 0.0, %v395
      %397 = vmatmul.f32.gmra.mxu0 %v274
      %v398 = vpop.f32.mrf.mxu0
      %v399 = vadd.f32 0.0, %v398
      %400 = vmatmul.f32.gmra.mxu0 %v275
      %v401 = vpop.f32.mrf.mxu0
      %v402 = vadd.f32 0.0, %v401
      %403 = vmatmul.f32.gmra.mxu0 %v276
      %v404 = vpop.f32.mrf.mxu0
      %v405 = vadd.f32 0.0, %v404
      %406 = vdwg.mxu0
      %407 = vmatpush.msra.mxu0 %v244
      %408 = vmatpush.msra.mxu0 %v243
      %409 = vmatpush.msra.mxu0 %v242
      %410 = vmatpush.msra.mxu0 %v241
      %411 = vmatpush.msra.mxu0 %v240
      %412 = vmatpush.msra.mxu0 %v239
      %413 = vmatpush.msra.mxu0 %v238
      %414 = vmatpush.msra.mxu0 %v237
      %415 = vmatpush.msra.mxu0 %v236
      %416 = vmatpush.msra.mxu0 %v235
      %417 = vmatpush.msra.mxu0 %v234
      %418 = vmatpush.msra.mxu0 %v233
      %419 = vmatpush.msra.mxu0 %v232
      %420 = vmatpush.msra.mxu0 %v231
      %421 = vmatpush.msra.mxu0 %v230
      %422 = vmatpush.msra.mxu0 %v229
      %423 = vmatmul.f32.gmra.mxu0 %v197
      %v424 = vpop.f32.mrf.mxu0
      %v425 = vadd.f32 %v312, %v424
      %426 = vmatmul.f32.gmra.mxu0 %v198
      %v427 = vpop.f32.mrf.mxu0
      %v428 = vadd.f32 %v315, %v427
      %429 = vmatmul.f32.gmra.mxu0 %v199
      %v430 = vpop.f32.mrf.mxu0
      %v431 = vadd.f32 %v318, %v430
      %432 = vmatmul.f32.gmra.mxu0 %v200
      %v433 = vpop.f32.mrf.mxu0
      %v434 = vadd.f32 %v321, %v433
      %435 = vmatmul.f32.gmra.mxu0 %v201
      %v436 = vpop.f32.mrf.mxu0
      %v437 = vadd.f32 %v324, %v436
      %438 = vmatmul.f32.gmra.mxu0 %v202
      %v439 = vpop.f32.mrf.mxu0
      %v440 = vadd.f32 %v327, %v439
      %441 = vmatmul.f32.gmra.mxu0 %v203
      %v442 = vpop.f32.mrf.mxu0
      %v443 = vadd.f32 %v330, %v442
      %444 = vmatmul.f32.gmra.mxu0 %v204
      %v445 = vpop.f32.mrf.mxu0
      %v446 = vadd.f32 %v333, %v445
      %447 = vmatmul.f32.gmra.mxu0 %v205
      %v448 = vpop.f32.mrf.mxu0
      %v449 = vadd.f32 %v336, %v448
      %450 = vmatmul.f32.gmra.mxu0 %v206
      %v451 = vpop.f32.mrf.mxu0
      %v452 = vadd.f32 %v339, %v451
      %453 = vmatmul.f32.gmra.mxu0 %v207
      %v454 = vpop.f32.mrf.mxu0
      %v455 = vadd.f32 %v342, %v454
      %456 = vmatmul.f32.gmra.mxu0 %v208
      %v457 = vpop.f32.mrf.mxu0
      %v458 = vadd.f32 %v345, %v457
      %459 = vmatmul.f32.gmra.mxu0 %v209
      %v460 = vpop.f32.mrf.mxu0
      %v461 = vadd.f32 %v348, %v460
      %462 = vmatmul.f32.gmra.mxu0 %v210
      %v463 = vpop.f32.mrf.mxu0
      %v464 = vadd.f32 %v351, %v463
      %465 = vmatmul.f32.gmra.mxu0 %v211
      %v466 = vpop.f32.mrf.mxu0
      %v467 = vadd.f32 %v354, %v466
      %468 = vmatmul.f32.gmra.mxu0 %v212
      %v469 = vpop.f32.mrf.mxu0
      %v470 = vadd.f32 %v357, %v469
      %471 = vmatmul.f32.gmra.mxu0 %v213
      %v472 = vpop.f32.mrf.mxu0
      %v473 = vadd.f32 %v360, %v472
      %474 = vmatmul.f32.gmra.mxu0 %v214
      %v475 = vpop.f32.mrf.mxu0
      %v476 = vadd.f32 %v363, %v475
      %477 = vmatmul.f32.gmra.mxu0 %v215
      %v478 = vpop.f32.mrf.mxu0
      %v479 = vadd.f32 %v366, %v478
      %480 = vmatmul.f32.gmra.mxu0 %v216
      %v481 = vpop.f32.mrf.mxu0
      %v482 = vadd.f32 %v369, %v481
      %483 = vmatmul.f32.gmra.mxu0 %v217
      %v484 = vpop.f32.mrf.mxu0
      %v485 = vadd.f32 %v372, %v484
      %486 = vmatmul.f32.gmra.mxu0 %v218
      %v487 = vpop.f32.mrf.mxu0
      %v488 = vadd.f32 %v375, %v487
      %489 = vmatmul.f32.gmra.mxu0 %v219
      %v490 = vpop.f32.mrf.mxu0
      %v491 = vadd.f32 %v378, %v490
      %492 = vmatmul.f32.gmra.mxu0 %v220
      %v493 = vpop.f32.mrf.mxu0
      %v494 = vadd.f32 %v381, %v493
      %495 = vmatmul.f32.gmra.mxu0 %v221
      %v496 = vpop.f32.mrf.mxu0
      %v497 = vadd.f32 %v384, %v496
      %498 = vmatmul.f32.gmra.mxu0 %v222
      %v499 = vpop.f32.mrf.mxu0
      %v500 = vadd.f32 %v387, %v499
      %501 = vmatmul.f32.gmra.mxu0 %v223
      %v502 = vpop.f32.mrf.mxu0
      %v503 = vadd.f32 %v390, %v502
      %504 = vmatmul.f32.gmra.mxu0 %v224
      %v505 = vpop.f32.mrf.mxu0
      %v506 = vadd.f32 %v393, %v505
      %507 = vmatmul.f32.gmra.mxu0 %v225
      %v508 = vpop.f32.mrf.mxu0
      %v509 = vadd.f32 %v396, %v508
      %510 = vmatmul.f32.gmra.mxu0 %v226
      %v511 = vpop.f32.mrf.mxu0
      %v512 = vadd.f32 %v399, %v511
      %513 = vmatmul.f32.gmra.mxu0 %v227
      %v514 = vpop.f32.mrf.mxu0
      %v515 = vadd.f32 %v402, %v514
      %516 = vmatmul.f32.gmra.mxu0 %v228
      %v517 = vpop.f32.mrf.mxu0
      %v518 = vadd.f32 %v405, %v517
      %519 = vdwg.mxu0
      %v520 = vld [vmem:[%s196 + $0x2] sm:$0xff]
      %v521 = vld [vmem:[%s196 + $0xa] sm:$0xff]
      %v522 = vld [vmem:[%s196 + $0x1a] sm:$0xff]
      %v523 = vld [vmem:[%s196 + $0x22] sm:$0xff]
      %v524 = vld [vmem:[%s196 + $0x32] sm:$0xff]
      %v525 = vld [vmem:[%s196 + $0x3a] sm:$0xff]
      %v526 = vld [vmem:[%s196 + $0x4a] sm:$0xff]
      %v527 = vld [vmem:[%s196 + $0x52] sm:$0xff]
      %v528 = vld [vmem:[%s196 + $0x62] sm:$0xff]
      %v529 = vld [vmem:[%s196 + $0x6a] sm:$0xff]
      %v530 = vld [vmem:[%s196 + $0x7a] sm:$0xff]
      %v531 = vld [vmem:[%s196 + $0x82] sm:$0xff]
      %v532 = vld [vmem:[%s196 + $0x92] sm:$0xff]
      %v533 = vld [vmem:[%s196 + $0x9a] sm:$0xff]
      %v534 = vld [vmem:[%s196 + $0xaa] sm:$0xff]
      %v535 = vld [vmem:[%s196 + $0xb2] sm:$0xff]
      %v536 = vld [vmem:[%s196 + $0xc2] sm:$0xff]
      %v537 = vld [vmem:[%s196 + $0xca] sm:$0xff]
      %v538 = vld [vmem:[%s196 + $0xda] sm:$0xff]
      %v539 = vld [vmem:[%s196 + $0xe2] sm:$0xff]
      %v540 = vld [vmem:[%s196 + $0xf2] sm:$0xff]
      %v541 = vld [vmem:[%s196 + $0xfa] sm:$0xff]
      %v542 = vld [vmem:[%s196 + $0x10a] sm:$0xff]
      %v543 = vld [vmem:[%s196 + $0x112] sm:$0xff]
      %v544 = vld [vmem:[%s196 + $0x122] sm:$0xff]
      %v545 = vld [vmem:[%s196 + $0x12a] sm:$0xff]
      %v546 = vld [vmem:[%s196 + $0x13a] sm:$0xff]
      %v547 = vld [vmem:[%s196 + $0x142] sm:$0xff]
      %v548 = vld [vmem:[%s196 + $0x152] sm:$0xff]
      %v549 = vld [vmem:[%s196 + $0x15a] sm:$0xff]
      %v550 = vld [vmem:[%s196 + $0x16a] sm:$0xff]
      %v551 = vld [vmem:[%s196 + $0x172] sm:$0xff]
      %s552 = scalar_lea.vmem %s1, 256
      %v553 = vld [vmem:[%s552] sm:$0xff]
      %v554 = vld [vmem:[%s552 + $0x8] sm:$0xff]
      %v555 = vld [vmem:[%s552 + $0x10] sm:$0xff]
      %v556 = vld [vmem:[%s552 + $0x18] sm:$0xff]
      %v557 = vld [vmem:[%s552 + $0x20] sm:$0xff]
      %v558 = vld [vmem:[%s552 + $0x28] sm:$0xff]
      %v559 = vld [vmem:[%s552 + $0x30] sm:$0xff]
      %v560 = vld [vmem:[%s552 + $0x38] sm:$0xff]
      %v561 = vld [vmem:[%s552 + $0x40] sm:$0xff]
      %v562 = vld [vmem:[%s552 + $0x48] sm:$0xff]
      %v563 = vld [vmem:[%s552 + $0x50] sm:$0xff]
      %v564 = vld [vmem:[%s552 + $0x58] sm:$0xff]
      %v565 = vld [vmem:[%s552 + $0x60] sm:$0xff]
      %v566 = vld [vmem:[%s552 + $0x68] sm:$0xff]
      %v567 = vld [vmem:[%s552 + $0x70] sm:$0xff]
      %v568 = vld [vmem:[%s552 + $0x78] sm:$0xff]
      %569 = vmatpush.msra.mxu0 %v568
      %570 = vmatpush.msra.mxu0 %v567
      %571 = vmatpush.msra.mxu0 %v566
      %572 = vmatpush.msra.mxu0 %v565
      %573 = vmatpush.msra.mxu0 %v564
      %574 = vmatpush.msra.mxu0 %v563
      %575 = vmatpush.msra.mxu0 %v562
      %576 = vmatpush.msra.mxu0 %v561
      %577 = vmatpush.msra.mxu0 %v560
      %578 = vmatpush.msra.mxu0 %v559
      %579 = vmatpush.msra.mxu0 %v558
      %580 = vmatpush.msra.mxu0 %v557
      %581 = vmatpush.msra.mxu0 %v556
      %582 = vmatpush.msra.mxu0 %v555
      %583 = vmatpush.msra.mxu0 %v554
      %584 = vmatpush.msra.mxu0 %v553
      %585 = vmatmul.f32.gmra.mxu0 %v520
      %v586 = vpop.f32.mrf.mxu0
      %v587 = vadd.f32 0.0, %v586
      %588 = vmatmul.f32.gmra.mxu0 %v521
      %v589 = vpop.f32.mrf.mxu0
      %v590 = vadd.f32 0.0, %v589
      %591 = vmatmul.f32.gmra.mxu0 %v522
      %v592 = vpop.f32.mrf.mxu0
      %v593 = vadd.f32 0.0, %v592
      %594 = vmatmul.f32.gmra.mxu0 %v523
      %v595 = vpop.f32.mrf.mxu0
      %v596 = vadd.f32 0.0, %v595
      %597 = vmatmul.f32.gmra.mxu0 %v524
      %v598 = vpop.f32.mrf.mxu0
      %v599 = vadd.f32 0.0, %v598
      %600 = vmatmul.f32.gmra.mxu0 %v525
      %v601 = vpop.f32.mrf.mxu0
      %v602 = vadd.f32 0.0, %v601
      %603 = vmatmul.f32.gmra.mxu0 %v526
      %v604 = vpop.f32.mrf.mxu0
      %v605 = vadd.f32 0.0, %v604
      %606 = vmatmul.f32.gmra.mxu0 %v527
      %v607 = vpop.f32.mrf.mxu0
      %v608 = vadd.f32 0.0, %v607
      %609 = vmatmul.f32.gmra.mxu0 %v528
      %v610 = vpop.f32.mrf.mxu0
      %v611 = vadd.f32 0.0, %v610
      %612 = vmatmul.f32.gmra.mxu0 %v529
      %v613 = vpop.f32.mrf.mxu0
      %v614 = vadd.f32 0.0, %v613
      %615 = vmatmul.f32.gmra.mxu0 %v530
      %v616 = vpop.f32.mrf.mxu0
      %v617 = vadd.f32 0.0, %v616
      %618 = vmatmul.f32.gmra.mxu0 %v531
      %v619 = vpop.f32.mrf.mxu0
      %v620 = vadd.f32 0.0, %v619
      %621 = vmatmul.f32.gmra.mxu0 %v532
      %v622 = vpop.f32.mrf.mxu0
      %v623 = vadd.f32 0.0, %v622
      %624 = vmatmul.f32.gmra.mxu0 %v533
      %v625 = vpop.f32.mrf.mxu0
      %v626 = vadd.f32 0.0, %v625
      %627 = vmatmul.f32.gmra.mxu0 %v534
      %v628 = vpop.f32.mrf.mxu0
      %v629 = vadd.f32 0.0, %v628
      %630 = vmatmul.f32.gmra.mxu0 %v535
      %v631 = vpop.f32.mrf.mxu0
      %v632 = vadd.f32 0.0, %v631
      %633 = vmatmul.f32.gmra.mxu0 %v536
      %v634 = vpop.f32.mrf.mxu0
      %v635 = vadd.f32 0.0, %v634
      %636 = vmatmul.f32.gmra.mxu0 %v537
      %v637 = vpop.f32.mrf.mxu0
      %v638 = vadd.f32 0.0, %v637
      %639 = vmatmul.f32.gmra.mxu0 %v538
      %v640 = vpop.f32.mrf.mxu0
      %v641 = vadd.f32 0.0, %v640
      %642 = vmatmul.f32.gmra.mxu0 %v539
      %v643 = vpop.f32.mrf.mxu0
      %v644 = vadd.f32 0.0, %v643
      %645 = vmatmul.f32.gmra.mxu0 %v540
      %v646 = vpop.f32.mrf.mxu0
      %v647 = vadd.f32 0.0, %v646
      %648 = vmatmul.f32.gmra.mxu0 %v541
      %v649 = vpop.f32.mrf.mxu0
      %v650 = vadd.f32 0.0, %v649
      %651 = vmatmul.f32.gmra.mxu0 %v542
      %v652 = vpop.f32.mrf.mxu0
      %v653 = vadd.f32 0.0, %v652
      %654 = vmatmul.f32.gmra.mxu0 %v543
      %v655 = vpop.f32.mrf.mxu0
      %v656 = vadd.f32 0.0, %v655
      %657 = vmatmul.f32.gmra.mxu0 %v544
      %v658 = vpop.f32.mrf.mxu0
      %v659 = vadd.f32 0.0, %v658
      %660 = vmatmul.f32.gmra.mxu0 %v545
      %v661 = vpop.f32.mrf.mxu0
      %v662 = vadd.f32 0.0, %v661
      %663 = vmatmul.f32.gmra.mxu0 %v546
      %v664 = vpop.f32.mrf.mxu0
      %v665 = vadd.f32 0.0, %v664
      %666 = vmatmul.f32.gmra.mxu0 %v547
      %v667 = vpop.f32.mrf.mxu0
      %v668 = vadd.f32 0.0, %v667
      %669 = vmatmul.f32.gmra.mxu0 %v548
      %v670 = vpop.f32.mrf.mxu0
      %v671 = vadd.f32 0.0, %v670
      %672 = vmatmul.f32.gmra.mxu0 %v549
      %v673 = vpop.f32.mrf.mxu0
      %v674 = vadd.f32 0.0, %v673
      %675 = vmatmul.f32.gmra.mxu0 %v550
      %v676 = vpop.f32.mrf.mxu0
      %v677 = vadd.f32 0.0, %v676
      %678 = vmatmul.f32.gmra.mxu0 %v551
      %v679 = vpop.f32.mrf.mxu0
      %v680 = vadd.f32 0.0, %v679
      %681 = vdwg.mxu0
      %v682 = vadd.f32 %v425, %v587
      %v683 = vadd.f32 %v428, %v590
      %v684 = vadd.f32 %v431, %v593
      %v685 = vadd.f32 %v434, %v596
      %v686 = vadd.f32 %v437, %v599
      %v687 = vadd.f32 %v440, %v602
      %v688 = vadd.f32 %v443, %v605
      %v689 = vadd.f32 %v446, %v608
      %v690 = vadd.f32 %v449, %v611
      %v691 = vadd.f32 %v452, %v614
      %v692 = vadd.f32 %v455, %v617
      %v693 = vadd.f32 %v458, %v620
      %v694 = vadd.f32 %v461, %v623
      %v695 = vadd.f32 %v464, %v626
      %v696 = vadd.f32 %v467, %v629
      %v697 = vadd.f32 %v470, %v632
      %v698 = vadd.f32 %v473, %v635
      %v699 = vadd.f32 %v476, %v638
      %v700 = vadd.f32 %v479, %v641
      %v701 = vadd.f32 %v482, %v644
      %v702 = vadd.f32 %v485, %v647
      %v703 = vadd.f32 %v488, %v650
      %v704 = vadd.f32 %v491, %v653
      %v705 = vadd.f32 %v494, %v656
      %v706 = vadd.f32 %v497, %v659
      %v707 = vadd.f32 %v500, %v662
      %v708 = vadd.f32 %v503, %v665
      %v709 = vadd.f32 %v506, %v668
      %v710 = vadd.f32 %v509, %v671
      %v711 = vadd.f32 %v512, %v674
      %v712 = vadd.f32 %v515, %v677
      %v713 = vadd.f32 %v518, %v680
      %s714 = sadd.s32 %s194, 1
      %s715 = smul.u32 %s714, 24
      %s716 = scalar_lea.vmem %s183, %s715
      %v717 = vld [vmem:[%s716] sm:$0xff]
      %v718 = vld [vmem:[%s716 + $0x8] sm:$0xff]
      %v719 = vld [vmem:[%s716 + $0x18] sm:$0xff]
      %v720 = vld [vmem:[%s716 + $0x20] sm:$0xff]
      %v721 = vld [vmem:[%s716 + $0x30] sm:$0xff]
      %v722 = vld [vmem:[%s716 + $0x38] sm:$0xff]
      %v723 = vld [vmem:[%s716 + $0x48] sm:$0xff]
      %v724 = vld [vmem:[%s716 + $0x50] sm:$0xff]
      %v725 = vld [vmem:[%s716 + $0x60] sm:$0xff]
      %v726 = vld [vmem:[%s716 + $0x68] sm:$0xff]
      %v727 = vld [vmem:[%s716 + $0x78] sm:$0xff]
      %v728 = vld [vmem:[%s716 + $0x80] sm:$0xff]
      %v729 = vld [vmem:[%s716 + $0x90] sm:$0xff]
      %v730 = vld [vmem:[%s716 + $0x98] sm:$0xff]
      %v731 = vld [vmem:[%s716 + $0xa8] sm:$0xff]
      %v732 = vld [vmem:[%s716 + $0xb0] sm:$0xff]
      %v733 = vld [vmem:[%s716 + $0xc0] sm:$0xff]
      %v734 = vld [vmem:[%s716 + $0xc8] sm:$0xff]
      %v735 = vld [vmem:[%s716 + $0xd8] sm:$0xff]
      %v736 = vld [vmem:[%s716 + $0xe0] sm:$0xff]
      %v737 = vld [vmem:[%s716 + $0xf0] sm:$0xff]
      %v738 = vld [vmem:[%s716 + $0xf8] sm:$0xff]
      %v739 = vld [vmem:[%s716 + $0x108] sm:$0xff]
      %v740 = vld [vmem:[%s716 + $0x110] sm:$0xff]
      %v741 = vld [vmem:[%s716 + $0x120] sm:$0xff]
      %v742 = vld [vmem:[%s716 + $0x128] sm:$0xff]
      %v743 = vld [vmem:[%s716 + $0x138] sm:$0xff]
      %v744 = vld [vmem:[%s716 + $0x140] sm:$0xff]
      %v745 = vld [vmem:[%s716 + $0x150] sm:$0xff]
      %v746 = vld [vmem:[%s716 + $0x158] sm:$0xff]
      %v747 = vld [vmem:[%s716 + $0x168] sm:$0xff]
      %v748 = vld [vmem:[%s716 + $0x170] sm:$0xff]
      %s749 = scalar_lea.vmem %s1, 384
      %v750 = vld [vmem:[%s749] sm:$0xff]
      %v751 = vld [vmem:[%s749 + $0x8] sm:$0xff]
      %v752 = vld [vmem:[%s749 + $0x10] sm:$0xff]
      %v753 = vld [vmem:[%s749 + $0x18] sm:$0xff]
      %v754 = vld [vmem:[%s749 + $0x20] sm:$0xff]
      %v755 = vld [vmem:[%s749 + $0x28] sm:$0xff]
      %v756 = vld [vmem:[%s749 + $0x30] sm:$0xff]
      %v757 = vld [vmem:[%s749 + $0x38] sm:$0xff]
      %v758 = vld [vmem:[%s749 + $0x40] sm:$0xff]
      %v759 = vld [vmem:[%s749 + $0x48] sm:$0xff]
      %v760 = vld [vmem:[%s749 + $0x50] sm:$0xff]
      %v761 = vld [vmem:[%s749 + $0x58] sm:$0xff]
      %v762 = vld [vmem:[%s749 + $0x60] sm:$0xff]
      %v763 = vld [vmem:[%s749 + $0x68] sm:$0xff]
      %v764 = vld [vmem:[%s749 + $0x70] sm:$0xff]
      %v765 = vld [vmem:[%s749 + $0x78] sm:$0xff]
      %766 = vmatpush.msra.mxu0 %v765
      %767 = vmatpush.msra.mxu0 %v764
      %768 = vmatpush.msra.mxu0 %v763
      %769 = vmatpush.msra.mxu0 %v762
      %770 = vmatpush.msra.mxu0 %v761
      %771 = vmatpush.msra.mxu0 %v760
      %772 = vmatpush.msra.mxu0 %v759
      %773 = vmatpush.msra.mxu0 %v758
      %774 = vmatpush.msra.mxu0 %v757
      %775 = vmatpush.msra.mxu0 %v756
      %776 = vmatpush.msra.mxu0 %v755
      %777 = vmatpush.msra.mxu0 %v754
      %778 = vmatpush.msra.mxu0 %v753
      %779 = vmatpush.msra.mxu0 %v752
      %780 = vmatpush.msra.mxu0 %v751
      %781 = vmatpush.msra.mxu0 %v750
      %782 = vmatmul.f32.gmra.mxu0 %v717
      %v783 = vpop.f32.mrf.mxu0
      %v784 = vadd.f32 0.0, %v783
      %785 = vmatmul.f32.gmra.mxu0 %v718
      %v786 = vpop.f32.mrf.mxu0
      %v787 = vadd.f32 0.0, %v786
      %788 = vmatmul.f32.gmra.mxu0 %v719
      %v789 = vpop.f32.mrf.mxu0
      %v790 = vadd.f32 0.0, %v789
      %791 = vmatmul.f32.gmra.mxu0 %v720
      %v792 = vpop.f32.mrf.mxu0
      %v793 = vadd.f32 0.0, %v792
      %794 = vmatmul.f32.gmra.mxu0 %v721
      %v795 = vpop.f32.mrf.mxu0
      %v796 = vadd.f32 0.0, %v795
      %797 = vmatmul.f32.gmra.mxu0 %v722
      %v798 = vpop.f32.mrf.mxu0
      %v799 = vadd.f32 0.0, %v798
      %800 = vmatmul.f32.gmra.mxu0 %v723
      %v801 = vpop.f32.mrf.mxu0
      %v802 = vadd.f32 0.0, %v801
      %803 = vmatmul.f32.gmra.mxu0 %v724
      %v804 = vpop.f32.mrf.mxu0
      %v805 = vadd.f32 0.0, %v804
      %806 = vmatmul.f32.gmra.mxu0 %v725
      %v807 = vpop.f32.mrf.mxu0
      %v808 = vadd.f32 0.0, %v807
      %809 = vmatmul.f32.gmra.mxu0 %v726
      %v810 = vpop.f32.mrf.mxu0
      %v811 = vadd.f32 0.0, %v810
      %812 = vmatmul.f32.gmra.mxu0 %v727
      %v813 = vpop.f32.mrf.mxu0
      %v814 = vadd.f32 0.0, %v813
      %815 = vmatmul.f32.gmra.mxu0 %v728
      %v816 = vpop.f32.mrf.mxu0
      %v817 = vadd.f32 0.0, %v816
      %818 = vmatmul.f32.gmra.mxu0 %v729
      %v819 = vpop.f32.mrf.mxu0
      %v820 = vadd.f32 0.0, %v819
      %821 = vmatmul.f32.gmra.mxu0 %v730
      %v822 = vpop.f32.mrf.mxu0
      %v823 = vadd.f32 0.0, %v822
      %824 = vmatmul.f32.gmra.mxu0 %v731
      %v825 = vpop.f32.mrf.mxu0
      %v826 = vadd.f32 0.0, %v825
      %827 = vmatmul.f32.gmra.mxu0 %v732
      %v828 = vpop.f32.mrf.mxu0
      %v829 = vadd.f32 0.0, %v828
      %830 = vmatmul.f32.gmra.mxu0 %v733
      %v831 = vpop.f32.mrf.mxu0
      %v832 = vadd.f32 0.0, %v831
      %833 = vmatmul.f32.gmra.mxu0 %v734
      %v834 = vpop.f32.mrf.mxu0
      %v835 = vadd.f32 0.0, %v834
      %836 = vmatmul.f32.gmra.mxu0 %v735
      %v837 = vpop.f32.mrf.mxu0
      %v838 = vadd.f32 0.0, %v837
      %839 = vmatmul.f32.gmra.mxu0 %v736
      %v840 = vpop.f32.mrf.mxu0
      %v841 = vadd.f32 0.0, %v840
      %842 = vmatmul.f32.gmra.mxu0 %v737
      %v843 = vpop.f32.mrf.mxu0
      %v844 = vadd.f32 0.0, %v843
      %845 = vmatmul.f32.gmra.mxu0 %v738
      %v846 = vpop.f32.mrf.mxu0
      %v847 = vadd.f32 0.0, %v846
      %848 = vmatmul.f32.gmra.mxu0 %v739
      %v849 = vpop.f32.mrf.mxu0
      %v850 = vadd.f32 0.0, %v849
      %851 = vmatmul.f32.gmra.mxu0 %v740
      %v852 = vpop.f32.mrf.mxu0
      %v853 = vadd.f32 0.0, %v852
      %854 = vmatmul.f32.gmra.mxu0 %v741
      %v855 = vpop.f32.mrf.mxu0
      %v856 = vadd.f32 0.0, %v855
      %857 = vmatmul.f32.gmra.mxu0 %v742
      %v858 = vpop.f32.mrf.mxu0
      %v859 = vadd.f32 0.0, %v858
      %860 = vmatmul.f32.gmra.mxu0 %v743
      %v861 = vpop.f32.mrf.mxu0
      %v862 = vadd.f32 0.0, %v861
      %863 = vmatmul.f32.gmra.mxu0 %v744
      %v864 = vpop.f32.mrf.mxu0
      %v865 = vadd.f32 0.0, %v864
      %866 = vmatmul.f32.gmra.mxu0 %v745
      %v867 = vpop.f32.mrf.mxu0
      %v868 = vadd.f32 0.0, %v867
      %869 = vmatmul.f32.gmra.mxu0 %v746
      %v870 = vpop.f32.mrf.mxu0
      %v871 = vadd.f32 0.0, %v870
      %872 = vmatmul.f32.gmra.mxu0 %v747
      %v873 = vpop.f32.mrf.mxu0
      %v874 = vadd.f32 0.0, %v873
      %875 = vmatmul.f32.gmra.mxu0 %v748
      %v876 = vpop.f32.mrf.mxu0
      %v877 = vadd.f32 0.0, %v876
      %878 = vdwg.mxu0
      %v879 = vadd.f32 %v682, %v784
      %v880 = vadd.f32 %v683, %v787
      %v881 = vadd.f32 %v684, %v790
      %v882 = vadd.f32 %v685, %v793
      %v883 = vadd.f32 %v686, %v796
      %v884 = vadd.f32 %v687, %v799
      %v885 = vadd.f32 %v688, %v802
      %v886 = vadd.f32 %v689, %v805
      %v887 = vadd.f32 %v690, %v808
      %v888 = vadd.f32 %v691, %v811
      %v889 = vadd.f32 %v692, %v814
      %v890 = vadd.f32 %v693, %v817
      %v891 = vadd.f32 %v694, %v820
      %v892 = vadd.f32 %v695, %v823
      %v893 = vadd.f32 %v696, %v826
      %v894 = vadd.f32 %v697, %v829
      %v895 = vadd.f32 %v698, %v832
      %v896 = vadd.f32 %v699, %v835
      %v897 = vadd.f32 %v700, %v838
      %v898 = vadd.f32 %v701, %v841
      %v899 = vadd.f32 %v702, %v844
      %v900 = vadd.f32 %v703, %v847
      %v901 = vadd.f32 %v704, %v850
      %v902 = vadd.f32 %v705, %v853
      %v903 = vadd.f32 %v706, %v856
      %v904 = vadd.f32 %v707, %v859
      %v905 = vadd.f32 %v708, %v862
      %v906 = vadd.f32 %v709, %v865
      %v907 = vadd.f32 %v710, %v868
      %v908 = vadd.f32 %v711, %v871
      %v909 = vadd.f32 %v712, %v874
      %v910 = vadd.f32 %v713, %v877
      %v911 = vld [vmem:[%s716 + $0x1] sm:$0xff]
      %v912 = vld [vmem:[%s716 + $0x9] sm:$0xff]
      %v913 = vld [vmem:[%s716 + $0x19] sm:$0xff]
      %v914 = vld [vmem:[%s716 + $0x21] sm:$0xff]
      %v915 = vld [vmem:[%s716 + $0x31] sm:$0xff]
      %v916 = vld [vmem:[%s716 + $0x39] sm:$0xff]
      %v917 = vld [vmem:[%s716 + $0x49] sm:$0xff]
      %v918 = vld [vmem:[%s716 + $0x51] sm:$0xff]
      %v919 = vld [vmem:[%s716 + $0x61] sm:$0xff]
      %v920 = vld [vmem:[%s716 + $0x69] sm:$0xff]
      %v921 = vld [vmem:[%s716 + $0x79] sm:$0xff]
      %v922 = vld [vmem:[%s716 + $0x81] sm:$0xff]
      %v923 = vld [vmem:[%s716 + $0x91] sm:$0xff]
      %v924 = vld [vmem:[%s716 + $0x99] sm:$0xff]
      %v925 = vld [vmem:[%s716 + $0xa9] sm:$0xff]
      %v926 = vld [vmem:[%s716 + $0xb1] sm:$0xff]
      %v927 = vld [vmem:[%s716 + $0xc1] sm:$0xff]
      %v928 = vld [vmem:[%s716 + $0xc9] sm:$0xff]
      %v929 = vld [vmem:[%s716 + $0xd9] sm:$0xff]
      %v930 = vld [vmem:[%s716 + $0xe1] sm:$0xff]
      %v931 = vld [vmem:[%s716 + $0xf1] sm:$0xff]
      %v932 = vld [vmem:[%s716 + $0xf9] sm:$0xff]
      %v933 = vld [vmem:[%s716 + $0x109] sm:$0xff]
      %v934 = vld [vmem:[%s716 + $0x111] sm:$0xff]
      %v935 = vld [vmem:[%s716 + $0x121] sm:$0xff]
      %v936 = vld [vmem:[%s716 + $0x129] sm:$0xff]
      %v937 = vld [vmem:[%s716 + $0x139] sm:$0xff]
      %v938 = vld [vmem:[%s716 + $0x141] sm:$0xff]
      %v939 = vld [vmem:[%s716 + $0x151] sm:$0xff]
      %v940 = vld [vmem:[%s716 + $0x159] sm:$0xff]
      %v941 = vld [vmem:[%s716 + $0x169] sm:$0xff]
      %v942 = vld [vmem:[%s716 + $0x171] sm:$0xff]
      %s943 = scalar_lea.vmem %s1, 512
      %v944 = vld [vmem:[%s943] sm:$0xff]
      %v945 = vld [vmem:[%s943 + $0x8] sm:$0xff]
      %v946 = vld [vmem:[%s943 + $0x10] sm:$0xff]
      %v947 = vld [vmem:[%s943 + $0x18] sm:$0xff]
      %v948 = vld [vmem:[%s943 + $0x20] sm:$0xff]
      %v949 = vld [vmem:[%s943 + $0x28] sm:$0xff]
      %v950 = vld [vmem:[%s943 + $0x30] sm:$0xff]
      %v951 = vld [vmem:[%s943 + $0x38] sm:$0xff]
      %v952 = vld [vmem:[%s943 + $0x40] sm:$0xff]
      %v953 = vld [vmem:[%s943 + $0x48] sm:$0xff]
      %v954 = vld [vmem:[%s943 + $0x50] sm:$0xff]
      %v955 = vld [vmem:[%s943 + $0x58] sm:$0xff]
      %v956 = vld [vmem:[%s943 + $0x60] sm:$0xff]
      %v957 = vld [vmem:[%s943 + $0x68] sm:$0xff]
      %v958 = vld [vmem:[%s943 + $0x70] sm:$0xff]
      %v959 = vld [vmem:[%s943 + $0x78] sm:$0xff]
      %960 = vmatpush.msra.mxu0 %v959
      %961 = vmatpush.msra.mxu0 %v958
      %962 = vmatpush.msra.mxu0 %v957
      %963 = vmatpush.msra.mxu0 %v956
      %964 = vmatpush.msra.mxu0 %v955
      %965 = vmatpush.msra.mxu0 %v954
      %966 = vmatpush.msra.mxu0 %v953
      %967 = vmatpush.msra.mxu0 %v952
      %968 = vmatpush.msra.mxu0 %v951
      %969 = vmatpush.msra.mxu0 %v950
      %970 = vmatpush.msra.mxu0 %v949
      %971 = vmatpush.msra.mxu0 %v948
      %972 = vmatpush.msra.mxu0 %v947
      %973 = vmatpush.msra.mxu0 %v946
      %974 = vmatpush.msra.mxu0 %v945
      %975 = vmatpush.msra.mxu0 %v944
      %976 = vmatmul.f32.gmra.mxu0 %v911
      %v977 = vpop.f32.mrf.mxu0
      %v978 = vadd.f32 0.0, %v977
      %979 = vmatmul.f32.gmra.mxu0 %v912
      %v980 = vpop.f32.mrf.mxu0
      %v981 = vadd.f32 0.0, %v980
      %982 = vmatmul.f32.gmra.mxu0 %v913
      %v983 = vpop.f32.mrf.mxu0
      %v984 = vadd.f32 0.0, %v983
      %985 = vmatmul.f32.gmra.mxu0 %v914
      %v986 = vpop.f32.mrf.mxu0
      %v987 = vadd.f32 0.0, %v986
      %988 = vmatmul.f32.gmra.mxu0 %v915
      %v989 = vpop.f32.mrf.mxu0
      %v990 = vadd.f32 0.0, %v989
      %991 = vmatmul.f32.gmra.mxu0 %v916
      %v992 = vpop.f32.mrf.mxu0
      %v993 = vadd.f32 0.0, %v992
      %994 = vmatmul.f32.gmra.mxu0 %v917
      %v995 = vpop.f32.mrf.mxu0
      %v996 = vadd.f32 0.0, %v995
      %997 = vmatmul.f32.gmra.mxu0 %v918
      %v998 = vpop.f32.mrf.mxu0
      %v999 = vadd.f32 0.0, %v998
      %1000 = vmatmul.f32.gmra.mxu0 %v919
      %v1001 = vpop.f32.mrf.mxu0
      %v1002 = vadd.f32 0.0, %v1001
      %1003 = vmatmul.f32.gmra.mxu0 %v920
      %v1004 = vpop.f32.mrf.mxu0
      %v1005 = vadd.f32 0.0, %v1004
      %1006 = vmatmul.f32.gmra.mxu0 %v921
      %v1007 = vpop.f32.mrf.mxu0
      %v1008 = vadd.f32 0.0, %v1007
      %1009 = vmatmul.f32.gmra.mxu0 %v922
      %v1010 = vpop.f32.mrf.mxu0
      %v1011 = vadd.f32 0.0, %v1010
      %1012 = vmatmul.f32.gmra.mxu0 %v923
      %v1013 = vpop.f32.mrf.mxu0
      %v1014 = vadd.f32 0.0, %v1013
      %1015 = vmatmul.f32.gmra.mxu0 %v924
      %v1016 = vpop.f32.mrf.mxu0
      %v1017 = vadd.f32 0.0, %v1016
      %1018 = vmatmul.f32.gmra.mxu0 %v925
      %v1019 = vpop.f32.mrf.mxu0
      %v1020 = vadd.f32 0.0, %v1019
      %1021 = vmatmul.f32.gmra.mxu0 %v926
      %v1022 = vpop.f32.mrf.mxu0
      %v1023 = vadd.f32 0.0, %v1022
      %1024 = vmatmul.f32.gmra.mxu0 %v927
      %v1025 = vpop.f32.mrf.mxu0
      %v1026 = vadd.f32 0.0, %v1025
      %1027 = vmatmul.f32.gmra.mxu0 %v928
      %v1028 = vpop.f32.mrf.mxu0
      %v1029 = vadd.f32 0.0, %v1028
      %1030 = vmatmul.f32.gmra.mxu0 %v929
      %v1031 = vpop.f32.mrf.mxu0
      %v1032 = vadd.f32 0.0, %v1031
      %1033 = vmatmul.f32.gmra.mxu0 %v930
      %v1034 = vpop.f32.mrf.mxu0
      %v1035 = vadd.f32 0.0, %v1034
      %1036 = vmatmul.f32.gmra.mxu0 %v931
      %v1037 = vpop.f32.mrf.mxu0
      %v1038 = vadd.f32 0.0, %v1037
      %1039 = vmatmul.f32.gmra.mxu0 %v932
      %v1040 = vpop.f32.mrf.mxu0
      %v1041 = vadd.f32 0.0, %v1040
      %1042 = vmatmul.f32.gmra.mxu0 %v933
      %v1043 = vpop.f32.mrf.mxu0
      %v1044 = vadd.f32 0.0, %v1043
      %1045 = vmatmul.f32.gmra.mxu0 %v934
      %v1046 = vpop.f32.mrf.mxu0
      %v1047 = vadd.f32 0.0, %v1046
      %1048 = vmatmul.f32.gmra.mxu0 %v935
      %v1049 = vpop.f32.mrf.mxu0
      %v1050 = vadd.f32 0.0, %v1049
      %1051 = vmatmul.f32.gmra.mxu0 %v936
      %v1052 = vpop.f32.mrf.mxu0
      %v1053 = vadd.f32 0.0, %v1052
      %1054 = vmatmul.f32.gmra.mxu0 %v937
      %v1055 = vpop.f32.mrf.mxu0
      %v1056 = vadd.f32 0.0, %v1055
      %1057 = vmatmul.f32.gmra.mxu0 %v938
      %v1058 = vpop.f32.mrf.mxu0
      %v1059 = vadd.f32 0.0, %v1058
      %1060 = vmatmul.f32.gmra.mxu0 %v939
      %v1061 = vpop.f32.mrf.mxu0
      %v1062 = vadd.f32 0.0, %v1061
      %1063 = vmatmul.f32.gmra.mxu0 %v940
      %v1064 = vpop.f32.mrf.mxu0
      %v1065 = vadd.f32 0.0, %v1064
      %1066 = vmatmul.f32.gmra.mxu0 %v941
      %v1067 = vpop.f32.mrf.mxu0
      %v1068 = vadd.f32 0.0, %v1067
      %1069 = vmatmul.f32.gmra.mxu0 %v942
      %v1070 = vpop.f32.mrf.mxu0
      %v1071 = vadd.f32 0.0, %v1070
      %1072 = vdwg.mxu0
      %v1073 = vadd.f32 %v879, %v978
      %v1074 = vadd.f32 %v880, %v981
      %v1075 = vadd.f32 %v881, %v984
      %v1076 = vadd.f32 %v882, %v987
      %v1077 = vadd.f32 %v883, %v990
      %v1078 = vadd.f32 %v884, %v993
      %v1079 = vadd.f32 %v885, %v996
      %v1080 = vadd.f32 %v886, %v999
      %v1081 = vadd.f32 %v887, %v1002
      %v1082 = vadd.f32 %v888, %v1005
      %v1083 = vadd.f32 %v889, %v1008
      %v1084 = vadd.f32 %v890, %v1011
      %v1085 = vadd.f32 %v891, %v1014
      %v1086 = vadd.f32 %v892, %v1017
      %v1087 = vadd.f32 %v893, %v1020
      %v1088 = vadd.f32 %v894, %v1023
      %v1089 = vadd.f32 %v895, %v1026
      %v1090 = vadd.f32 %v896, %v1029
      %v1091 = vadd.f32 %v897, %v1032
      %v1092 = vadd.f32 %v898, %v1035
      %v1093 = vadd.f32 %v899, %v1038
      %v1094 = vadd.f32 %v900, %v1041
      %v1095 = vadd.f32 %v901, %v1044
      %v1096 = vadd.f32 %v902, %v1047
      %v1097 = vadd.f32 %v903, %v1050
      %v1098 = vadd.f32 %v904, %v1053
      %v1099 = vadd.f32 %v905, %v1056
      %v1100 = vadd.f32 %v906, %v1059
      %v1101 = vadd.f32 %v907, %v1062
      %v1102 = vadd.f32 %v908, %v1065
      %v1103 = vadd.f32 %v909, %v1068
      %v1104 = vadd.f32 %v910, %v1071
      %v1105 = vld [vmem:[%s716 + $0x2] sm:$0xff]
      %v1106 = vld [vmem:[%s716 + $0xa] sm:$0xff]
      %v1107 = vld [vmem:[%s716 + $0x1a] sm:$0xff]
      %v1108 = vld [vmem:[%s716 + $0x22] sm:$0xff]
      %v1109 = vld [vmem:[%s716 + $0x32] sm:$0xff]
      %v1110 = vld [vmem:[%s716 + $0x3a] sm:$0xff]
      %v1111 = vld [vmem:[%s716 + $0x4a] sm:$0xff]
      %v1112 = vld [vmem:[%s716 + $0x52] sm:$0xff]
      %v1113 = vld [vmem:[%s716 + $0x62] sm:$0xff]
      %v1114 = vld [vmem:[%s716 + $0x6a] sm:$0xff]
      %v1115 = vld [vmem:[%s716 + $0x7a] sm:$0xff]
      %v1116 = vld [vmem:[%s716 + $0x82] sm:$0xff]
      %v1117 = vld [vmem:[%s716 + $0x92] sm:$0xff]
      %v1118 = vld [vmem:[%s716 + $0x9a] sm:$0xff]
      %v1119 = vld [vmem:[%s716 + $0xaa] sm:$0xff]
      %v1120 = vld [vmem:[%s716 + $0xb2] sm:$0xff]
      %v1121 = vld [vmem:[%s716 + $0xc2] sm:$0xff]
      %v1122 = vld [vmem:[%s716 + $0xca] sm:$0xff]
      %v1123 = vld [vmem:[%s716 + $0xda] sm:$0xff]
      %v1124 = vld [vmem:[%s716 + $0xe2] sm:$0xff]
      %v1125 = vld [vmem:[%s716 + $0xf2] sm:$0xff]
      %v1126 = vld [vmem:[%s716 + $0xfa] sm:$0xff]
      %v1127 = vld [vmem:[%s716 + $0x10a] sm:$0xff]
      %v1128 = vld [vmem:[%s716 + $0x112] sm:$0xff]
      %v1129 = vld [vmem:[%s716 + $0x122] sm:$0xff]
      %v1130 = vld [vmem:[%s716 + $0x12a] sm:$0xff]
      %v1131 = vld [vmem:[%s716 + $0x13a] sm:$0xff]
      %v1132 = vld [vmem:[%s716 + $0x142] sm:$0xff]
      %v1133 = vld [vmem:[%s716 + $0x152] sm:$0xff]
      %v1134 = vld [vmem:[%s716 + $0x15a] sm:$0xff]
      %v1135 = vld [vmem:[%s716 + $0x16a] sm:$0xff]
      %v1136 = vld [vmem:[%s716 + $0x172] sm:$0xff]
      %s1137 = scalar_lea.vmem %s1, 640
      %v1138 = vld [vmem:[%s1137] sm:$0xff]
      %v1139 = vld [vmem:[%s1137 + $0x8] sm:$0xff]
      %v1140 = vld [vmem:[%s1137 + $0x10] sm:$0xff]
      %v1141 = vld [vmem:[%s1137 + $0x18] sm:$0xff]
      %v1142 = vld [vmem:[%s1137 + $0x20] sm:$0xff]
      %v1143 = vld [vmem:[%s1137 + $0x28] sm:$0xff]
      %v1144 = vld [vmem:[%s1137 + $0x30] sm:$0xff]
      %v1145 = vld [vmem:[%s1137 + $0x38] sm:$0xff]
      %v1146 = vld [vmem:[%s1137 + $0x40] sm:$0xff]
      %v1147 = vld [vmem:[%s1137 + $0x48] sm:$0xff]
      %v1148 = vld [vmem:[%s1137 + $0x50] sm:$0xff]
      %v1149 = vld [vmem:[%s1137 + $0x58] sm:$0xff]
      %v1150 = vld [vmem:[%s1137 + $0x60] sm:$0xff]
      %v1151 = vld [vmem:[%s1137 + $0x68] sm:$0xff]
      %v1152 = vld [vmem:[%s1137 + $0x70] sm:$0xff]
      %v1153 = vld [vmem:[%s1137 + $0x78] sm:$0xff]
      %1154 = vmatpush.msra.mxu0 %v1153
      %1155 = vmatpush.msra.mxu0 %v1152
      %1156 = vmatpush.msra.mxu0 %v1151
      %1157 = vmatpush.msra.mxu0 %v1150
      %1158 = vmatpush.msra.mxu0 %v1149
      %1159 = vmatpush.msra.mxu0 %v1148
      %1160 = vmatpush.msra.mxu0 %v1147
      %1161 = vmatpush.msra.mxu0 %v1146
      %1162 = vmatpush.msra.mxu0 %v1145
      %1163 = vmatpush.msra.mxu0 %v1144
      %1164 = vmatpush.msra.mxu0 %v1143
      %1165 = vmatpush.msra.mxu0 %v1142
      %1166 = vmatpush.msra.mxu0 %v1141
      %1167 = vmatpush.msra.mxu0 %v1140
      %1168 = vmatpush.msra.mxu0 %v1139
      %1169 = vmatpush.msra.mxu0 %v1138
      %1170 = vmatmul.f32.gmra.mxu0 %v1105
      %v1171 = vpop.f32.mrf.mxu0
      %v1172 = vadd.f32 0.0, %v1171
      %1173 = vmatmul.f32.gmra.mxu0 %v1106
      %v1174 = vpop.f32.mrf.mxu0
      %v1175 = vadd.f32 0.0, %v1174
      %1176 = vmatmul.f32.gmra.mxu0 %v1107
      %v1177 = vpop.f32.mrf.mxu0
      %v1178 = vadd.f32 0.0, %v1177
      %1179 = vmatmul.f32.gmra.mxu0 %v1108
      %v1180 = vpop.f32.mrf.mxu0
      %v1181 = vadd.f32 0.0, %v1180
      %1182 = vmatmul.f32.gmra.mxu0 %v1109
      %v1183 = vpop.f32.mrf.mxu0
      %v1184 = vadd.f32 0.0, %v1183
      %1185 = vmatmul.f32.gmra.mxu0 %v1110
      %v1186 = vpop.f32.mrf.mxu0
      %v1187 = vadd.f32 0.0, %v1186
      %1188 = vmatmul.f32.gmra.mxu0 %v1111
      %v1189 = vpop.f32.mrf.mxu0
      %v1190 = vadd.f32 0.0, %v1189
      %1191 = vmatmul.f32.gmra.mxu0 %v1112
      %v1192 = vpop.f32.mrf.mxu0
      %v1193 = vadd.f32 0.0, %v1192
      %1194 = vmatmul.f32.gmra.mxu0 %v1113
      %v1195 = vpop.f32.mrf.mxu0
      %v1196 = vadd.f32 0.0, %v1195
      %1197 = vmatmul.f32.gmra.mxu0 %v1114
      %v1198 = vpop.f32.mrf.mxu0
      %v1199 = vadd.f32 0.0, %v1198
      %1200 = vmatmul.f32.gmra.mxu0 %v1115
      %v1201 = vpop.f32.mrf.mxu0
      %v1202 = vadd.f32 0.0, %v1201
      %1203 = vmatmul.f32.gmra.mxu0 %v1116
      %v1204 = vpop.f32.mrf.mxu0
      %v1205 = vadd.f32 0.0, %v1204
      %1206 = vmatmul.f32.gmra.mxu0 %v1117
      %v1207 = vpop.f32.mrf.mxu0
      %v1208 = vadd.f32 0.0, %v1207
      %1209 = vmatmul.f32.gmra.mxu0 %v1118
      %v1210 = vpop.f32.mrf.mxu0
      %v1211 = vadd.f32 0.0, %v1210
      %1212 = vmatmul.f32.gmra.mxu0 %v1119
      %v1213 = vpop.f32.mrf.mxu0
      %v1214 = vadd.f32 0.0, %v1213
      %1215 = vmatmul.f32.gmra.mxu0 %v1120
      %v1216 = vpop.f32.mrf.mxu0
      %v1217 = vadd.f32 0.0, %v1216
      %1218 = vmatmul.f32.gmra.mxu0 %v1121
      %v1219 = vpop.f32.mrf.mxu0
      %v1220 = vadd.f32 0.0, %v1219
      %1221 = vmatmul.f32.gmra.mxu0 %v1122
      %v1222 = vpop.f32.mrf.mxu0
      %v1223 = vadd.f32 0.0, %v1222
      %1224 = vmatmul.f32.gmra.mxu0 %v1123
      %v1225 = vpop.f32.mrf.mxu0
      %v1226 = vadd.f32 0.0, %v1225
      %1227 = vmatmul.f32.gmra.mxu0 %v1124
      %v1228 = vpop.f32.mrf.mxu0
      %v1229 = vadd.f32 0.0, %v1228
      %1230 = vmatmul.f32.gmra.mxu0 %v1125
      %v1231 = vpop.f32.mrf.mxu0
      %v1232 = vadd.f32 0.0, %v1231
      %1233 = vmatmul.f32.gmra.mxu0 %v1126
      %v1234 = vpop.f32.mrf.mxu0
      %v1235 = vadd.f32 0.0, %v1234
      %1236 = vmatmul.f32.gmra.mxu0 %v1127
      %v1237 = vpop.f32.mrf.mxu0
      %v1238 = vadd.f32 0.0, %v1237
      %1239 = vmatmul.f32.gmra.mxu0 %v1128
      %v1240 = vpop.f32.mrf.mxu0
      %v1241 = vadd.f32 0.0, %v1240
      %1242 = vmatmul.f32.gmra.mxu0 %v1129
      %v1243 = vpop.f32.mrf.mxu0
      %v1244 = vadd.f32 0.0, %v1243
      %1245 = vmatmul.f32.gmra.mxu0 %v1130
      %v1246 = vpop.f32.mrf.mxu0
      %v1247 = vadd.f32 0.0, %v1246
      %1248 = vmatmul.f32.gmra.mxu0 %v1131
      %v1249 = vpop.f32.mrf.mxu0
      %v1250 = vadd.f32 0.0, %v1249
      %1251 = vmatmul.f32.gmra.mxu0 %v1132
      %v1252 = vpop.f32.mrf.mxu0
      %v1253 = vadd.f32 0.0, %v1252
      %1254 = vmatmul.f32.gmra.mxu0 %v1133
      %v1255 = vpop.f32.mrf.mxu0
      %v1256 = vadd.f32 0.0, %v1255
      %1257 = vmatmul.f32.gmra.mxu0 %v1134
      %v1258 = vpop.f32.mrf.mxu0
      %v1259 = vadd.f32 0.0, %v1258
      %1260 = vmatmul.f32.gmra.mxu0 %v1135
      %v1261 = vpop.f32.mrf.mxu0
      %v1262 = vadd.f32 0.0, %v1261
      %1263 = vmatmul.f32.gmra.mxu0 %v1136
      %v1264 = vpop.f32.mrf.mxu0
      %v1265 = vadd.f32 0.0, %v1264
      %1266 = vdwg.mxu0
      %v1267 = vadd.f32 %v1073, %v1172
      %v1268 = vadd.f32 %v1074, %v1175
      %v1269 = vadd.f32 %v1075, %v1178
      %v1270 = vadd.f32 %v1076, %v1181
      %v1271 = vadd.f32 %v1077, %v1184
      %v1272 = vadd.f32 %v1078, %v1187
      %v1273 = vadd.f32 %v1079, %v1190
      %v1274 = vadd.f32 %v1080, %v1193
      %v1275 = vadd.f32 %v1081, %v1196
      %v1276 = vadd.f32 %v1082, %v1199
      %v1277 = vadd.f32 %v1083, %v1202
      %v1278 = vadd.f32 %v1084, %v1205
      %v1279 = vadd.f32 %v1085, %v1208
      %v1280 = vadd.f32 %v1086, %v1211
      %v1281 = vadd.f32 %v1087, %v1214
      %v1282 = vadd.f32 %v1088, %v1217
      %v1283 = vadd.f32 %v1089, %v1220
      %v1284 = vadd.f32 %v1090, %v1223
      %v1285 = vadd.f32 %v1091, %v1226
      %v1286 = vadd.f32 %v1092, %v1229
      %v1287 = vadd.f32 %v1093, %v1232
      %v1288 = vadd.f32 %v1094, %v1235
      %v1289 = vadd.f32 %v1095, %v1238
      %v1290 = vadd.f32 %v1096, %v1241
      %v1291 = vadd.f32 %v1097, %v1244
      %v1292 = vadd.f32 %v1098, %v1247
      %v1293 = vadd.f32 %v1099, %v1250
      %v1294 = vadd.f32 %v1100, %v1253
      %v1295 = vadd.f32 %v1101, %v1256
      %v1296 = vadd.f32 %v1102, %v1259
      %v1297 = vadd.f32 %v1103, %v1262
      %v1298 = vadd.f32 %v1104, %v1265
      %s1299 = sadd.s32 %s194, 2
      %s1300 = smul.u32 %s1299, 24
      %s1301 = scalar_lea.vmem %s183, %s1300
      %v1302 = vld [vmem:[%s1301] sm:$0xff]
      %v1303 = vld [vmem:[%s1301 + $0x8] sm:$0xff]
      %v1304 = vld [vmem:[%s1301 + $0x18] sm:$0xff]
      %v1305 = vld [vmem:[%s1301 + $0x20] sm:$0xff]
      %v1306 = vld [vmem:[%s1301 + $0x30] sm:$0xff]
      %v1307 = vld [vmem:[%s1301 + $0x38] sm:$0xff]
      %v1308 = vld [vmem:[%s1301 + $0x48] sm:$0xff]
      %v1309 = vld [vmem:[%s1301 + $0x50] sm:$0xff]
      %v1310 = vld [vmem:[%s1301 + $0x60] sm:$0xff]
      %v1311 = vld [vmem:[%s1301 + $0x68] sm:$0xff]
      %v1312 = vld [vmem:[%s1301 + $0x78] sm:$0xff]
      %v1313 = vld [vmem:[%s1301 + $0x80] sm:$0xff]
      %v1314 = vld [vmem:[%s1301 + $0x90] sm:$0xff]
      %v1315 = vld [vmem:[%s1301 + $0x98] sm:$0xff]
      %v1316 = vld [vmem:[%s1301 + $0xa8] sm:$0xff]
      %v1317 = vld [vmem:[%s1301 + $0xb0] sm:$0xff]
      %v1318 = vld [vmem:[%s1301 + $0xc0] sm:$0xff]
      %v1319 = vld [vmem:[%s1301 + $0xc8] sm:$0xff]
      %v1320 = vld [vmem:[%s1301 + $0xd8] sm:$0xff]
      %v1321 = vld [vmem:[%s1301 + $0xe0] sm:$0xff]
      %v1322 = vld [vmem:[%s1301 + $0xf0] sm:$0xff]
      %v1323 = vld [vmem:[%s1301 + $0xf8] sm:$0xff]
      %v1324 = vld [vmem:[%s1301 + $0x108] sm:$0xff]
      %v1325 = vld [vmem:[%s1301 + $0x110] sm:$0xff]
      %v1326 = vld [vmem:[%s1301 + $0x120] sm:$0xff]
      %v1327 = vld [vmem:[%s1301 + $0x128] sm:$0xff]
      %v1328 = vld [vmem:[%s1301 + $0x138] sm:$0xff]
      %v1329 = vld [vmem:[%s1301 + $0x140] sm:$0xff]
      %v1330 = vld [vmem:[%s1301 + $0x150] sm:$0xff]
      %v1331 = vld [vmem:[%s1301 + $0x158] sm:$0xff]
      %v1332 = vld [vmem:[%s1301 + $0x168] sm:$0xff]
      %v1333 = vld [vmem:[%s1301 + $0x170] sm:$0xff]
      %s1334 = scalar_lea.vmem %s1, 768
      %v1335 = vld [vmem:[%s1334] sm:$0xff]
      %v1336 = vld [vmem:[%s1334 + $0x8] sm:$0xff]
      %v1337 = vld [vmem:[%s1334 + $0x10] sm:$0xff]
      %v1338 = vld [vmem:[%s1334 + $0x18] sm:$0xff]
      %v1339 = vld [vmem:[%s1334 + $0x20] sm:$0xff]
      %v1340 = vld [vmem:[%s1334 + $0x28] sm:$0xff]
      %v1341 = vld [vmem:[%s1334 + $0x30] sm:$0xff]
      %v1342 = vld [vmem:[%s1334 + $0x38] sm:$0xff]
      %v1343 = vld [vmem:[%s1334 + $0x40] sm:$0xff]
      %v1344 = vld [vmem:[%s1334 + $0x48] sm:$0xff]
      %v1345 = vld [vmem:[%s1334 + $0x50] sm:$0xff]
      %v1346 = vld [vmem:[%s1334 + $0x58] sm:$0xff]
      %v1347 = vld [vmem:[%s1334 + $0x60] sm:$0xff]
      %v1348 = vld [vmem:[%s1334 + $0x68] sm:$0xff]
      %v1349 = vld [vmem:[%s1334 + $0x70] sm:$0xff]
      %v1350 = vld [vmem:[%s1334 + $0x78] sm:$0xff]
      %1351 = vmatpush.msra.mxu0 %v1350
      %1352 = vmatpush.msra.mxu0 %v1349
      %1353 = vmatpush.msra.mxu0 %v1348
      %1354 = vmatpush.msra.mxu0 %v1347
      %1355 = vmatpush.msra.mxu0 %v1346
      %1356 = vmatpush.msra.mxu0 %v1345
      %1357 = vmatpush.msra.mxu0 %v1344
      %1358 = vmatpush.msra.mxu0 %v1343
      %1359 = vmatpush.msra.mxu0 %v1342
      %1360 = vmatpush.msra.mxu0 %v1341
      %1361 = vmatpush.msra.mxu0 %v1340
      %1362 = vmatpush.msra.mxu0 %v1339
      %1363 = vmatpush.msra.mxu0 %v1338
      %1364 = vmatpush.msra.mxu0 %v1337
      %1365 = vmatpush.msra.mxu0 %v1336
      %1366 = vmatpush.msra.mxu0 %v1335
      %1367 = vmatmul.f32.gmra.mxu0 %v1302
      %v1368 = vpop.f32.mrf.mxu0
      %v1369 = vadd.f32 0.0, %v1368
      %1370 = vmatmul.f32.gmra.mxu0 %v1303
      %v1371 = vpop.f32.mrf.mxu0
      %v1372 = vadd.f32 0.0, %v1371
      %1373 = vmatmul.f32.gmra.mxu0 %v1304
      %v1374 = vpop.f32.mrf.mxu0
      %v1375 = vadd.f32 0.0, %v1374
      %1376 = vmatmul.f32.gmra.mxu0 %v1305
      %v1377 = vpop.f32.mrf.mxu0
      %v1378 = vadd.f32 0.0, %v1377
      %1379 = vmatmul.f32.gmra.mxu0 %v1306
      %v1380 = vpop.f32.mrf.mxu0
      %v1381 = vadd.f32 0.0, %v1380
      %1382 = vmatmul.f32.gmra.mxu0 %v1307
      %v1383 = vpop.f32.mrf.mxu0
      %v1384 = vadd.f32 0.0, %v1383
      %1385 = vmatmul.f32.gmra.mxu0 %v1308
      %v1386 = vpop.f32.mrf.mxu0
      %v1387 = vadd.f32 0.0, %v1386
      %1388 = vmatmul.f32.gmra.mxu0 %v1309
      %v1389 = vpop.f32.mrf.mxu0
      %v1390 = vadd.f32 0.0, %v1389
      %1391 = vmatmul.f32.gmra.mxu0 %v1310
      %v1392 = vpop.f32.mrf.mxu0
      %v1393 = vadd.f32 0.0, %v1392
      %1394 = vmatmul.f32.gmra.mxu0 %v1311
      %v1395 = vpop.f32.mrf.mxu0
      %v1396 = vadd.f32 0.0, %v1395
      %1397 = vmatmul.f32.gmra.mxu0 %v1312
      %v1398 = vpop.f32.mrf.mxu0
      %v1399 = vadd.f32 0.0, %v1398
      %1400 = vmatmul.f32.gmra.mxu0 %v1313
      %v1401 = vpop.f32.mrf.mxu0
      %v1402 = vadd.f32 0.0, %v1401
      %1403 = vmatmul.f32.gmra.mxu0 %v1314
      %v1404 = vpop.f32.mrf.mxu0
      %v1405 = vadd.f32 0.0, %v1404
      %1406 = vmatmul.f32.gmra.mxu0 %v1315
      %v1407 = vpop.f32.mrf.mxu0
      %v1408 = vadd.f32 0.0, %v1407
      %1409 = vmatmul.f32.gmra.mxu0 %v1316
      %v1410 = vpop.f32.mrf.mxu0
      %v1411 = vadd.f32 0.0, %v1410
      %1412 = vmatmul.f32.gmra.mxu0 %v1317
      %v1413 = vpop.f32.mrf.mxu0
      %v1414 = vadd.f32 0.0, %v1413
      %1415 = vmatmul.f32.gmra.mxu0 %v1318
      %v1416 = vpop.f32.mrf.mxu0
      %v1417 = vadd.f32 0.0, %v1416
      %1418 = vmatmul.f32.gmra.mxu0 %v1319
      %v1419 = vpop.f32.mrf.mxu0
      %v1420 = vadd.f32 0.0, %v1419
      %1421 = vmatmul.f32.gmra.mxu0 %v1320
      %v1422 = vpop.f32.mrf.mxu0
      %v1423 = vadd.f32 0.0, %v1422
      %1424 = vmatmul.f32.gmra.mxu0 %v1321
      %v1425 = vpop.f32.mrf.mxu0
      %v1426 = vadd.f32 0.0, %v1425
      %1427 = vmatmul.f32.gmra.mxu0 %v1322
      %v1428 = vpop.f32.mrf.mxu0
      %v1429 = vadd.f32 0.0, %v1428
      %1430 = vmatmul.f32.gmra.mxu0 %v1323
      %v1431 = vpop.f32.mrf.mxu0
      %v1432 = vadd.f32 0.0, %v1431
      %1433 = vmatmul.f32.gmra.mxu0 %v1324
      %v1434 = vpop.f32.mrf.mxu0
      %v1435 = vadd.f32 0.0, %v1434
      %1436 = vmatmul.f32.gmra.mxu0 %v1325
      %v1437 = vpop.f32.mrf.mxu0
      %v1438 = vadd.f32 0.0, %v1437
      %1439 = vmatmul.f32.gmra.mxu0 %v1326
      %v1440 = vpop.f32.mrf.mxu0
      %v1441 = vadd.f32 0.0, %v1440
      %1442 = vmatmul.f32.gmra.mxu0 %v1327
      %v1443 = vpop.f32.mrf.mxu0
      %v1444 = vadd.f32 0.0, %v1443
      %1445 = vmatmul.f32.gmra.mxu0 %v1328
      %v1446 = vpop.f32.mrf.mxu0
      %v1447 = vadd.f32 0.0, %v1446
      %1448 = vmatmul.f32.gmra.mxu0 %v1329
      %v1449 = vpop.f32.mrf.mxu0
      %v1450 = vadd.f32 0.0, %v1449
      %1451 = vmatmul.f32.gmra.mxu0 %v1330
      %v1452 = vpop.f32.mrf.mxu0
      %v1453 = vadd.f32 0.0, %v1452
      %1454 = vmatmul.f32.gmra.mxu0 %v1331
      %v1455 = vpop.f32.mrf.mxu0
      %v1456 = vadd.f32 0.0, %v1455
      %1457 = vmatmul.f32.gmra.mxu0 %v1332
      %v1458 = vpop.f32.mrf.mxu0
      %v1459 = vadd.f32 0.0, %v1458
      %1460 = vmatmul.f32.gmra.mxu0 %v1333
      %v1461 = vpop.f32.mrf.mxu0
      %v1462 = vadd.f32 0.0, %v1461
      %1463 = vdwg.mxu0
      %v1464 = vadd.f32 %v1267, %v1369
      %v1465 = vadd.f32 %v1268, %v1372
      %v1466 = vadd.f32 %v1269, %v1375
      %v1467 = vadd.f32 %v1270, %v1378
      %v1468 = vadd.f32 %v1271, %v1381
      %v1469 = vadd.f32 %v1272, %v1384
      %v1470 = vadd.f32 %v1273, %v1387
      %v1471 = vadd.f32 %v1274, %v1390
      %v1472 = vadd.f32 %v1275, %v1393
      %v1473 = vadd.f32 %v1276, %v1396
      %v1474 = vadd.f32 %v1277, %v1399
      %v1475 = vadd.f32 %v1278, %v1402
      %v1476 = vadd.f32 %v1279, %v1405
      %v1477 = vadd.f32 %v1280, %v1408
      %v1478 = vadd.f32 %v1281, %v1411
      %v1479 = vadd.f32 %v1282, %v1414
      %v1480 = vadd.f32 %v1283, %v1417
      %v1481 = vadd.f32 %v1284, %v1420
      %v1482 = vadd.f32 %v1285, %v1423
      %v1483 = vadd.f32 %v1286, %v1426
      %v1484 = vadd.f32 %v1287, %v1429
      %v1485 = vadd.f32 %v1288, %v1432
      %v1486 = vadd.f32 %v1289, %v1435
      %v1487 = vadd.f32 %v1290, %v1438
      %v1488 = vadd.f32 %v1291, %v1441
      %v1489 = vadd.f32 %v1292, %v1444
      %v1490 = vadd.f32 %v1293, %v1447
      %v1491 = vadd.f32 %v1294, %v1450
      %v1492 = vadd.f32 %v1295, %v1453
      %v1493 = vadd.f32 %v1296, %v1456
      %v1494 = vadd.f32 %v1297, %v1459
      %v1495 = vadd.f32 %v1298, %v1462
      %v1496 = vld [vmem:[%s1301 + $0x1] sm:$0xff]
      %v1497 = vld [vmem:[%s1301 + $0x9] sm:$0xff]
      %v1498 = vld [vmem:[%s1301 + $0x19] sm:$0xff]
      %v1499 = vld [vmem:[%s1301 + $0x21] sm:$0xff]
      %v1500 = vld [vmem:[%s1301 + $0x31] sm:$0xff]
      %v1501 = vld [vmem:[%s1301 + $0x39] sm:$0xff]
      %v1502 = vld [vmem:[%s1301 + $0x49] sm:$0xff]
      %v1503 = vld [vmem:[%s1301 + $0x51] sm:$0xff]
      %v1504 = vld [vmem:[%s1301 + $0x61] sm:$0xff]
      %v1505 = vld [vmem:[%s1301 + $0x69] sm:$0xff]
      %v1506 = vld [vmem:[%s1301 + $0x79] sm:$0xff]
      %v1507 = vld [vmem:[%s1301 + $0x81] sm:$0xff]
      %v1508 = vld [vmem:[%s1301 + $0x91] sm:$0xff]
      %v1509 = vld [vmem:[%s1301 + $0x99] sm:$0xff]
      %v1510 = vld [vmem:[%s1301 + $0xa9] sm:$0xff]
      %v1511 = vld [vmem:[%s1301 + $0xb1] sm:$0xff]
      %v1512 = vld [vmem:[%s1301 + $0xc1] sm:$0xff]
      %v1513 = vld [vmem:[%s1301 + $0xc9] sm:$0xff]
      %v1514 = vld [vmem:[%s1301 + $0xd9] sm:$0xff]
      %v1515 = vld [vmem:[%s1301 + $0xe1] sm:$0xff]
      %v1516 = vld [vmem:[%s1301 + $0xf1] sm:$0xff]
      %v1517 = vld [vmem:[%s1301 + $0xf9] sm:$0xff]
      %v1518 = vld [vmem:[%s1301 + $0x109] sm:$0xff]
      %v1519 = vld [vmem:[%s1301 + $0x111] sm:$0xff]
      %v1520 = vld [vmem:[%s1301 + $0x121] sm:$0xff]
      %v1521 = vld [vmem:[%s1301 + $0x129] sm:$0xff]
      %v1522 = vld [vmem:[%s1301 + $0x139] sm:$0xff]
      %v1523 = vld [vmem:[%s1301 + $0x141] sm:$0xff]
      %v1524 = vld [vmem:[%s1301 + $0x151] sm:$0xff]
      %v1525 = vld [vmem:[%s1301 + $0x159] sm:$0xff]
      %v1526 = vld [vmem:[%s1301 + $0x169] sm:$0xff]
      %v1527 = vld [vmem:[%s1301 + $0x171] sm:$0xff]
      %s1528 = scalar_lea.vmem %s1, 896
      %v1529 = vld [vmem:[%s1528] sm:$0xff]
      %v1530 = vld [vmem:[%s1528 + $0x8] sm:$0xff]
      %v1531 = vld [vmem:[%s1528 + $0x10] sm:$0xff]
      %v1532 = vld [vmem:[%s1528 + $0x18] sm:$0xff]
      %v1533 = vld [vmem:[%s1528 + $0x20] sm:$0xff]
      %v1534 = vld [vmem:[%s1528 + $0x28] sm:$0xff]
      %v1535 = vld [vmem:[%s1528 + $0x30] sm:$0xff]
      %v1536 = vld [vmem:[%s1528 + $0x38] sm:$0xff]
      %v1537 = vld [vmem:[%s1528 + $0x40] sm:$0xff]
      %v1538 = vld [vmem:[%s1528 + $0x48] sm:$0xff]
      %v1539 = vld [vmem:[%s1528 + $0x50] sm:$0xff]
      %v1540 = vld [vmem:[%s1528 + $0x58] sm:$0xff]
      %v1541 = vld [vmem:[%s1528 + $0x60] sm:$0xff]
      %v1542 = vld [vmem:[%s1528 + $0x68] sm:$0xff]
      %v1543 = vld [vmem:[%s1528 + $0x70] sm:$0xff]
      %v1544 = vld [vmem:[%s1528 + $0x78] sm:$0xff]
      %1545 = vmatpush.msra.mxu0 %v1544
      %1546 = vmatpush.msra.mxu0 %v1543
      %1547 = vmatpush.msra.mxu0 %v1542
      %1548 = vmatpush.msra.mxu0 %v1541
      %1549 = vmatpush.msra.mxu0 %v1540
      %1550 = vmatpush.msra.mxu0 %v1539
      %1551 = vmatpush.msra.mxu0 %v1538
      %1552 = vmatpush.msra.mxu0 %v1537
      %1553 = vmatpush.msra.mxu0 %v1536
      %1554 = vmatpush.msra.mxu0 %v1535
      %1555 = vmatpush.msra.mxu0 %v1534
      %1556 = vmatpush.msra.mxu0 %v1533
      %1557 = vmatpush.msra.mxu0 %v1532
      %1558 = vmatpush.msra.mxu0 %v1531
      %1559 = vmatpush.msra.mxu0 %v1530
      %1560 = vmatpush.msra.mxu0 %v1529
      %1561 = vmatmul.f32.gmra.mxu0 %v1496
      %v1562 = vpop.f32.mrf.mxu0
      %v1563 = vadd.f32 0.0, %v1562
      %1564 = vmatmul.f32.gmra.mxu0 %v1497
      %v1565 = vpop.f32.mrf.mxu0
      %v1566 = vadd.f32 0.0, %v1565
      %1567 = vmatmul.f32.gmra.mxu0 %v1498
      %v1568 = vpop.f32.mrf.mxu0
      %v1569 = vadd.f32 0.0, %v1568
      %1570 = vmatmul.f32.gmra.mxu0 %v1499
      %v1571 = vpop.f32.mrf.mxu0
      %v1572 = vadd.f32 0.0, %v1571
      %1573 = vmatmul.f32.gmra.mxu0 %v1500
      %v1574 = vpop.f32.mrf.mxu0
      %v1575 = vadd.f32 0.0, %v1574
      %1576 = vmatmul.f32.gmra.mxu0 %v1501
      %v1577 = vpop.f32.mrf.mxu0
      %v1578 = vadd.f32 0.0, %v1577
      %1579 = vmatmul.f32.gmra.mxu0 %v1502
      %v1580 = vpop.f32.mrf.mxu0
      %v1581 = vadd.f32 0.0, %v1580
      %1582 = vmatmul.f32.gmra.mxu0 %v1503
      %v1583 = vpop.f32.mrf.mxu0
      %v1584 = vadd.f32 0.0, %v1583
      %1585 = vmatmul.f32.gmra.mxu0 %v1504
      %v1586 = vpop.f32.mrf.mxu0
      %v1587 = vadd.f32 0.0, %v1586
      %1588 = vmatmul.f32.gmra.mxu0 %v1505
      %v1589 = vpop.f32.mrf.mxu0
      %v1590 = vadd.f32 0.0, %v1589
      %1591 = vmatmul.f32.gmra.mxu0 %v1506
      %v1592 = vpop.f32.mrf.mxu0
      %v1593 = vadd.f32 0.0, %v1592
      %1594 = vmatmul.f32.gmra.mxu0 %v1507
      %v1595 = vpop.f32.mrf.mxu0
      %v1596 = vadd.f32 0.0, %v1595
      %1597 = vmatmul.f32.gmra.mxu0 %v1508
      %v1598 = vpop.f32.mrf.mxu0
      %v1599 = vadd.f32 0.0, %v1598
      %1600 = vmatmul.f32.gmra.mxu0 %v1509
      %v1601 = vpop.f32.mrf.mxu0
      %v1602 = vadd.f32 0.0, %v1601
      %1603 = vmatmul.f32.gmra.mxu0 %v1510
      %v1604 = vpop.f32.mrf.mxu0
      %v1605 = vadd.f32 0.0, %v1604
      %1606 = vmatmul.f32.gmra.mxu0 %v1511
      %v1607 = vpop.f32.mrf.mxu0
      %v1608 = vadd.f32 0.0, %v1607
      %1609 = vmatmul.f32.gmra.mxu0 %v1512
      %v1610 = vpop.f32.mrf.mxu0
      %v1611 = vadd.f32 0.0, %v1610
      %1612 = vmatmul.f32.gmra.mxu0 %v1513
      %v1613 = vpop.f32.mrf.mxu0
      %v1614 = vadd.f32 0.0, %v1613
      %1615 = vmatmul.f32.gmra.mxu0 %v1514
      %v1616 = vpop.f32.mrf.mxu0
      %v1617 = vadd.f32 0.0, %v1616
      %1618 = vmatmul.f32.gmra.mxu0 %v1515
      %v1619 = vpop.f32.mrf.mxu0
      %v1620 = vadd.f32 0.0, %v1619
      %1621 = vmatmul.f32.gmra.mxu0 %v1516
      %v1622 = vpop.f32.mrf.mxu0
      %v1623 = vadd.f32 0.0, %v1622
      %1624 = vmatmul.f32.gmra.mxu0 %v1517
      %v1625 = vpop.f32.mrf.mxu0
      %v1626 = vadd.f32 0.0, %v1625
      %1627 = vmatmul.f32.gmra.mxu0 %v1518
      %v1628 = vpop.f32.mrf.mxu0
      %v1629 = vadd.f32 0.0, %v1628
      %1630 = vmatmul.f32.gmra.mxu0 %v1519
      %v1631 = vpop.f32.mrf.mxu0
      %v1632 = vadd.f32 0.0, %v1631
      %1633 = vmatmul.f32.gmra.mxu0 %v1520
      %v1634 = vpop.f32.mrf.mxu0
      %v1635 = vadd.f32 0.0, %v1634
      %1636 = vmatmul.f32.gmra.mxu0 %v1521
      %v1637 = vpop.f32.mrf.mxu0
      %v1638 = vadd.f32 0.0, %v1637
      %1639 = vmatmul.f32.gmra.mxu0 %v1522
      %v1640 = vpop.f32.mrf.mxu0
      %v1641 = vadd.f32 0.0, %v1640
      %1642 = vmatmul.f32.gmra.mxu0 %v1523
      %v1643 = vpop.f32.mrf.mxu0
      %v1644 = vadd.f32 0.0, %v1643
      %1645 = vmatmul.f32.gmra.mxu0 %v1524
      %v1646 = vpop.f32.mrf.mxu0
      %v1647 = vadd.f32 0.0, %v1646
      %1648 = vmatmul.f32.gmra.mxu0 %v1525
      %v1649 = vpop.f32.mrf.mxu0
      %v1650 = vadd.f32 0.0, %v1649
      %1651 = vmatmul.f32.gmra.mxu0 %v1526
      %v1652 = vpop.f32.mrf.mxu0
      %v1653 = vadd.f32 0.0, %v1652
      %1654 = vmatmul.f32.gmra.mxu0 %v1527
      %v1655 = vpop.f32.mrf.mxu0
      %v1656 = vadd.f32 0.0, %v1655
      %1657 = vdwg.mxu0
      %v1658 = vadd.f32 %v1464, %v1563
      %v1659 = vadd.f32 %v1465, %v1566
      %v1660 = vadd.f32 %v1466, %v1569
      %v1661 = vadd.f32 %v1467, %v1572
      %v1662 = vadd.f32 %v1468, %v1575
      %v1663 = vadd.f32 %v1469, %v1578
      %v1664 = vadd.f32 %v1470, %v1581
      %v1665 = vadd.f32 %v1471, %v1584
      %v1666 = vadd.f32 %v1472, %v1587
      %v1667 = vadd.f32 %v1473, %v1590
      %v1668 = vadd.f32 %v1474, %v1593
      %v1669 = vadd.f32 %v1475, %v1596
      %v1670 = vadd.f32 %v1476, %v1599
      %v1671 = vadd.f32 %v1477, %v1602
      %v1672 = vadd.f32 %v1478, %v1605
      %v1673 = vadd.f32 %v1479, %v1608
      %v1674 = vadd.f32 %v1480, %v1611
      %v1675 = vadd.f32 %v1481, %v1614
      %v1676 = vadd.f32 %v1482, %v1617
      %v1677 = vadd.f32 %v1483, %v1620
      %v1678 = vadd.f32 %v1484, %v1623
      %v1679 = vadd.f32 %v1485, %v1626
      %v1680 = vadd.f32 %v1486, %v1629
      %v1681 = vadd.f32 %v1487, %v1632
      %v1682 = vadd.f32 %v1488, %v1635
      %v1683 = vadd.f32 %v1489, %v1638
      %v1684 = vadd.f32 %v1490, %v1641
      %v1685 = vadd.f32 %v1491, %v1644
      %v1686 = vadd.f32 %v1492, %v1647
      %v1687 = vadd.f32 %v1493, %v1650
      %v1688 = vadd.f32 %v1494, %v1653
      %v1689 = vadd.f32 %v1495, %v1656
      %v1690 = vld [vmem:[%s1301 + $0x2] sm:$0xff]
      %v1691 = vld [vmem:[%s1301 + $0xa] sm:$0xff]
      %v1692 = vld [vmem:[%s1301 + $0x1a] sm:$0xff]
      %v1693 = vld [vmem:[%s1301 + $0x22] sm:$0xff]
      %v1694 = vld [vmem:[%s1301 + $0x32] sm:$0xff]
      %v1695 = vld [vmem:[%s1301 + $0x3a] sm:$0xff]
      %v1696 = vld [vmem:[%s1301 + $0x4a] sm:$0xff]
      %v1697 = vld [vmem:[%s1301 + $0x52] sm:$0xff]
      %v1698 = vld [vmem:[%s1301 + $0x62] sm:$0xff]
      %v1699 = vld [vmem:[%s1301 + $0x6a] sm:$0xff]
      %v1700 = vld [vmem:[%s1301 + $0x7a] sm:$0xff]
      %v1701 = vld [vmem:[%s1301 + $0x82] sm:$0xff]
      %v1702 = vld [vmem:[%s1301 + $0x92] sm:$0xff]
      %v1703 = vld [vmem:[%s1301 + $0x9a] sm:$0xff]
      %v1704 = vld [vmem:[%s1301 + $0xaa] sm:$0xff]
      %v1705 = vld [vmem:[%s1301 + $0xb2] sm:$0xff]
      %v1706 = vld [vmem:[%s1301 + $0xc2] sm:$0xff]
      %v1707 = vld [vmem:[%s1301 + $0xca] sm:$0xff]
      %v1708 = vld [vmem:[%s1301 + $0xda] sm:$0xff]
      %v1709 = vld [vmem:[%s1301 + $0xe2] sm:$0xff]
      %v1710 = vld [vmem:[%s1301 + $0xf2] sm:$0xff]
      %v1711 = vld [vmem:[%s1301 + $0xfa] sm:$0xff]
      %v1712 = vld [vmem:[%s1301 + $0x10a] sm:$0xff]
      %v1713 = vld [vmem:[%s1301 + $0x112] sm:$0xff]
      %v1714 = vld [vmem:[%s1301 + $0x122] sm:$0xff]
      %v1715 = vld [vmem:[%s1301 + $0x12a] sm:$0xff]
      %v1716 = vld [vmem:[%s1301 + $0x13a] sm:$0xff]
      %v1717 = vld [vmem:[%s1301 + $0x142] sm:$0xff]
      %v1718 = vld [vmem:[%s1301 + $0x152] sm:$0xff]
      %v1719 = vld [vmem:[%s1301 + $0x15a] sm:$0xff]
      %v1720 = vld [vmem:[%s1301 + $0x16a] sm:$0xff]
      %v1721 = vld [vmem:[%s1301 + $0x172] sm:$0xff]
      %s1722 = scalar_lea.vmem %s1, 1024
      %v1723 = vld [vmem:[%s1722] sm:$0xff]
      %v1724 = vld [vmem:[%s1722 + $0x8] sm:$0xff]
      %v1725 = vld [vmem:[%s1722 + $0x10] sm:$0xff]
      %v1726 = vld [vmem:[%s1722 + $0x18] sm:$0xff]
      %v1727 = vld [vmem:[%s1722 + $0x20] sm:$0xff]
      %v1728 = vld [vmem:[%s1722 + $0x28] sm:$0xff]
      %v1729 = vld [vmem:[%s1722 + $0x30] sm:$0xff]
      %v1730 = vld [vmem:[%s1722 + $0x38] sm:$0xff]
      %v1731 = vld [vmem:[%s1722 + $0x40] sm:$0xff]
      %v1732 = vld [vmem:[%s1722 + $0x48] sm:$0xff]
      %v1733 = vld [vmem:[%s1722 + $0x50] sm:$0xff]
      %v1734 = vld [vmem:[%s1722 + $0x58] sm:$0xff]
      %v1735 = vld [vmem:[%s1722 + $0x60] sm:$0xff]
      %v1736 = vld [vmem:[%s1722 + $0x68] sm:$0xff]
      %v1737 = vld [vmem:[%s1722 + $0x70] sm:$0xff]
      %v1738 = vld [vmem:[%s1722 + $0x78] sm:$0xff]
      %1739 = vmatpush.msra.mxu0 %v1738
      %1740 = vmatpush.msra.mxu0 %v1737
      %1741 = vmatpush.msra.mxu0 %v1736
      %1742 = vmatpush.msra.mxu0 %v1735
      %1743 = vmatpush.msra.mxu0 %v1734
      %1744 = vmatpush.msra.mxu0 %v1733
      %1745 = vmatpush.msra.mxu0 %v1732
      %1746 = vmatpush.msra.mxu0 %v1731
      %1747 = vmatpush.msra.mxu0 %v1730
      %1748 = vmatpush.msra.mxu0 %v1729
      %1749 = vmatpush.msra.mxu0 %v1728
      %1750 = vmatpush.msra.mxu0 %v1727
      %1751 = vmatpush.msra.mxu0 %v1726
      %1752 = vmatpush.msra.mxu0 %v1725
      %1753 = vmatpush.msra.mxu0 %v1724
      %1754 = vmatpush.msra.mxu0 %v1723
      %1755 = vmatmul.f32.gmra.mxu0 %v1690
      %v1756 = vpop.f32.mrf.mxu0
      %v1757 = vadd.f32 0.0, %v1756
      %1758 = vmatmul.f32.gmra.mxu0 %v1691
      %v1759 = vpop.f32.mrf.mxu0
      %v1760 = vadd.f32 0.0, %v1759
      %1761 = vmatmul.f32.gmra.mxu0 %v1692
      %v1762 = vpop.f32.mrf.mxu0
      %v1763 = vadd.f32 0.0, %v1762
      %1764 = vmatmul.f32.gmra.mxu0 %v1693
      %v1765 = vpop.f32.mrf.mxu0
      %v1766 = vadd.f32 0.0, %v1765
      %1767 = vmatmul.f32.gmra.mxu0 %v1694
      %v1768 = vpop.f32.mrf.mxu0
      %v1769 = vadd.f32 0.0, %v1768
      %1770 = vmatmul.f32.gmra.mxu0 %v1695
      %v1771 = vpop.f32.mrf.mxu0
      %v1772 = vadd.f32 0.0, %v1771
      %1773 = vmatmul.f32.gmra.mxu0 %v1696
      %v1774 = vpop.f32.mrf.mxu0
      %v1775 = vadd.f32 0.0, %v1774
      %1776 = vmatmul.f32.gmra.mxu0 %v1697
      %v1777 = vpop.f32.mrf.mxu0
      %v1778 = vadd.f32 0.0, %v1777
      %1779 = vmatmul.f32.gmra.mxu0 %v1698
      %v1780 = vpop.f32.mrf.mxu0
      %v1781 = vadd.f32 0.0, %v1780
      %1782 = vmatmul.f32.gmra.mxu0 %v1699
      %v1783 = vpop.f32.mrf.mxu0
      %v1784 = vadd.f32 0.0, %v1783
      %1785 = vmatmul.f32.gmra.mxu0 %v1700
      %v1786 = vpop.f32.mrf.mxu0
      %v1787 = vadd.f32 0.0, %v1786
      %1788 = vmatmul.f32.gmra.mxu0 %v1701
      %v1789 = vpop.f32.mrf.mxu0
      %v1790 = vadd.f32 0.0, %v1789
      %1791 = vmatmul.f32.gmra.mxu0 %v1702
      %v1792 = vpop.f32.mrf.mxu0
      %v1793 = vadd.f32 0.0, %v1792
      %1794 = vmatmul.f32.gmra.mxu0 %v1703
      %v1795 = vpop.f32.mrf.mxu0
      %v1796 = vadd.f32 0.0, %v1795
      %1797 = vmatmul.f32.gmra.mxu0 %v1704
      %v1798 = vpop.f32.mrf.mxu0
      %v1799 = vadd.f32 0.0, %v1798
      %1800 = vmatmul.f32.gmra.mxu0 %v1705
      %v1801 = vpop.f32.mrf.mxu0
      %v1802 = vadd.f32 0.0, %v1801
      %1803 = vmatmul.f32.gmra.mxu0 %v1706
      %v1804 = vpop.f32.mrf.mxu0
      %v1805 = vadd.f32 0.0, %v1804
      %1806 = vmatmul.f32.gmra.mxu0 %v1707
      %v1807 = vpop.f32.mrf.mxu0
      %v1808 = vadd.f32 0.0, %v1807
      %1809 = vmatmul.f32.gmra.mxu0 %v1708
      %v1810 = vpop.f32.mrf.mxu0
      %v1811 = vadd.f32 0.0, %v1810
      %1812 = vmatmul.f32.gmra.mxu0 %v1709
      %v1813 = vpop.f32.mrf.mxu0
      %v1814 = vadd.f32 0.0, %v1813
      %1815 = vmatmul.f32.gmra.mxu0 %v1710
      %v1816 = vpop.f32.mrf.mxu0
      %v1817 = vadd.f32 0.0, %v1816
      %1818 = vmatmul.f32.gmra.mxu0 %v1711
      %v1819 = vpop.f32.mrf.mxu0
      %v1820 = vadd.f32 0.0, %v1819
      %1821 = vmatmul.f32.gmra.mxu0 %v1712
      %v1822 = vpop.f32.mrf.mxu0
      %v1823 = vadd.f32 0.0, %v1822
      %1824 = vmatmul.f32.gmra.mxu0 %v1713
      %v1825 = vpop.f32.mrf.mxu0
      %v1826 = vadd.f32 0.0, %v1825
      %1827 = vmatmul.f32.gmra.mxu0 %v1714
      %v1828 = vpop.f32.mrf.mxu0
      %v1829 = vadd.f32 0.0, %v1828
      %1830 = vmatmul.f32.gmra.mxu0 %v1715
      %v1831 = vpop.f32.mrf.mxu0
      %v1832 = vadd.f32 0.0, %v1831
      %1833 = vmatmul.f32.gmra.mxu0 %v1716
      %v1834 = vpop.f32.mrf.mxu0
      %v1835 = vadd.f32 0.0, %v1834
      %1836 = vmatmul.f32.gmra.mxu0 %v1717
      %v1837 = vpop.f32.mrf.mxu0
      %v1838 = vadd.f32 0.0, %v1837
      %1839 = vmatmul.f32.gmra.mxu0 %v1718
      %v1840 = vpop.f32.mrf.mxu0
      %v1841 = vadd.f32 0.0, %v1840
      %1842 = vmatmul.f32.gmra.mxu0 %v1719
      %v1843 = vpop.f32.mrf.mxu0
      %v1844 = vadd.f32 0.0, %v1843
      %1845 = vmatmul.f32.gmra.mxu0 %v1720
      %v1846 = vpop.f32.mrf.mxu0
      %v1847 = vadd.f32 0.0, %v1846
      %1848 = vmatmul.f32.gmra.mxu0 %v1721
      %v1849 = vpop.f32.mrf.mxu0
      %v1850 = vadd.f32 0.0, %v1849
      %1851 = vdwg.mxu0
      %v1852 = vadd.f32 %v1658, %v1757
      %v1853 = vadd.f32 %v1659, %v1760
      %v1854 = vadd.f32 %v1660, %v1763
      %v1855 = vadd.f32 %v1661, %v1766
      %v1856 = vadd.f32 %v1662, %v1769
      %v1857 = vadd.f32 %v1663, %v1772
      %v1858 = vadd.f32 %v1664, %v1775
      %v1859 = vadd.f32 %v1665, %v1778
      %v1860 = vadd.f32 %v1666, %v1781
      %v1861 = vadd.f32 %v1667, %v1784
      %v1862 = vadd.f32 %v1668, %v1787
      %v1863 = vadd.f32 %v1669, %v1790
      %v1864 = vadd.f32 %v1670, %v1793
      %v1865 = vadd.f32 %v1671, %v1796
      %v1866 = vadd.f32 %v1672, %v1799
      %v1867 = vadd.f32 %v1673, %v1802
      %v1868 = vadd.f32 %v1674, %v1805
      %v1869 = vadd.f32 %v1675, %v1808
      %v1870 = vadd.f32 %v1676, %v1811
      %v1871 = vadd.f32 %v1677, %v1814
      %v1872 = vadd.f32 %v1678, %v1817
      %v1873 = vadd.f32 %v1679, %v1820
      %v1874 = vadd.f32 %v1680, %v1823
      %v1875 = vadd.f32 %v1681, %v1826
      %v1876 = vadd.f32 %v1682, %v1829
      %v1877 = vadd.f32 %v1683, %v1832
      %v1878 = vadd.f32 %v1684, %v1835
      %v1879 = vadd.f32 %v1685, %v1838
      %v1880 = vadd.f32 %v1686, %v1841
      %v1881 = vadd.f32 %v1687, %v1844
      %v1882 = vadd.f32 %v1688, %v1847
      %v1883 = vadd.f32 %v1689, %v1850
      %v1884 = vld [vmem:[%s2] sm:$0x1]
      %v1886 = vperm.slane %v1884, 0
      %v1888 = vadd.f32 %v1852, %v1886
      %v1889 = vadd.f32 %v1853, %v1886
      %v1890 = vadd.f32 %v1854, %v1886
      %v1891 = vadd.f32 %v1855, %v1886
      %v1892 = vadd.f32 %v1856, %v1886
      %v1893 = vadd.f32 %v1857, %v1886
      %v1894 = vadd.f32 %v1858, %v1886
      %v1895 = vadd.f32 %v1859, %v1886
      %v1896 = vadd.f32 %v1860, %v1886
      %v1897 = vadd.f32 %v1861, %v1886
      %v1898 = vadd.f32 %v1862, %v1886
      %v1899 = vadd.f32 %v1863, %v1886
      %v1900 = vadd.f32 %v1864, %v1886
      %v1901 = vadd.f32 %v1865, %v1886
      %v1902 = vadd.f32 %v1866, %v1886
      %v1903 = vadd.f32 %v1867, %v1886
      %v1904 = vadd.f32 %v1868, %v1886
      %v1905 = vadd.f32 %v1869, %v1886
      %v1906 = vadd.f32 %v1870, %v1886
      %v1907 = vadd.f32 %v1871, %v1886
      %v1908 = vadd.f32 %v1872, %v1886
      %v1909 = vadd.f32 %v1873, %v1886
      %v1910 = vadd.f32 %v1874, %v1886
      %v1911 = vadd.f32 %v1875, %v1886
      %v1912 = vadd.f32 %v1876, %v1886
      %v1913 = vadd.f32 %v1877, %v1886
      %v1914 = vadd.f32 %v1878, %v1886
      %v1915 = vadd.f32 %v1879, %v1886
      %v1916 = vadd.f32 %v1880, %v1886
      %v1917 = vadd.f32 %v1881, %v1886
      %v1918 = vadd.f32 %v1882, %v1886
      %v1919 = vadd.f32 %v1883, %v1886
      %v1920 = vmul.f32 %v1888, 0.044715
      %v1921 = vmul.f32 %v1889, 0.044715
      %v1922 = vmul.f32 %v1890, 0.044715
      %v1923 = vmul.f32 %v1891, 0.044715
      %v1924 = vmul.f32 %v1892, 0.044715
      %v1925 = vmul.f32 %v1893, 0.044715
      %v1926 = vmul.f32 %v1894, 0.044715
      %v1927 = vmul.f32 %v1895, 0.044715
      %v1928 = vmul.f32 %v1896, 0.044715
      %v1929 = vmul.f32 %v1897, 0.044715
      %v1930 = vmul.f32 %v1898, 0.044715
      %v1931 = vmul.f32 %v1899, 0.044715
      %v1932 = vmul.f32 %v1900, 0.044715
      %v1933 = vmul.f32 %v1901, 0.044715
      %v1934 = vmul.f32 %v1902, 0.044715
      %v1935 = vmul.f32 %v1903, 0.044715
      %v1936 = vmul.f32 %v1904, 0.044715
      %v1937 = vmul.f32 %v1905, 0.044715
      %v1938 = vmul.f32 %v1906, 0.044715
      %v1939 = vmul.f32 %v1907, 0.044715
      %v1940 = vmul.f32 %v1908, 0.044715
      %v1941 = vmul.f32 %v1909, 0.044715
      %v1942 = vmul.f32 %v1910, 0.044715
      %v1943 = vmul.f32 %v1911, 0.044715
      %v1944 = vmul.f32 %v1912, 0.044715
      %v1945 = vmul.f32 %v1913, 0.044715
      %v1946 = vmul.f32 %v1914, 0.044715
      %v1947 = vmul.f32 %v1915, 0.044715
      %v1948 = vmul.f32 %v1916, 0.044715
      %v1949 = vmul.f32 %v1917, 0.044715
      %v1950 = vmul.f32 %v1918, 0.044715
      %v1951 = vmul.f32 %v1919, 0.044715
      %v1952 = vmul.f32 %v1920, %v1888
      %v1953 = vmul.f32 %v1921, %v1889
      %v1954 = vmul.f32 %v1922, %v1890
      %v1955 = vmul.f32 %v1923, %v1891
      %v1956 = vmul.f32 %v1924, %v1892
      %v1957 = vmul.f32 %v1925, %v1893
      %v1958 = vmul.f32 %v1926, %v1894
      %v1959 = vmul.f32 %v1927, %v1895
      %v1960 = vmul.f32 %v1928, %v1896
      %v1961 = vmul.f32 %v1929, %v1897
      %v1962 = vmul.f32 %v1930, %v1898
      %v1963 = vmul.f32 %v1931, %v1899
      %v1964 = vmul.f32 %v1932, %v1900
      %v1965 = vmul.f32 %v1933, %v1901
      %v1966 = vmul.f32 %v1934, %v1902
      %v1967 = vmul.f32 %v1935, %v1903
      %v1968 = vmul.f32 %v1936, %v1904
      %v1969 = vmul.f32 %v1937, %v1905
      %v1970 = vmul.f32 %v1938, %v1906
      %v1971 = vmul.f32 %v1939, %v1907
      %v1972 = vmul.f32 %v1940, %v1908
      %v1973 = vmul.f32 %v1941, %v1909
      %v1974 = vmul.f32 %v1942, %v1910
      %v1975 = vmul.f32 %v1943, %v1911
      %v1976 = vmul.f32 %v1944, %v1912
      %v1977 = vmul.f32 %v1945, %v1913
      %v1978 = vmul.f32 %v1946, %v1914
      %v1979 = vmul.f32 %v1947, %v1915
      %v1980 = vmul.f32 %v1948, %v1916
      %v1981 = vmul.f32 %v1949, %v1917
      %v1982 = vmul.f32 %v1950, %v1918
      %v1983 = vmul.f32 %v1951, %v1919
      %v1984 = vadd.f32 %v1952, 1.0
      %v1985 = vadd.f32 %v1953, 1.0
      %v1986 = vadd.f32 %v1954, 1.0
      %v1987 = vadd.f32 %v1955, 1.0
      %v1988 = vadd.f32 %v1956, 1.0
      %v1989 = vadd.f32 %v1957, 1.0
      %v1990 = vadd.f32 %v1958, 1.0
      %v1991 = vadd.f32 %v1959, 1.0
      %v1992 = vadd.f32 %v1960, 1.0
      %v1993 = vadd.f32 %v1961, 1.0
      %v1994 = vadd.f32 %v1962, 1.0
      %v1995 = vadd.f32 %v1963, 1.0
      %v1996 = vadd.f32 %v1964, 1.0
      %v1997 = vadd.f32 %v1965, 1.0
      %v1998 = vadd.f32 %v1966, 1.0
      %v1999 = vadd.f32 %v1967, 1.0
      %v2000 = vadd.f32 %v1968, 1.0
      %v2001 = vadd.f32 %v1969, 1.0
      %v2002 = vadd.f32 %v1970, 1.0
      %v2003 = vadd.f32 %v1971, 1.0
      %v2004 = vadd.f32 %v1972, 1.0
      %v2005 = vadd.f32 %v1973, 1.0
      %v2006 = vadd.f32 %v1974, 1.0
      %v2007 = vadd.f32 %v1975, 1.0
      %v2008 = vadd.f32 %v1976, 1.0
      %v2009 = vadd.f32 %v1977, 1.0
      %v2010 = vadd.f32 %v1978, 1.0
      %v2011 = vadd.f32 %v1979, 1.0
      %v2012 = vadd.f32 %v1980, 1.0
      %v2013 = vadd.f32 %v1981, 1.0
      %v2014 = vadd.f32 %v1982, 1.0
      %v2015 = vadd.f32 %v1983, 1.0
      %v2016 = vmul.f32 %v1888, %v1984
      %v2017 = vmul.f32 %v1889, %v1985
      %v2018 = vmul.f32 %v1890, %v1986
      %v2019 = vmul.f32 %v1891, %v1987
      %v2020 = vmul.f32 %v1892, %v1988
      %v2021 = vmul.f32 %v1893, %v1989
      %v2022 = vmul.f32 %v1894, %v1990
      %v2023 = vmul.f32 %v1895, %v1991
      %v2024 = vmul.f32 %v1896, %v1992
      %v2025 = vmul.f32 %v1897, %v1993
      %v2026 = vmul.f32 %v1898, %v1994
      %v2027 = vmul.f32 %v1899, %v1995
      %v2028 = vmul.f32 %v1900, %v1996
      %v2029 = vmul.f32 %v1901, %v1997
      %v2030 = vmul.f32 %v1902, %v1998
      %v2031 = vmul.f32 %v1903, %v1999
      %v2032 = vmul.f32 %v1904, %v2000
      %v2033 = vmul.f32 %v1905, %v2001
      %v2034 = vmul.f32 %v1906, %v2002
      %v2035 = vmul.f32 %v1907, %v2003
      %v2036 = vmul.f32 %v1908, %v2004
      %v2037 = vmul.f32 %v1909, %v2005
      %v2038 = vmul.f32 %v1910, %v2006
      %v2039 = vmul.f32 %v1911, %v2007
      %v2040 = vmul.f32 %v1912, %v2008
      %v2041 = vmul.f32 %v1913, %v2009
      %v2042 = vmul.f32 %v1914, %v2010
      %v2043 = vmul.f32 %v1915, %v2011
      %v2044 = vmul.f32 %v1916, %v2012
      %v2045 = vmul.f32 %v1917, %v2013
      %v2046 = vmul.f32 %v1918, %v2014
      %v2047 = vmul.f32 %v1919, %v2015
      %v2048 = vmul.f32 %v2016, 0.7978846
      %v2049 = vmul.f32 %v2017, 0.7978846
      %v2050 = vmul.f32 %v2018, 0.7978846
      %v2051 = vmul.f32 %v2019, 0.7978846
      %v2052 = vmul.f32 %v2020, 0.7978846
      %v2053 = vmul.f32 %v2021, 0.7978846
      %v2054 = vmul.f32 %v2022, 0.7978846
      %v2055 = vmul.f32 %v2023, 0.7978846
      %v2056 = vmul.f32 %v2024, 0.7978846
      %v2057 = vmul.f32 %v2025, 0.7978846
      %v2058 = vmul.f32 %v2026, 0.7978846
      %v2059 = vmul.f32 %v2027, 0.7978846
      %v2060 = vmul.f32 %v2028, 0.7978846
      %v2061 = vmul.f32 %v2029, 0.7978846
      %v2062 = vmul.f32 %v2030, 0.7978846
      %v2063 = vmul.f32 %v2031, 0.7978846
      %v2064 = vmul.f32 %v2032, 0.7978846
      %v2065 = vmul.f32 %v2033, 0.7978846
      %v2066 = vmul.f32 %v2034, 0.7978846
      %v2067 = vmul.f32 %v2035, 0.7978846
      %v2068 = vmul.f32 %v2036, 0.7978846
      %v2069 = vmul.f32 %v2037, 0.7978846
      %v2070 = vmul.f32 %v2038, 0.7978846
      %v2071 = vmul.f32 %v2039, 0.7978846
      %v2072 = vmul.f32 %v2040, 0.7978846
      %v2073 = vmul.f32 %v2041, 0.7978846
      %v2074 = vmul.f32 %v2042, 0.7978846
      %v2075 = vmul.f32 %v2043, 0.7978846
      %v2076 = vmul.f32 %v2044, 0.7978846
      %v2077 = vmul.f32 %v2045, 0.7978846
      %v2078 = vmul.f32 %v2046, 0.7978846
      %v2079 = vmul.f32 %v2047, 0.7978846
      %v2080 = vmul.f32 %v1888, 0.5
      %v2081 = vmul.f32 %v1889, 0.5
      %v2082 = vmul.f32 %v1890, 0.5
      %v2083 = vmul.f32 %v1891, 0.5
      %v2084 = vmul.f32 %v1892, 0.5
      %v2085 = vmul.f32 %v1893, 0.5
      %v2086 = vmul.f32 %v1894, 0.5
      %v2087 = vmul.f32 %v1895, 0.5
      %v2088 = vmul.f32 %v1896, 0.5
      %v2089 = vmul.f32 %v1897, 0.5
      %v2090 = vmul.f32 %v1898, 0.5
      %v2091 = vmul.f32 %v1899, 0.5
      %v2092 = vmul.f32 %v1900, 0.5
      %v2093 = vmul.f32 %v1901, 0.5
      %v2094 = vmul.f32 %v1902, 0.5
      %v2095 = vmul.f32 %v1903, 0.5
      %v2096 = vmul.f32 %v1904, 0.5
      %v2097 = vmul.f32 %v1905, 0.5
      %v2098 = vmul.f32 %v1906, 0.5
      %v2099 = vmul.f32 %v1907, 0.5
      %v2100 = vmul.f32 %v1908, 0.5
      %v2101 = vmul.f32 %v1909, 0.5
      %v2102 = vmul.f32 %v1910, 0.5
      %v2103 = vmul.f32 %v1911, 0.5
      %v2104 = vmul.f32 %v1912, 0.5
      %v2105 = vmul.f32 %v1913, 0.5
      %v2106 = vmul.f32 %v1914, 0.5
      %v2107 = vmul.f32 %v1915, 0.5
      %v2108 = vmul.f32 %v1916, 0.5
      %v2109 = vmul.f32 %v1917, 0.5
      %v2110 = vmul.f32 %v1918, 0.5
      %v2111 = vmul.f32 %v1919, 0.5
      %v2112 = vtanh.pop %v2048
      %v2113 = vtanh.pop %v2049
      %v2114 = vtanh.pop %v2050
      %v2115 = vtanh.pop %v2051
      %v2116 = vtanh.pop %v2052
      %v2117 = vtanh.pop %v2053
      %v2118 = vtanh.pop %v2054
      %v2119 = vtanh.pop %v2055
      %v2120 = vtanh.pop %v2056
      %v2121 = vtanh.pop %v2057
      %v2122 = vtanh.pop %v2058
      %v2123 = vtanh.pop %v2059
      %v2124 = vtanh.pop %v2060
      %v2125 = vtanh.pop %v2061
      %v2126 = vtanh.pop %v2062
      %v2127 = vtanh.pop %v2063
      %v2128 = vtanh.pop %v2064
      %v2129 = vtanh.pop %v2065
      %v2130 = vtanh.pop %v2066
      %v2131 = vtanh.pop %v2067
      %v2132 = vtanh.pop %v2068
      %v2133 = vtanh.pop %v2069
      %v2134 = vtanh.pop %v2070
      %v2135 = vtanh.pop %v2071
      %v2136 = vtanh.pop %v2072
      %v2137 = vtanh.pop %v2073
      %v2138 = vtanh.pop %v2074
      %v2139 = vtanh.pop %v2075
      %v2140 = vtanh.pop %v2076
      %v2141 = vtanh.pop %v2077
      %v2142 = vtanh.pop %v2078
      %v2143 = vtanh.pop %v2079
      %v2144 = vadd.f32 %v2112, 1.0
      %v2145 = vadd.f32 %v2113, 1.0
      %v2146 = vadd.f32 %v2114, 1.0
      %v2147 = vadd.f32 %v2115, 1.0
      %v2148 = vadd.f32 %v2116, 1.0
      %v2149 = vadd.f32 %v2117, 1.0
      %v2150 = vadd.f32 %v2118, 1.0
      %v2151 = vadd.f32 %v2119, 1.0
      %v2152 = vadd.f32 %v2120, 1.0
      %v2153 = vadd.f32 %v2121, 1.0
      %v2154 = vadd.f32 %v2122, 1.0
      %v2155 = vadd.f32 %v2123, 1.0
      %v2156 = vadd.f32 %v2124, 1.0
      %v2157 = vadd.f32 %v2125, 1.0
      %v2158 = vadd.f32 %v2126, 1.0
      %v2159 = vadd.f32 %v2127, 1.0
      %v2160 = vadd.f32 %v2128, 1.0
      %v2161 = vadd.f32 %v2129, 1.0
      %v2162 = vadd.f32 %v2130, 1.0
      %v2163 = vadd.f32 %v2131, 1.0
      %v2164 = vadd.f32 %v2132, 1.0
      %v2165 = vadd.f32 %v2133, 1.0
      %v2166 = vadd.f32 %v2134, 1.0
      %v2167 = vadd.f32 %v2135, 1.0
      %v2168 = vadd.f32 %v2136, 1.0
      %v2169 = vadd.f32 %v2137, 1.0
      %v2170 = vadd.f32 %v2138, 1.0
      %v2171 = vadd.f32 %v2139, 1.0
      %v2172 = vadd.f32 %v2140, 1.0
      %v2173 = vadd.f32 %v2141, 1.0
      %v2174 = vadd.f32 %v2142, 1.0
      %v2175 = vadd.f32 %v2143, 1.0
      %v2176 = vmul.f32 %v2080, %v2144
      %v2177 = vmul.f32 %v2081, %v2145
      %v2178 = vmul.f32 %v2082, %v2146
      %v2179 = vmul.f32 %v2083, %v2147
      %v2180 = vmul.f32 %v2084, %v2148
      %v2181 = vmul.f32 %v2085, %v2149
      %v2182 = vmul.f32 %v2086, %v2150
      %v2183 = vmul.f32 %v2087, %v2151
      %v2184 = vmul.f32 %v2088, %v2152
      %v2185 = vmul.f32 %v2089, %v2153
      %v2186 = vmul.f32 %v2090, %v2154
      %v2187 = vmul.f32 %v2091, %v2155
      %v2188 = vmul.f32 %v2092, %v2156
      %v2189 = vmul.f32 %v2093, %v2157
      %v2190 = vmul.f32 %v2094, %v2158
      %v2191 = vmul.f32 %v2095, %v2159
      %v2192 = vmul.f32 %v2096, %v2160
      %v2193 = vmul.f32 %v2097, %v2161
      %v2194 = vmul.f32 %v2098, %v2162
      %v2195 = vmul.f32 %v2099, %v2163
      %v2196 = vmul.f32 %v2100, %v2164
      %v2197 = vmul.f32 %v2101, %v2165
      %v2198 = vmul.f32 %v2102, %v2166
      %v2199 = vmul.f32 %v2103, %v2167
      %v2200 = vmul.f32 %v2104, %v2168
      %v2201 = vmul.f32 %v2105, %v2169
      %v2202 = vmul.f32 %v2106, %v2170
      %v2203 = vmul.f32 %v2107, %v2171
      %v2204 = vmul.f32 %v2108, %v2172
      %v2205 = vmul.f32 %v2109, %v2173
      %v2206 = vmul.f32 %v2110, %v2174
      %v2207 = vmul.f32 %v2111, %v2175
      %2208 = vst [vmem:[%s192] sm:$0xff] %v2176
      %2209 = vst [vmem:[%s192 + $0x8] sm:$0xff] %v2177
      %2210 = vst [vmem:[%s192 + $0x10] sm:$0xff] %v2178
      %2211 = vst [vmem:[%s192 + $0x18] sm:$0xff] %v2179
      %2212 = vst [vmem:[%s192 + $0x20] sm:$0xff] %v2180
      %2213 = vst [vmem:[%s192 + $0x28] sm:$0xff] %v2181
      %2214 = vst [vmem:[%s192 + $0x30] sm:$0xff] %v2182
      %2215 = vst [vmem:[%s192 + $0x38] sm:$0xff] %v2183
      %2216 = vst [vmem:[%s192 + $0x40] sm:$0xff] %v2184
      %2217 = vst [vmem:[%s192 + $0x48] sm:$0xff] %v2185
      %2218 = vst [vmem:[%s192 + $0x50] sm:$0xff] %v2186
      %2219 = vst [vmem:[%s192 + $0x58] sm:$0xff] %v2187
      %2220 = vst [vmem:[%s192 + $0x60] sm:$0xff] %v2188
      %2221 = vst [vmem:[%s192 + $0x68] sm:$0xff] %v2189
      %2222 = vst [vmem:[%s192 + $0x70] sm:$0xff] %v2190
      %2223 = vst [vmem:[%s192 + $0x78] sm:$0xff] %v2191
      %2224 = vst [vmem:[%s192 + $0x80] sm:$0xff] %v2192
      %2225 = vst [vmem:[%s192 + $0x88] sm:$0xff] %v2193
      %2226 = vst [vmem:[%s192 + $0x90] sm:$0xff] %v2194
      %2227 = vst [vmem:[%s192 + $0x98] sm:$0xff] %v2195
      %2228 = vst [vmem:[%s192 + $0xa0] sm:$0xff] %v2196
      %2229 = vst [vmem:[%s192 + $0xa8] sm:$0xff] %v2197
      %2230 = vst [vmem:[%s192 + $0xb0] sm:$0xff] %v2198
      %2231 = vst [vmem:[%s192 + $0xb8] sm:$0xff] %v2199
      %2232 = vst [vmem:[%s192 + $0xc0] sm:$0xff] %v2200
      %2233 = vst [vmem:[%s192 + $0xc8] sm:$0xff] %v2201
      %2234 = vst [vmem:[%s192 + $0xd0] sm:$0xff] %v2202
      %2235 = vst [vmem:[%s192 + $0xd8] sm:$0xff] %v2203
      %2236 = vst [vmem:[%s192 + $0xe0] sm:$0xff] %v2204
      %2237 = vst [vmem:[%s192 + $0xe8] sm:$0xff] %v2205
      %2238 = vst [vmem:[%s192 + $0xf0] sm:$0xff] %v2206
      %2239 = vst [vmem:[%s192 + $0xf8] sm:$0xff] %v2207
      %s2240 = smul.u32 32, %s19
      %p2241 = scmp.lt.s32.totalorder %s18, 1
      %s2242 = scalar_select %p2241, %s18, 1
      %p2243 = scmp.lt.s32.totalorder %s2240, 31
      %s2244 = scalar_select %p2243, %s2240, 31
      %s2245 = smul.addr %s2242, 32
      %s2246 = sadd.s32 %s2244, %s2245
      %s2247 = smul.addr %s2246, 8
      %s2248 = scalar_lea.vmem %s3, %s2247
      // Predicated region
      $region33: #{bottleneck_forward.4} parent=31 // pred_check
        %p2249 = pneg %p114
      $region34: #{bottleneck_forward.4} parent=31 // pred_check_branch
        %2251 = sbr.rel (%p2249) target = $region36
      $region35: #{bottleneck_forward.4} parent=31 // pred_region
        %s2252 = smul.u32 32, %s19
      $region36: #{bottleneck_forward.4} parent=31 // pred_fallthru
        _
    $region32: #{bottleneck_forward.4} parent=5 // pred_fallthru
      _
    %p2253 = scmp.le.s32.totalorder 2, %s9
    // Predicated region
    $region37: #{bottleneck_forward.4} parent=5 // pred_check
      %p2254 = pneg %p2253
    $region38: #{bottleneck_forward.4} parent=5 // pred_check_branch
      %2256 = sbr.rel (%p2254) target = $region40
    $region39: #{bottleneck_forward.4} parent=5 // pred_region
      %s2257 = ssub.s32 %s9, 2
      // Predicated region
      $region41: #{bottleneck_forward.4} parent=39 // pred_check
        %p2258 = pneg %p120
      $region42: #{bottleneck_forward.4} parent=39 // pred_check_branch
        %2260 = sbr.rel (%p2258) target = $region44
      $region43: #{bottleneck_forward.4} parent=39 // pred_region
        %s2261 = smul.u32 32, %s21
        %p2262 = scmp.lt.s32.totalorder %s20, 1
        %s2263 = scalar_select %p2262, %s20, 1
        %p2264 = scmp.lt.s32.totalorder %s2261, 31
        %s2265 = scalar_select %p2264, %s2261, 31
        %s2266 = smul.addr %s2263, 32
        %s2267 = sadd.s32 %s2265, %s2266
        %s2268 = smul.addr %s2267, 8
        %s2269 = scalar_lea.vmem %s3, %s2268
      $region44: #{bottleneck_forward.4} parent=39 // pred_fallthru
        _
    $region40: #{bottleneck_forward.4} parent=5 // pred_fallthru
      _
  $region6: #{bottleneck_forward.4} parent=0 // loop_footer
    %s13 = sadd.s32 1, %s9
  $region7: #{bottleneck_forward.4} parent=0 // loop_footer_branch
    %8 = sbr.rel target = $region3
  $region8: #{bottleneck_forward.4} parent=0 // loop_exit
    _

</llo_original>
